<compile_context>
chip_gen: v7x
topology: tpu7x:2x2x1
jax: 0.10.0
libtpu: 0.0.40
codegen_flags: <defaults>
</compile_context>

<pallas_src>
import numpy as np
import jax
import jax.numpy as jnp
from jax import lax
from jax.experimental import pallas as pl
from jax.experimental.pallas import tpu as pltpu

D_MODEL = 128
NHEAD = 2
HEAD_DIM = D_MODEL // NHEAD
FF_DIM = 2048          # nn.TransformerEncoderLayer default dim_feedforward
NUM_LAYERS = 2
LN_EPS = 1e-5
BN_EPS = 1e-5
ATTN_SCALE = 1.0 / float(np.sqrt(HEAD_DIM))
VMEM_LIMIT_BYTES = 48 * 1024 * 1024   # < v7x's 64 MiB physical, << v5e/v6e 128 MiB

# Packed bias/gamma/beta slab row indices (one (16,128) f32 input instead of
# eleven separate (1,128)/(1,384) inputs).
_R_L1B, _R_OUTB, _R_FF2B = 0, 1, 2
_R_LN1G, _R_LN1B, _R_LN2G, _R_LN2B = 3, 4, 5, 6
_R_BNG, _R_BNB = 7, 8
_R_INBQ, _R_INBK, _R_INBV = 9, 10, 11
_VEC_ROWS = 16


# ----------------------------------------------------------------------------
# Host-side positional encoding (numpy, same as the reference)
# ----------------------------------------------------------------------------

def position_encoding_2d(positions, d_model):
    assert d_model % 2 == 0
    position_enc = np.zeros((len(positions), d_model))
    d_model_half = d_model // 2
    for idx, (x, y) in enumerate(positions):
        div_term = 10000 ** (2 * np.arange(d_model_half) / d_model_half)
        position_enc[idx, :d_model_half] = np.sin(x / div_term)
        position_enc[idx, d_model_half:] = np.cos(y / div_term)
    return position_enc


# ----------------------------------------------------------------------------
# Fused encode kernel: minmax -> l1+PE -> 2x encoder layer -> l1 -> BN
# Both streams are processed in one call on concatenated rows.
# ----------------------------------------------------------------------------

def _layernorm(z, g, b):
    mean = jnp.mean(z, axis=-1, keepdims=True)
    var = jnp.mean((z - mean) ** 2, axis=-1, keepdims=True)
    return (z - mean) * lax.rsqrt(var + LN_EPS) * g + b


def _make_encode_kernel(lengths, ff_chunk):
    """Kernel closure over static per-stream row bounds and the FFN chunk."""
    lengths = tuple(int(l) for l in lengths)
    rows = sum(lengths)
    bounds = []
    start = 0
    for ln in lengths:
        bounds.append((start, ln))
        start += ln

    def rowsel(stats):
        # stats: one (1, C) array per stream -> per-row-selected (rows, C).
        if len(stats) == 1:
            return stats[0]
        row_idx = lax.broadcasted_iota(jnp.int32, (rows, 1), 0)
        out = stats[0]
        for s in range(1, len(stats)):
            out = jnp.where(row_idx >= bounds[s][0], stats[s], out)
        return out

    def kernel(x_ref, pe_ref, l1_wT_ref, in_wT_ref, out_wT_ref,
               ff1_wT_ref, ff2_wT_ref, vec_ref, ff1_b_ref, o_ref):
        # Unpack the packed (16,128) bias/gamma/beta slab (f32).
        vec = vec_ref[...]
        l1_b = vec[_R_L1B:_R_L1B + 1, :]
        out_b = vec[_R_OUTB:_R_OUTB + 1, :]
        ff2_b = vec[_R_FF2B:_R_FF2B + 1, :]
        ln1_g = vec[_R_LN1G:_R_LN1G + 1, :]
        ln1_b = vec[_R_LN1B:_R_LN1B + 1, :]
        ln2_g = vec[_R_LN2G:_R_LN2G + 1, :]
        ln2_b = vec[_R_LN2B:_R_LN2B + 1, :]
        bn_g = vec[_R_BNG:_R_BNG + 1, :]
        bn_b = vec[_R_BNB:_R_BNB + 1, :]
        in_bq = vec[_R_INBQ:_R_INBQ + 1, :]
        in_bk = vec[_R_INBK:_R_INBK + 1, :]
        in_bv = vec[_R_INBV:_R_INBV + 1, :]

        l1_wT = l1_wT_ref[...]      # bf16 weights, VMEM-resident
        in_wT = in_wT_ref[...]
        out_wT = out_wT_ref[...]
        ff1_wT = ff1_wT_ref[...]
        ff2_wT = ff2_wT_ref[...]
        ff1_b = ff1_b_ref[...]      # f32 (1, FF_DIM)

        def mm(a, wT):
            # bf16 MXU operands, f32 accumulation; elementwise math stays f32.
            return jnp.dot(a.astype(jnp.bfloat16), wT,
                           preferred_element_type=jnp.float32)

        x = x_ref[...]              # (rows, 128) f32

        # Per-stream min-max normalization (reference has no epsilon).
        mins, maxs = [], []
        for st, ln in bounds:
            xs = x[st:st + ln]
            mins.append(jnp.min(xs, keepdims=True))
            maxs.append(jnp.max(xs, keepdims=True))
        mn = rowsel(mins)
        mx = rowsel(maxs)
        x = (x - mn) / (mx - mn)

        # linear1 + positional encoding (both streams in one matmul).
        x = mm(x, l1_wT) + l1_b + pe_ref[...]

        lane = lax.broadcasted_iota(jnp.int32, (1, D_MODEL), 1)

        # Both encoder layers share identical initial weights (deepcopy init).
        for _ in range(NUM_LAYERS):
            qkv = mm(x, in_wT)                                   # (rows, 384)
            q = qkv[:, 0 * D_MODEL:1 * D_MODEL] + in_bq
            k = qkv[:, 1 * D_MODEL:2 * D_MODEL] + in_bk
            v = qkv[:, 2 * D_MODEL:3 * D_MODEL] + in_bv

            # Per-stream multi-head attention.  Heads are lane slices of q/k;
            # per-head contexts are produced at full 128 lanes by masking V to
            # the head's lanes and summed — numerically identical to
            # lane-concatenating the head outputs, so the out-projection is a
            # single K=128 matmul over all rows.
            ctx_parts = []
            for st, ln in bounds:
                vs = v[st:st + ln, :]
                ctx_s = None
                for h in range(NHEAD):
                    lo = h * HEAD_DIM
                    hi = lo + HEAD_DIM
                    qh = q[st:st + ln, lo:hi].astype(jnp.bfloat16)
                    kh = k[st:st + ln, lo:hi].astype(jnp.bfloat16)
                    s = lax.dot_general(qh, kh, (((1,), (1,)), ((), ())),
                                        preferred_element_type=jnp.float32)
                    s = s * ATTN_SCALE
                    m = jnp.max(s, axis=-1, keepdims=True)
                    p = jnp.exp(s - m)
                    p = p * pl.reciprocal(jnp.sum(p, axis=-1, keepdims=True),
                                          approx=True)
                    vh = jnp.where((lane >= lo) & (lane < hi), vs, 0.0)
                    y = jnp.dot(p.astype(jnp.bfloat16), vh.astype(jnp.bfloat16),
                                preferred_element_type=jnp.float32)
                    ctx_s = y if ctx_s is None else ctx_s + y
                ctx_parts.append(ctx_s)
            ctx = (ctx_parts[0] if len(ctx_parts) == 1
                   else jnp.concatenate(ctx_parts, axis=0))
            attn = mm(ctx, out_wT) + out_b

            # TODO(synk): dropout1 (train mode, p=0.1) treated as identity.
            x = _layernorm(x + attn, ln1_g, ln1_b)

            # FFN, chunked over FF_DIM so the (rows, FF_DIM) intermediate stays
            # bounded at large row counts (single pass at demo sizes).
            ff = jnp.zeros((rows, D_MODEL), jnp.float32)
            for c0 in range(0, FF_DIM, ff_chunk):
                c1 = c0 + ff_chunk
                h1 = mm(x, ff1_wT[:, c0:c1]) + ff1_b[:, c0:c1]
                h1 = jnp.maximum(h1, 0.0)
                ff = ff + mm(h1, ff2_wT[c0:c1, :])
            ff = ff + ff2_b
            # TODO(synk): dropout / dropout2 (train mode, p=0.1) treated as identity.
            x = _layernorm(x + ff, ln2_g, ln2_b)

        # final linear1
        x = mm(x, l1_wT) + l1_b

        # BatchNorm1d (train mode): per-stream batch stats, biased variance.
        means, varis = [], []
        for st, ln in bounds:
            xs = x[st:st + ln]
            mu = jnp.mean(xs, axis=0, keepdims=True)
            means.append(mu)
            varis.append(jnp.mean((xs - mu) ** 2, axis=0, keepdims=True))
        mu = rowsel(means)
        var = rowsel(varis)
        x = (x - mu) * lax.rsqrt(var + BN_EPS) * bn_g + bn_b

        o_ref[...] = x

    return kernel


def encode_streams(x_list, pe_list, params):
    """x_list / pe_list: lists of (N_i, 128) f32.  Returns list of (N_i, 128)."""
    lengths = tuple(int(x.shape[0]) for x in x_list)
    rows = sum(lengths)
    x_all = x_list[0] if len(x_list) == 1 else jnp.concatenate(x_list, axis=0)
    pe_all = pe_list[0] if len(pe_list) == 1 else jnp.concatenate(pe_list, axis=0)

    # Keep the FFN single-pass while (rows, FF_DIM) f32 is small; chunk at scale.
    ff_chunk = FF_DIM if rows * FF_DIM * 4 <= (4 << 20) else 512

    kernel = _make_encode_kernel(lengths, ff_chunk)
    vspec = lambda: pl.BlockSpec(memory_space=pltpu.MemorySpace.VMEM)
    operands = (x_all, pe_all,
                params["l1_wT"], params["in_proj_wT"], params["out_proj_wT"],
                params["ff1_wT"], params["ff2_wT"],
                params["vec_slab"], params["ff1_b"])
    out = pl.pallas_call(
        kernel,
        out_shape=jax.ShapeDtypeStruct((rows, D_MODEL), jnp.float32),
        in_specs=[vspec() for _ in operands],
        out_specs=vspec(),
        compiler_params=pltpu.CompilerParams(
            vmem_limit_bytes=VMEM_LIMIT_BYTES),
    )(*operands)
    offs = np.cumsum((0,) + lengths)
    return [out[int(offs[i]):int(offs[i + 1])] for i in range(len(lengths))]


# ----------------------------------------------------------------------------
# Fused matching head: S, sigmas, row/col softmax product, P min-max norm
# ----------------------------------------------------------------------------

def _match_kernel(xa_ref, xb_ref, w2_ref, b2_ref, sa_ref, sb_ref, p_ref):
    xa = xa_ref[...].astype(jnp.bfloat16)       # (na, 128)
    xb = xb_ref[...].astype(jnp.bfloat16)       # (nb, 128)
    w2 = w2_ref[...].astype(jnp.bfloat16)       # (1, 128)
    b2 = b2_ref[...]                            # (1, 1) f32

    # sigma_A directly as a column (used for P row-scaling and stored as-is),
    # sigma_B lane-dense as a row (used for P column-scaling): two tiny
    # matmuls + sigmoids total, no duplicate/transposed sigma computation.
    sa_col = jax.nn.sigmoid(
        lax.dot_general(xa, w2, (((1,), (1,)), ((), ())),
                        preferred_element_type=jnp.float32) + b2)       # (na, 1)
    sb_row = jax.nn.sigmoid(
        lax.dot_general(w2, xb, (((1,), (1,)), ((), ())),
                        preferred_element_type=jnp.float32) + b2)       # (1, nb)

    S = lax.dot_general(xa, xb, (((1,), (1,)), ((), ())),
                        preferred_element_type=jnp.float32)             # (na, nb)

    # Row softmax (dim=1) folded into P, then column softmax (dim=0), then the
    # sigma outer product — keeps the number of live (na, nb) temporaries low.
    # TODO(synk): tile over row blocks of A (2-pass) before scaling na/nb to
    # thousands of keypoints; a single block is fine at demo sizes.
    row_max = jnp.max(S, axis=1, keepdims=True)
    P = jnp.exp(S - row_max)
    P = P * pl.reciprocal(jnp.sum(P, axis=1, keepdims=True), approx=True)

    col_max = jnp.max(S, axis=0, keepdims=True)
    e_col = jnp.exp(S - col_max)
    P = P * (e_col * pl.reciprocal(jnp.sum(e_col, axis=0, keepdims=True),
                                   approx=True))

    P = P * (sa_col * sb_row)

    pmin = jnp.min(P)
    pmax = jnp.max(P)
    P = (P - pmin) / (pmax - pmin)   # reference has no epsilon

    sa_ref[...] = sa_col
    sb_ref[...] = sb_row
    p_ref[...] = P


def match_head(xa, xb, w2, b2):
    na, nb = xa.shape[0], xb.shape[0]
    vspec = lambda: pl.BlockSpec(memory_space=pltpu.MemorySpace.VMEM)
    sa, sb, P = pl.pallas_call(
        _match_kernel,
        out_shape=(jax.ShapeDtypeStruct((na, 1), jnp.float32),
                   jax.ShapeDtypeStruct((1, nb), jnp.float32),
                   jax.ShapeDtypeStruct((na, nb), jnp.float32)),
        in_specs=[vspec() for _ in range(4)],
        out_specs=(vspec(), vspec(), vspec()),
        compiler_params=pltpu.CompilerParams(
            vmem_limit_bytes=VMEM_LIMIT_BYTES),
    )(xa, xb, w2, b2)
    return sa, sb.reshape(nb, 1), P


# ----------------------------------------------------------------------------
# Full forward
# ----------------------------------------------------------------------------

def lightglue_forward(xA, xB, posA, posB, params):
    peA = jnp.asarray(position_encoding_2d(posA, D_MODEL), dtype=jnp.float32)
    peB = jnp.asarray(position_encoding_2d(posB, D_MODEL), dtype=jnp.float32)
    # One fused encode call for both streams (works for NA != NB, static bounds).
    xa, xb = encode_streams([xA, xB], [peA, peB], params)
    return match_head(xa, xb, params["l2_w"], params["l2_b"])


# ----------------------------------------------------------------------------
# Parameter initialization (mirrors module construction; demo weights)
# ----------------------------------------------------------------------------

def init_params(key):
    ks = jax.random.split(key, 12)

    def xavier(k, out_f, in_f):
        lim = float(np.sqrt(6.0 / (in_f + out_f)))
        return jax.random.uniform(k, (out_f, in_f), jnp.float32, -lim, lim)

    def bias(k, shape, fan_in):
        lim = 1.0 / float(np.sqrt(fan_in))
        return jax.random.uniform(k, shape, jnp.float32, -lim, lim)

    w1 = xavier(ks[0], D_MODEL, D_MODEL)        # linear1 (xavier_uniform)
    w2 = xavier(ks[1], 1, D_MODEL)              # linear2 (xavier_uniform)
    in_proj_w = xavier(ks[2], 3 * D_MODEL, D_MODEL)
    out_proj_w = xavier(ks[3], D_MODEL, D_MODEL)
    ff1_w = xavier(ks[4], FF_DIM, D_MODEL)
    ff2_w = xavier(ks[5], D_MODEL, FF_DIM)

    l1_b = bias(ks[8], (1, D_MODEL), D_MODEL)
    in_proj_b = jnp.zeros((1, 3 * D_MODEL), jnp.float32)
    out_proj_b = jnp.zeros((1, D_MODEL), jnp.float32)
    ff1_b = bias(ks[6], (1, FF_DIM), D_MODEL)
    ff2_b = bias(ks[7], (1, D_MODEL), FF_DIM)
    ln1_g = jnp.ones((1, D_MODEL), jnp.float32)
    ln1_b = jnp.zeros((1, D_MODEL), jnp.float32)
    ln2_g = jnp.ones((1, D_MODEL), jnp.float32)
    ln2_b = jnp.zeros((1, D_MODEL), jnp.float32)
    bn1_g = jnp.ones((1, D_MODEL), jnp.float32)
    bn1_b = jnp.zeros((1, D_MODEL), jnp.float32)

    # Pack all 128-wide bias/gamma/beta vectors (and the three 128-wide slices
    # of in_proj_b) into one (16,128) f32 slab; row order matches _R_* indices.
    vec_rows = [
        l1_b, out_proj_b, ff2_b,
        ln1_g, ln1_b, ln2_g, ln2_b,
        bn1_g, bn1_b,
        in_proj_b[:, 0:D_MODEL],
        in_proj_b[:, D_MODEL:2 * D_MODEL],
        in_proj_b[:, 2 * D_MODEL:3 * D_MODEL],
    ]
    pad = jnp.zeros((_VEC_ROWS - len(vec_rows), D_MODEL), jnp.float32)
    vec_slab = jnp.concatenate(vec_rows + [pad], axis=0)

    return dict(
        # bf16 MXU operands (kernels accumulate in f32).
        l1_wT=w1.T.astype(jnp.bfloat16),
        in_proj_wT=in_proj_w.T.astype(jnp.bfloat16),
        out_proj_wT=out_proj_w.T.astype(jnp.bfloat16),
        ff1_wT=ff1_w.T.astype(jnp.bfloat16),
        ff2_wT=ff2_w.T.astype(jnp.bfloat16),
        vec_slab=vec_slab,
        ff1_b=ff1_b,
        l2_w=w2,
        l2_b=bias(ks[9], (1, 1), D_MODEL),
    )


if __name__ == "__main__":
    NA, NB = 8, 8
    key = jax.random.PRNGKey(0)
    k_params, kA, kB = jax.random.split(key, 3)
    params = init_params(k_params)

    xA = jax.random.normal(kA, (NA, D_MODEL), dtype=jnp.float32)
    xB = jax.random.normal(kB, (NB, D_MODEL), dtype=jnp.float32)
    posA = [(float(i), float(2 * i)) for i in range(NA)]
    posB = [(float(3 * i), float(i + 1)) for i in range(NB)]

    sigma_A, sigma_B, P = lightglue_forward(xA, xB, posA, posB, params)
    jax.block_until_ready((sigma_A, sigma_B, P))

    assert sigma_A.shape == (NA, 1)
    assert sigma_B.shape == (NB, 1)
    assert P.shape == (NA, NB)
    assert bool(jnp.all(jnp.isfinite(P)))
    assert bool(jnp.all(jnp.isfinite(sigma_A)))
    assert bool(jnp.all(jnp.isfinite(sigma_B)))
    print("KERNEL_OK")
</pallas_src>

<mosaic_0001>
module attributes {stable_mosaic.version = 11 : i64} {
  func.func @kernel(%arg0: memref<16x128xf32, #tpu.memory_space<vmem>>, %arg1: memref<16x128xf32, #tpu.memory_space<vmem>>, %arg2: memref<128x128xbf16, #tpu.memory_space<vmem>>, %arg3: memref<128x384xbf16, #tpu.memory_space<vmem>>, %arg4: memref<128x128xbf16, #tpu.memory_space<vmem>>, %arg5: memref<128x2048xbf16, #tpu.memory_space<vmem>>, %arg6: memref<2048x128xbf16, #tpu.memory_space<vmem>>, %arg7: memref<16x128xf32, #tpu.memory_space<vmem>>, %arg8: memref<1x2048xf32, #tpu.memory_space<vmem>>, %arg9: memref<16x128xf32, #tpu.memory_space<vmem>>) attributes {dimension_semantics = [], scalar_prefetch = 0 : i64, scratch_operands = 0 : i64, tpu.core_type = #tpu.core_type<tc>} {
    %c0 = arith.constant 0 : index
    %c0_0 = arith.constant 0 : index
    %0 = vector.load %arg7[%c0, %c0_0] : memref<16x128xf32, #tpu.memory_space<vmem>>, vector<16x128xf32>
    %1 = vector.extract_strided_slice %0 {offsets = [0, 0], sizes = [1, 128], strides = [1, 1]} : vector<16x128xf32> to vector<1x128xf32>
    %2 = vector.extract_strided_slice %0 {offsets = [1, 0], sizes = [1, 128], strides = [1, 1]} : vector<16x128xf32> to vector<1x128xf32>
    %3 = vector.extract_strided_slice %0 {offsets = [2, 0], sizes = [1, 128], strides = [1, 1]} : vector<16x128xf32> to vector<1x128xf32>
    %4 = vector.extract_strided_slice %0 {offsets = [3, 0], sizes = [1, 128], strides = [1, 1]} : vector<16x128xf32> to vector<1x128xf32>
    %5 = vector.extract_strided_slice %0 {offsets = [4, 0], sizes = [1, 128], strides = [1, 1]} : vector<16x128xf32> to vector<1x128xf32>
    %6 = vector.extract_strided_slice %0 {offsets = [5, 0], sizes = [1, 128], strides = [1, 1]} : vector<16x128xf32> to vector<1x128xf32>
    %7 = vector.extract_strided_slice %0 {offsets = [6, 0], sizes = [1, 128], strides = [1, 1]} : vector<16x128xf32> to vector<1x128xf32>
    %8 = vector.extract_strided_slice %0 {offsets = [7, 0], sizes = [1, 128], strides = [1, 1]} : vector<16x128xf32> to vector<1x128xf32>
    %9 = vector.extract_strided_slice %0 {offsets = [8, 0], sizes = [1, 128], strides = [1, 1]} : vector<16x128xf32> to vector<1x128xf32>
    %10 = vector.extract_strided_slice %0 {offsets = [9, 0], sizes = [1, 128], strides = [1, 1]} : vector<16x128xf32> to vector<1x128xf32>
    %11 = vector.extract_strided_slice %0 {offsets = [10, 0], sizes = [1, 128], strides = [1, 1]} : vector<16x128xf32> to vector<1x128xf32>
    %12 = vector.extract_strided_slice %0 {offsets = [11, 0], sizes = [1, 128], strides = [1, 1]} : vector<16x128xf32> to vector<1x128xf32>
    %c0_1 = arith.constant 0 : index
    %c0_2 = arith.constant 0 : index
    %13 = vector.load %arg2[%c0_1, %c0_2] : memref<128x128xbf16, #tpu.memory_space<vmem>>, vector<128x128xbf16>
    %c0_3 = arith.constant 0 : index
    %c0_4 = arith.constant 0 : index
    %14 = vector.load %arg3[%c0_3, %c0_4] : memref<128x384xbf16, #tpu.memory_space<vmem>>, vector<128x384xbf16>
    %c0_5 = arith.constant 0 : index
    %c0_6 = arith.constant 0 : index
    %15 = vector.load %arg4[%c0_5, %c0_6] : memref<128x128xbf16, #tpu.memory_space<vmem>>, vector<128x128xbf16>
    %c0_7 = arith.constant 0 : index
    %c0_8 = arith.constant 0 : index
    %16 = vector.load %arg5[%c0_7, %c0_8] : memref<128x2048xbf16, #tpu.memory_space<vmem>>, vector<128x2048xbf16>
    %c0_9 = arith.constant 0 : index
    %c0_10 = arith.constant 0 : index
    %17 = vector.load %arg6[%c0_9, %c0_10] : memref<2048x128xbf16, #tpu.memory_space<vmem>>, vector<2048x128xbf16>
    %c0_11 = arith.constant 0 : index
    %c0_12 = arith.constant 0 : index
    %18 = vector.load %arg8[%c0_11, %c0_12] : memref<1x2048xf32, #tpu.memory_space<vmem>>, vector<1x2048xf32>
    %c0_13 = arith.constant 0 : index
    %c0_14 = arith.constant 0 : index
    %19 = vector.load %arg0[%c0_13, %c0_14] : memref<16x128xf32, #tpu.memory_space<vmem>>, vector<16x128xf32>
    %20 = vector.extract_strided_slice %19 {offsets = [0, 0], sizes = [8, 128], strides = [1, 1]} : vector<16x128xf32> to vector<8x128xf32>
    %21 = vector.shape_cast %20 : vector<8x128xf32> to vector<1x8x128xf32>
    %cst = arith.constant dense<0x7F800000> : vector<1xf32>
    %22 = vector.multi_reduction <minimumf>, %21, %cst [1, 2] : vector<1x8x128xf32> to vector<1xf32>
    %23 = vector.shape_cast %22 : vector<1xf32> to vector<1x1x1xf32>
    %24 = vector.extract %23[0, 0, 0] : f32 from vector<1x1x1xf32>
    %25 = vector.broadcast %24 : f32 to vector<1x1xf32>
    %26 = vector.shape_cast %20 : vector<8x128xf32> to vector<1x8x128xf32>
    %cst_15 = arith.constant dense<0xFF800000> : vector<1xf32>
    %27 = vector.multi_reduction <maximumf>, %26, %cst_15 [1, 2] : vector<1x8x128xf32> to vector<1xf32>
    %28 = vector.shape_cast %27 : vector<1xf32> to vector<1x1x1xf32>
    %29 = vector.extract %28[0, 0, 0] : f32 from vector<1x1x1xf32>
    %30 = vector.broadcast %29 : f32 to vector<1x1xf32>
    %31 = vector.extract_strided_slice %19 {offsets = [8, 0], sizes = [8, 128], strides = [1, 1]} : vector<16x128xf32> to vector<8x128xf32>
    %32 = vector.shape_cast %31 : vector<8x128xf32> to vector<1x8x128xf32>
    %cst_16 = arith.constant dense<0x7F800000> : vector<1xf32>
    %33 = vector.multi_reduction <minimumf>, %32, %cst_16 [1, 2] : vector<1x8x128xf32> to vector<1xf32>
    %34 = vector.shape_cast %33 : vector<1xf32> to vector<1x1x1xf32>
    %35 = vector.extract %34[0, 0, 0] : f32 from vector<1x1x1xf32>
    %36 = vector.broadcast %35 : f32 to vector<1x1xf32>
    %37 = vector.shape_cast %31 : vector<8x128xf32> to vector<1x8x128xf32>
    %cst_17 = arith.constant dense<0xFF800000> : vector<1xf32>
    %38 = vector.multi_reduction <maximumf>, %37, %cst_17 [1, 2] : vector<1x8x128xf32> to vector<1xf32>
    %39 = vector.shape_cast %38 : vector<1xf32> to vector<1x1x1xf32>
    %40 = vector.extract %39[0, 0, 0] : f32 from vector<1x1x1xf32>
    %41 = vector.broadcast %40 : f32 to vector<1x1xf32>
    %42 = tpu.iota {dimensions = array<i32: 0>} : vector<16x1xi32>
    %c8_i32 = arith.constant 8 : i32
    %43 = vector.broadcast %c8_i32 : i32 to vector<16x1xi32>
    %44 = arith.cmpi sge, %42, %43 : vector<16x1xi32>
    %45 = vector.shape_cast %36 : vector<1x1xf32> to vector<1x1xf32>
    %46 = vector.broadcast %45 : vector<1x1xf32> to vector<16x1xf32>
    %47 = vector.shape_cast %25 : vector<1x1xf32> to vector<1x1xf32>
    %48 = vector.broadcast %47 : vector<1x1xf32> to vector<16x1xf32>
    %49 = arith.select %44, %46, %48 : vector<16x1xi1>, vector<16x1xf32>
    %50 = tpu.iota {dimensions = array<i32: 0>} : vector<16x1xi32>
    %c8_i32_18 = arith.constant 8 : i32
    %51 = vector.broadcast %c8_i32_18 : i32 to vector<16x1xi32>
    %52 = arith.cmpi sge, %50, %51 : vector<16x1xi32>
    %53 = vector.shape_cast %41 : vector<1x1xf32> to vector<1x1xf32>
    %54 = vector.broadcast %53 : vector<1x1xf32> to vector<16x1xf32>
    %55 = vector.shape_cast %30 : vector<1x1xf32> to vector<1x1xf32>
    %56 = vector.broadcast %55 : vector<1x1xf32> to vector<16x1xf32>
    %57 = arith.select %52, %54, %56 : vector<16x1xi1>, vector<16x1xf32>
    %58 = vector.broadcast %49 : vector<16x1xf32> to vector<16x128xf32>
    %59 = arith.subf %19, %58 : vector<16x128xf32>
    %60 = arith.subf %57, %49 : vector<16x1xf32>
    %61 = vector.broadcast %60 : vector<16x1xf32> to vector<16x128xf32>
    %62 = arith.divf %59, %61 : vector<16x128xf32>
    %63 = arith.truncf %62 : vector<16x128xf32> to vector<16x128xbf16>
    %cst_19 = arith.constant dense<0.000000e+00> : vector<16x128xf32>
    %64 = tpu.matmul %63, %13, %cst_19 {dimension_numbers = #tpu.dot_dimension_numbers<[1], [0], [0], [1], [0, 0, 1, 1], [], []>} : vector<16x128xbf16>, vector<128x128xbf16>, vector<16x128xf32> -> vector<16x128xf32>
    %65 = vector.broadcast %1 : vector<1x128xf32> to vector<16x128xf32>
    %66 = arith.addf %64, %65 : vector<16x128xf32>
    %c0_20 = arith.constant 0 : index
    %c0_21 = arith.constant 0 : index
    %67 = vector.load %arg1[%c0_20, %c0_21] : memref<16x128xf32, #tpu.memory_space<vmem>>, vector<16x128xf32>
    %68 = arith.addf %66, %67 : vector<16x128xf32>
    %69 = tpu.iota {dimensions = array<i32: 1>} : vector<1x128xi32>
    %70 = arith.truncf %68 : vector<16x128xf32> to vector<16x128xbf16>
    %cst_22 = arith.constant dense<0.000000e+00> : vector<16x384xf32>
    %71 = tpu.matmul %70, %14, %cst_22 {dimension_numbers = #tpu.dot_dimension_numbers<[1], [0], [0], [1], [0, 0, 1, 1], [], []>} : vector<16x128xbf16>, vector<128x384xbf16>, vector<16x384xf32> -> vector<16x384xf32>
    %72 = vector.extract_strided_slice %71 {offsets = [0, 0], sizes = [16, 128], strides = [1, 1]} : vector<16x384xf32> to vector<16x128xf32>
    %73 = vector.broadcast %10 : vector<1x128xf32> to vector<16x128xf32>
    %74 = arith.addf %72, %73 : vector<16x128xf32>
    %75 = vector.extract_strided_slice %71 {offsets = [0, 128], sizes = [16, 128], strides = [1, 1]} : vector<16x384xf32> to vector<16x128xf32>
    %76 = vector.broadcast %11 : vector<1x128xf32> to vector<16x128xf32>
    %77 = arith.addf %75, %76 : vector<16x128xf32>
    %78 = vector.extract_strided_slice %71 {offsets = [0, 256], sizes = [16, 128], strides = [1, 1]} : vector<16x384xf32> to vector<16x128xf32>
    %79 = vector.broadcast %12 : vector<1x128xf32> to vector<16x128xf32>
    %80 = arith.addf %78, %79 : vector<16x128xf32>
    %81 = vector.extract_strided_slice %80 {offsets = [0, 0], sizes = [8, 128], strides = [1, 1]} : vector<16x128xf32> to vector<8x128xf32>
    %82 = vector.extract_strided_slice %74 {offsets = [0, 0], sizes = [8, 64], strides = [1, 1]} : vector<16x128xf32> to vector<8x64xf32>
    %83 = arith.truncf %82 : vector<8x64xf32> to vector<8x64xbf16>
    %84 = vector.extract_strided_slice %77 {offsets = [0, 0], sizes = [8, 64], strides = [1, 1]} : vector<16x128xf32> to vector<8x64xf32>
    %85 = arith.truncf %84 : vector<8x64xf32> to vector<8x64xbf16>
    %cst_23 = arith.constant dense<0.000000e+00> : vector<8x8xf32>
    %86 = tpu.matmul %83, %85, %cst_23 {dimension_numbers = #tpu.dot_dimension_numbers<[1], [1], [0], [0], [0, 0, 1, 0], [], []>} : vector<8x64xbf16>, vector<8x64xbf16>, vector<8x8xf32> -> vector<8x8xf32>
    %cst_24 = arith.constant 1.250000e-01 : f32
    %87 = vector.broadcast %cst_24 : f32 to vector<8x8xf32>
    %88 = arith.mulf %86, %87 : vector<8x8xf32>
    %cst_25 = arith.constant dense<0xFF800000> : vector<8xf32>
    %89 = vector.multi_reduction <maximumf>, %88, %cst_25 [1] : vector<8x8xf32> to vector<8xf32>
    %90 = vector.shape_cast %89 : vector<8xf32> to vector<8x1xf32>
    %91 = vector.broadcast %90 : vector<8x1xf32> to vector<8x8xf32>
    %92 = arith.subf %88, %91 : vector<8x8xf32>
    %93 = math.exp %92 : vector<8x8xf32>
    %cst_26 = arith.constant dense<0.000000e+00> : vector<8xf32>
    %94 = vector.multi_reduction <add>, %93, %cst_26 [1] : vector<8x8xf32> to vector<8xf32>
    %95 = vector.shape_cast %94 : vector<8xf32> to vector<8x1xf32>
    %96 = tpu.reciprocal %95 {approx = true} : vector<8x1xf32> -> vector<8x1xf32>
    %97 = vector.broadcast %96 : vector<8x1xf32> to vector<8x8xf32>
    %98 = arith.mulf %93, %97 : vector<8x8xf32>
    %c0_i32 = arith.constant 0 : i32
    %99 = vector.broadcast %c0_i32 : i32 to vector<1x128xi32>
    %100 = arith.cmpi sge, %69, %99 : vector<1x128xi32>
    %c64_i32 = arith.constant 64 : i32
    %101 = vector.broadcast %c64_i32 : i32 to vector<1x128xi32>
    %102 = arith.cmpi slt, %69, %101 : vector<1x128xi32>
    %103 = arith.andi %100, %102 : vector<1x128xi1>
    %cst_27 = arith.constant 0.000000e+00 : f32
    %104 = vector.shape_cast %103 : vector<1x128xi1> to vector<1x128xi1>
    %105 = vector.broadcast %104 : vector<1x128xi1> to vector<8x128xi1>
    %106 = vector.broadcast %cst_27 : f32 to vector<8x128xf32>
    %107 = arith.select %105, %81, %106 : vector<8x128xi1>, vector<8x128xf32>
    %108 = arith.truncf %98 : vector<8x8xf32> to vector<8x8xbf16>
    %109 = arith.truncf %107 : vector<8x128xf32> to vector<8x128xbf16>
    %cst_28 = arith.constant dense<0.000000e+00> : vector<8x128xf32>
    %110 = tpu.matmul %108, %109, %cst_28 {dimension_numbers = #tpu.dot_dimension_numbers<[1], [0], [0], [1], [0, 0, 1, 1], [], []>} : vector<8x8xbf16>, vector<8x128xbf16>, vector<8x128xf32> -> vector<8x128xf32>
    %111 = vector.extract_strided_slice %74 {offsets = [0, 64], sizes = [8, 64], strides = [1, 1]} : vector<16x128xf32> to vector<8x64xf32>
    %112 = arith.truncf %111 : vector<8x64xf32> to vector<8x64xbf16>
    %113 = vector.extract_strided_slice %77 {offsets = [0, 64], sizes = [8, 64], strides = [1, 1]} : vector<16x128xf32> to vector<8x64xf32>
    %114 = arith.truncf %113 : vector<8x64xf32> to vector<8x64xbf16>
    %cst_29 = arith.constant dense<0.000000e+00> : vector<8x8xf32>
    %115 = tpu.matmul %112, %114, %cst_29 {dimension_numbers = #tpu.dot_dimension_numbers<[1], [1], [0], [0], [0, 0, 1, 0], [], []>} : vector<8x64xbf16>, vector<8x64xbf16>, vector<8x8xf32> -> vector<8x8xf32>
    %cst_30 = arith.constant 1.250000e-01 : f32
    %116 = vector.broadcast %cst_30 : f32 to vector<8x8xf32>
    %117 = arith.mulf %115, %116 : vector<8x8xf32>
    %cst_31 = arith.constant dense<0xFF800000> : vector<8xf32>
    %118 = vector.multi_reduction <maximumf>, %117, %cst_31 [1] : vector<8x8xf32> to vector<8xf32>
    %119 = vector.shape_cast %118 : vector<8xf32> to vector<8x1xf32>
    %120 = vector.broadcast %119 : vector<8x1xf32> to vector<8x8xf32>
    %121 = arith.subf %117, %120 : vector<8x8xf32>
    %122 = math.exp %121 : vector<8x8xf32>
    %cst_32 = arith.constant dense<0.000000e+00> : vector<8xf32>
    %123 = vector.multi_reduction <add>, %122, %cst_32 [1] : vector<8x8xf32> to vector<8xf32>
    %124 = vector.shape_cast %123 : vector<8xf32> to vector<8x1xf32>
    %125 = tpu.reciprocal %124 {approx = true} : vector<8x1xf32> -> vector<8x1xf32>
    %126 = vector.broadcast %125 : vector<8x1xf32> to vector<8x8xf32>
    %127 = arith.mulf %122, %126 : vector<8x8xf32>
    %c64_i32_33 = arith.constant 64 : i32
    %128 = vector.broadcast %c64_i32_33 : i32 to vector<1x128xi32>
    %129 = arith.cmpi sge, %69, %128 : vector<1x128xi32>
    %c128_i32 = arith.constant 128 : i32
    %130 = vector.broadcast %c128_i32 : i32 to vector<1x128xi32>
    %131 = arith.cmpi slt, %69, %130 : vector<1x128xi32>
    %132 = arith.andi %129, %131 : vector<1x128xi1>
    %cst_34 = arith.constant 0.000000e+00 : f32
    %133 = vector.shape_cast %132 : vector<1x128xi1> to vector<1x128xi1>
    %134 = vector.broadcast %133 : vector<1x128xi1> to vector<8x128xi1>
    %135 = vector.broadcast %cst_34 : f32 to vector<8x128xf32>
    %136 = arith.select %134, %81, %135 : vector<8x128xi1>, vector<8x128xf32>
    %137 = arith.truncf %127 : vector<8x8xf32> to vector<8x8xbf16>
    %138 = arith.truncf %136 : vector<8x128xf32> to vector<8x128xbf16>
    %cst_35 = arith.constant dense<0.000000e+00> : vector<8x128xf32>
    %139 = tpu.matmul %137, %138, %cst_35 {dimension_numbers = #tpu.dot_dimension_numbers<[1], [0], [0], [1], [0, 0, 1, 1], [], []>} : vector<8x8xbf16>, vector<8x128xbf16>, vector<8x128xf32> -> vector<8x128xf32>
    %140 = arith.addf %110, %139 : vector<8x128xf32>
    %141 = vector.extract_strided_slice %80 {offsets = [8, 0], sizes = [8, 128], strides = [1, 1]} : vector<16x128xf32> to vector<8x128xf32>
    %142 = vector.extract_strided_slice %74 {offsets = [8, 0], sizes = [8, 64], strides = [1, 1]} : vector<16x128xf32> to vector<8x64xf32>
    %143 = arith.truncf %142 : vector<8x64xf32> to vector<8x64xbf16>
    %144 = vector.extract_strided_slice %77 {offsets = [8, 0], sizes = [8, 64], strides = [1, 1]} : vector<16x128xf32> to vector<8x64xf32>
    %145 = arith.truncf %144 : vector<8x64xf32> to vector<8x64xbf16>
    %cst_36 = arith.constant dense<0.000000e+00> : vector<8x8xf32>
    %146 = tpu.matmul %143, %145, %cst_36 {dimension_numbers = #tpu.dot_dimension_numbers<[1], [1], [0], [0], [0, 0, 1, 0], [], []>} : vector<8x64xbf16>, vector<8x64xbf16>, vector<8x8xf32> -> vector<8x8xf32>
    %cst_37 = arith.constant 1.250000e-01 : f32
    %147 = vector.broadcast %cst_37 : f32 to vector<8x8xf32>
    %148 = arith.mulf %146, %147 : vector<8x8xf32>
    %cst_38 = arith.constant dense<0xFF800000> : vector<8xf32>
    %149 = vector.multi_reduction <maximumf>, %148, %cst_38 [1] : vector<8x8xf32> to vector<8xf32>
    %150 = vector.shape_cast %149 : vector<8xf32> to vector<8x1xf32>
    %151 = vector.broadcast %150 : vector<8x1xf32> to vector<8x8xf32>
    %152 = arith.subf %148, %151 : vector<8x8xf32>
    %153 = math.exp %152 : vector<8x8xf32>
    %cst_39 = arith.constant dense<0.000000e+00> : vector<8xf32>
    %154 = vector.multi_reduction <add>, %153, %cst_39 [1] : vector<8x8xf32> to vector<8xf32>
    %155 = vector.shape_cast %154 : vector<8xf32> to vector<8x1xf32>
    %156 = tpu.reciprocal %155 {approx = true} : vector<8x1xf32> -> vector<8x1xf32>
    %157 = vector.broadcast %156 : vector<8x1xf32> to vector<8x8xf32>
    %158 = arith.mulf %153, %157 : vector<8x8xf32>
    %c0_i32_40 = arith.constant 0 : i32
    %159 = vector.broadcast %c0_i32_40 : i32 to vector<1x128xi32>
    %160 = arith.cmpi sge, %69, %159 : vector<1x128xi32>
    %c64_i32_41 = arith.constant 64 : i32
    %161 = vector.broadcast %c64_i32_41 : i32 to vector<1x128xi32>
    %162 = arith.cmpi slt, %69, %161 : vector<1x128xi32>
    %163 = arith.andi %160, %162 : vector<1x128xi1>
    %cst_42 = arith.constant 0.000000e+00 : f32
    %164 = vector.shape_cast %163 : vector<1x128xi1> to vector<1x128xi1>
    %165 = vector.broadcast %164 : vector<1x128xi1> to vector<8x128xi1>
    %166 = vector.broadcast %cst_42 : f32 to vector<8x128xf32>
    %167 = arith.select %165, %141, %166 : vector<8x128xi1>, vector<8x128xf32>
    %168 = arith.truncf %158 : vector<8x8xf32> to vector<8x8xbf16>
    %169 = arith.truncf %167 : vector<8x128xf32> to vector<8x128xbf16>
    %cst_43 = arith.constant dense<0.000000e+00> : vector<8x128xf32>
    %170 = tpu.matmul %168, %169, %cst_43 {dimension_numbers = #tpu.dot_dimension_numbers<[1], [0], [0], [1], [0, 0, 1, 1], [], []>} : vector<8x8xbf16>, vector<8x128xbf16>, vector<8x128xf32> -> vector<8x128xf32>
    %171 = vector.extract_strided_slice %74 {offsets = [8, 64], sizes = [8, 64], strides = [1, 1]} : vector<16x128xf32> to vector<8x64xf32>
    %172 = arith.truncf %171 : vector<8x64xf32> to vector<8x64xbf16>
    %173 = vector.extract_strided_slice %77 {offsets = [8, 64], sizes = [8, 64], strides = [1, 1]} : vector<16x128xf32> to vector<8x64xf32>
    %174 = arith.truncf %173 : vector<8x64xf32> to vector<8x64xbf16>
    %cst_44 = arith.constant dense<0.000000e+00> : vector<8x8xf32>
    %175 = tpu.matmul %172, %174, %cst_44 {dimension_numbers = #tpu.dot_dimension_numbers<[1], [1], [0], [0], [0, 0, 1, 0], [], []>} : vector<8x64xbf16>, vector<8x64xbf16>, vector<8x8xf32> -> vector<8x8xf32>
    %cst_45 = arith.constant 1.250000e-01 : f32
    %176 = vector.broadcast %cst_45 : f32 to vector<8x8xf32>
    %177 = arith.mulf %175, %176 : vector<8x8xf32>
    %cst_46 = arith.constant dense<0xFF800000> : vector<8xf32>
    %178 = vector.multi_reduction <maximumf>, %177, %cst_46 [1] : vector<8x8xf32> to vector<8xf32>
    %179 = vector.shape_cast %178 : vector<8xf32> to vector<8x1xf32>
    %180 = vector.broadcast %179 : vector<8x1xf32> to vector<8x8xf32>
    %181 = arith.subf %177, %180 : vector<8x8xf32>
    %182 = math.exp %181 : vector<8x8xf32>
    %cst_47 = arith.constant dense<0.000000e+00> : vector<8xf32>
    %183 = vector.multi_reduction <add>, %182, %cst_47 [1] : vector<8x8xf32> to vector<8xf32>
    %184 = vector.shape_cast %183 : vector<8xf32> to vector<8x1xf32>
    %185 = tpu.reciprocal %184 {approx = true} : vector<8x1xf32> -> vector<8x1xf32>
    %186 = vector.broadcast %185 : vector<8x1xf32> to vector<8x8xf32>
    %187 = arith.mulf %182, %186 : vector<8x8xf32>
    %c64_i32_48 = arith.constant 64 : i32
    %188 = vector.broadcast %c64_i32_48 : i32 to vector<1x128xi32>
    %189 = arith.cmpi sge, %69, %188 : vector<1x128xi32>
    %c128_i32_49 = arith.constant 128 : i32
    %190 = vector.broadcast %c128_i32_49 : i32 to vector<1x128xi32>
    %191 = arith.cmpi slt, %69, %190 : vector<1x128xi32>
    %192 = arith.andi %189, %191 : vector<1x128xi1>
    %cst_50 = arith.constant 0.000000e+00 : f32
    %193 = vector.shape_cast %192 : vector<1x128xi1> to vector<1x128xi1>
    %194 = vector.broadcast %193 : vector<1x128xi1> to vector<8x128xi1>
    %195 = vector.broadcast %cst_50 : f32 to vector<8x128xf32>
    %196 = arith.select %194, %141, %195 : vector<8x128xi1>, vector<8x128xf32>
    %197 = arith.truncf %187 : vector<8x8xf32> to vector<8x8xbf16>
    %198 = arith.truncf %196 : vector<8x128xf32> to vector<8x128xbf16>
    %cst_51 = arith.constant dense<0.000000e+00> : vector<8x128xf32>
    %199 = tpu.matmul %197, %198, %cst_51 {dimension_numbers = #tpu.dot_dimension_numbers<[1], [0], [0], [1], [0, 0, 1, 1], [], []>} : vector<8x8xbf16>, vector<8x128xbf16>, vector<8x128xf32> -> vector<8x128xf32>
    %200 = arith.addf %170, %199 : vector<8x128xf32>
    %201 = tpu.concatenate %140, %200 in 0 : vector<8x128xf32>, vector<8x128xf32> -> vector<16x128xf32>
    %202 = arith.truncf %201 : vector<16x128xf32> to vector<16x128xbf16>
    %cst_52 = arith.constant dense<0.000000e+00> : vector<16x128xf32>
    %203 = tpu.matmul %202, %15, %cst_52 {dimension_numbers = #tpu.dot_dimension_numbers<[1], [0], [0], [1], [0, 0, 1, 1], [], []>} : vector<16x128xbf16>, vector<128x128xbf16>, vector<16x128xf32> -> vector<16x128xf32>
    %204 = vector.broadcast %2 : vector<1x128xf32> to vector<16x128xf32>
    %205 = arith.addf %203, %204 : vector<16x128xf32>
    %206 = arith.addf %68, %205 : vector<16x128xf32>
    %cst_53 = arith.constant dense<0.000000e+00> : vector<16xf32>
    %207 = vector.multi_reduction <add>, %206, %cst_53 [1] : vector<16x128xf32> to vector<16xf32>
    %208 = vector.shape_cast %207 : vector<16xf32> to vector<16x1xf32>
    %cst_54 = arith.constant 1.280000e+02 : f32
    %209 = vector.broadcast %cst_54 : f32 to vector<16x1xf32>
    %210 = arith.divf %208, %209 : vector<16x1xf32>
    %211 = vector.broadcast %210 : vector<16x1xf32> to vector<16x128xf32>
    %212 = arith.subf %206, %211 : vector<16x128xf32>
    %213 = arith.mulf %212, %212 : vector<16x128xf32>
    %cst_55 = arith.constant dense<0.000000e+00> : vector<16xf32>
    %214 = vector.multi_reduction <add>, %213, %cst_55 [1] : vector<16x128xf32> to vector<16xf32>
    %215 = vector.shape_cast %214 : vector<16xf32> to vector<16x1xf32>
    %cst_56 = arith.constant 1.280000e+02 : f32
    %216 = vector.broadcast %cst_56 : f32 to vector<16x1xf32>
    %217 = arith.divf %215, %216 : vector<16x1xf32>
    %218 = vector.broadcast %210 : vector<16x1xf32> to vector<16x128xf32>
    %219 = arith.subf %206, %218 : vector<16x128xf32>
    %cst_57 = arith.constant 9.99999974E-6 : f32
    %220 = vector.broadcast %cst_57 : f32 to vector<16x1xf32>
    %221 = arith.addf %217, %220 : vector<16x1xf32>
    %222 = math.rsqrt %221 : vector<16x1xf32>
    %223 = vector.broadcast %222 : vector<16x1xf32> to vector<16x128xf32>
    %224 = arith.mulf %219, %223 : vector<16x128xf32>
    %225 = vector.broadcast %4 : vector<1x128xf32> to vector<16x128xf32>
    %226 = arith.mulf %224, %225 : vector<16x128xf32>
    %227 = vector.broadcast %5 : vector<1x128xf32> to vector<16x128xf32>
    %228 = arith.addf %226, %227 : vector<16x128xf32>
    %cst_58 = arith.constant 0.000000e+00 : f32
    %229 = vector.broadcast %cst_58 : f32 to vector<16x128xf32>
    %230 = arith.truncf %228 : vector<16x128xf32> to vector<16x128xbf16>
    %cst_59 = arith.constant dense<0.000000e+00> : vector<16x2048xf32>
    %231 = tpu.matmul %230, %16, %cst_59 {dimension_numbers = #tpu.dot_dimension_numbers<[1], [0], [0], [1], [0, 0, 1, 1], [], []>} : vector<16x128xbf16>, vector<128x2048xbf16>, vector<16x2048xf32> -> vector<16x2048xf32>
    %232 = vector.broadcast %18 : vector<1x2048xf32> to vector<16x2048xf32>
    %233 = arith.addf %231, %232 : vector<16x2048xf32>
    %cst_60 = arith.constant 0.000000e+00 : f32
    %234 = vector.broadcast %cst_60 : f32 to vector<16x2048xf32>
    %235 = arith.maximumf %233, %234 : vector<16x2048xf32>
    %236 = arith.truncf %235 : vector<16x2048xf32> to vector<16x2048xbf16>
    %cst_61 = arith.constant dense<0.000000e+00> : vector<16x128xf32>
    %237 = tpu.matmul %236, %17, %cst_61 {dimension_numbers = #tpu.dot_dimension_numbers<[1], [0], [0], [1], [0, 0, 1, 1], [], []>} : vector<16x2048xbf16>, vector<2048x128xbf16>, vector<16x128xf32> -> vector<16x128xf32>
    %238 = arith.addf %229, %237 : vector<16x128xf32>
    %239 = vector.broadcast %3 : vector<1x128xf32> to vector<16x128xf32>
    %240 = arith.addf %238, %239 : vector<16x128xf32>
    %241 = arith.addf %228, %240 : vector<16x128xf32>
    %cst_62 = arith.constant dense<0.000000e+00> : vector<16xf32>
    %242 = vector.multi_reduction <add>, %241, %cst_62 [1] : vector<16x128xf32> to vector<16xf32>
    %243 = vector.shape_cast %242 : vector<16xf32> to vector<16x1xf32>
    %cst_63 = arith.constant 1.280000e+02 : f32
    %244 = vector.broadcast %cst_63 : f32 to vector<16x1xf32>
    %245 = arith.divf %243, %244 : vector<16x1xf32>
    %246 = vector.broadcast %245 : vector<16x1xf32> to vector<16x128xf32>
    %247 = arith.subf %241, %246 : vector<16x128xf32>
    %248 = arith.mulf %247, %247 : vector<16x128xf32>
    %cst_64 = arith.constant dense<0.000000e+00> : vector<16xf32>
    %249 = vector.multi_reduction <add>, %248, %cst_64 [1] : vector<16x128xf32> to vector<16xf32>
    %250 = vector.shape_cast %249 : vector<16xf32> to vector<16x1xf32>
    %cst_65 = arith.constant 1.280000e+02 : f32
    %251 = vector.broadcast %cst_65 : f32 to vector<16x1xf32>
    %252 = arith.divf %250, %251 : vector<16x1xf32>
    %253 = vector.broadcast %245 : vector<16x1xf32> to vector<16x128xf32>
    %254 = arith.subf %241, %253 : vector<16x128xf32>
    %cst_66 = arith.constant 9.99999974E-6 : f32
    %255 = vector.broadcast %cst_66 : f32 to vector<16x1xf32>
    %256 = arith.addf %252, %255 : vector<16x1xf32>
    %257 = math.rsqrt %256 : vector<16x1xf32>
    %258 = vector.broadcast %257 : vector<16x1xf32> to vector<16x128xf32>
    %259 = arith.mulf %254, %258 : vector<16x128xf32>
    %260 = vector.broadcast %6 : vector<1x128xf32> to vector<16x128xf32>
    %261 = arith.mulf %259, %260 : vector<16x128xf32>
    %262 = vector.broadcast %7 : vector<1x128xf32> to vector<16x128xf32>
    %263 = arith.addf %261, %262 : vector<16x128xf32>
    %264 = arith.truncf %263 : vector<16x128xf32> to vector<16x128xbf16>
    %cst_67 = arith.constant dense<0.000000e+00> : vector<16x384xf32>
    %265 = tpu.matmul %264, %14, %cst_67 {dimension_numbers = #tpu.dot_dimension_numbers<[1], [0], [0], [1], [0, 0, 1, 1], [], []>} : vector<16x128xbf16>, vector<128x384xbf16>, vector<16x384xf32> -> vector<16x384xf32>
    %266 = vector.extract_strided_slice %265 {offsets = [0, 0], sizes = [16, 128], strides = [1, 1]} : vector<16x384xf32> to vector<16x128xf32>
    %267 = vector.broadcast %10 : vector<1x128xf32> to vector<16x128xf32>
    %268 = arith.addf %266, %267 : vector<16x128xf32>
    %269 = vector.extract_strided_slice %265 {offsets = [0, 128], sizes = [16, 128], strides = [1, 1]} : vector<16x384xf32> to vector<16x128xf32>
    %270 = vector.broadcast %11 : vector<1x128xf32> to vector<16x128xf32>
    %271 = arith.addf %269, %270 : vector<16x128xf32>
    %272 = vector.extract_strided_slice %265 {offsets = [0, 256], sizes = [16, 128], strides = [1, 1]} : vector<16x384xf32> to vector<16x128xf32>
    %273 = vector.broadcast %12 : vector<1x128xf32> to vector<16x128xf32>
    %274 = arith.addf %272, %273 : vector<16x128xf32>
    %275 = vector.extract_strided_slice %274 {offsets = [0, 0], sizes = [8, 128], strides = [1, 1]} : vector<16x128xf32> to vector<8x128xf32>
    %276 = vector.extract_strided_slice %268 {offsets = [0, 0], sizes = [8, 64], strides = [1, 1]} : vector<16x128xf32> to vector<8x64xf32>
    %277 = arith.truncf %276 : vector<8x64xf32> to vector<8x64xbf16>
    %278 = vector.extract_strided_slice %271 {offsets = [0, 0], sizes = [8, 64], strides = [1, 1]} : vector<16x128xf32> to vector<8x64xf32>
    %279 = arith.truncf %278 : vector<8x64xf32> to vector<8x64xbf16>
    %cst_68 = arith.constant dense<0.000000e+00> : vector<8x8xf32>
    %280 = tpu.matmul %277, %279, %cst_68 {dimension_numbers = #tpu.dot_dimension_numbers<[1], [1], [0], [0], [0, 0, 1, 0], [], []>} : vector<8x64xbf16>, vector<8x64xbf16>, vector<8x8xf32> -> vector<8x8xf32>
    %cst_69 = arith.constant 1.250000e-01 : f32
    %281 = vector.broadcast %cst_69 : f32 to vector<8x8xf32>
    %282 = arith.mulf %280, %281 : vector<8x8xf32>
    %cst_70 = arith.constant dense<0xFF800000> : vector<8xf32>
    %283 = vector.multi_reduction <maximumf>, %282, %cst_70 [1] : vector<8x8xf32> to vector<8xf32>
    %284 = vector.shape_cast %283 : vector<8xf32> to vector<8x1xf32>
    %285 = vector.broadcast %284 : vector<8x1xf32> to vector<8x8xf32>
    %286 = arith.subf %282, %285 : vector<8x8xf32>
    %287 = math.exp %286 : vector<8x8xf32>
    %cst_71 = arith.constant dense<0.000000e+00> : vector<8xf32>
    %288 = vector.multi_reduction <add>, %287, %cst_71 [1] : vector<8x8xf32> to vector<8xf32>
    %289 = vector.shape_cast %288 : vector<8xf32> to vector<8x1xf32>
    %290 = tpu.reciprocal %289 {approx = true} : vector<8x1xf32> -> vector<8x1xf32>
    %291 = vector.broadcast %290 : vector<8x1xf32> to vector<8x8xf32>
    %292 = arith.mulf %287, %291 : vector<8x8xf32>
    %c0_i32_72 = arith.constant 0 : i32
    %293 = vector.broadcast %c0_i32_72 : i32 to vector<1x128xi32>
    %294 = arith.cmpi sge, %69, %293 : vector<1x128xi32>
    %c64_i32_73 = arith.constant 64 : i32
    %295 = vector.broadcast %c64_i32_73 : i32 to vector<1x128xi32>
    %296 = arith.cmpi slt, %69, %295 : vector<1x128xi32>
    %297 = arith.andi %294, %296 : vector<1x128xi1>
    %cst_74 = arith.constant 0.000000e+00 : f32
    %298 = vector.shape_cast %297 : vector<1x128xi1> to vector<1x128xi1>
    %299 = vector.broadcast %298 : vector<1x128xi1> to vector<8x128xi1>
    %300 = vector.broadcast %cst_74 : f32 to vector<8x128xf32>
    %301 = arith.select %299, %275, %300 : vector<8x128xi1>, vector<8x128xf32>
    %302 = arith.truncf %292 : vector<8x8xf32> to vector<8x8xbf16>
    %303 = arith.truncf %301 : vector<8x128xf32> to vector<8x128xbf16>
    %cst_75 = arith.constant dense<0.000000e+00> : vector<8x128xf32>
    %304 = tpu.matmul %302, %303, %cst_75 {dimension_numbers = #tpu.dot_dimension_numbers<[1], [0], [0], [1], [0, 0, 1, 1], [], []>} : vector<8x8xbf16>, vector<8x128xbf16>, vector<8x128xf32> -> vector<8x128xf32>
    %305 = vector.extract_strided_slice %268 {offsets = [0, 64], sizes = [8, 64], strides = [1, 1]} : vector<16x128xf32> to vector<8x64xf32>
    %306 = arith.truncf %305 : vector<8x64xf32> to vector<8x64xbf16>
    %307 = vector.extract_strided_slice %271 {offsets = [0, 64], sizes = [8, 64], strides = [1, 1]} : vector<16x128xf32> to vector<8x64xf32>
    %308 = arith.truncf %307 : vector<8x64xf32> to vector<8x64xbf16>
    %cst_76 = arith.constant dense<0.000000e+00> : vector<8x8xf32>
    %309 = tpu.matmul %306, %308, %cst_76 {dimension_numbers = #tpu.dot_dimension_numbers<[1], [1], [0], [0], [0, 0, 1, 0], [], []>} : vector<8x64xbf16>, vector<8x64xbf16>, vector<8x8xf32> -> vector<8x8xf32>
    %cst_77 = arith.constant 1.250000e-01 : f32
    %310 = vector.broadcast %cst_77 : f32 to vector<8x8xf32>
    %311 = arith.mulf %309, %310 : vector<8x8xf32>
    %cst_78 = arith.constant dense<0xFF800000> : vector<8xf32>
    %312 = vector.multi_reduction <maximumf>, %311, %cst_78 [1] : vector<8x8xf32> to vector<8xf32>
    %313 = vector.shape_cast %312 : vector<8xf32> to vector<8x1xf32>
    %314 = vector.broadcast %313 : vector<8x1xf32> to vector<8x8xf32>
    %315 = arith.subf %311, %314 : vector<8x8xf32>
    %316 = math.exp %315 : vector<8x8xf32>
    %cst_79 = arith.constant dense<0.000000e+00> : vector<8xf32>
    %317 = vector.multi_reduction <add>, %316, %cst_79 [1] : vector<8x8xf32> to vector<8xf32>
    %318 = vector.shape_cast %317 : vector<8xf32> to vector<8x1xf32>
    %319 = tpu.reciprocal %318 {approx = true} : vector<8x1xf32> -> vector<8x1xf32>
    %320 = vector.broadcast %319 : vector<8x1xf32> to vector<8x8xf32>
    %321 = arith.mulf %316, %320 : vector<8x8xf32>
    %c64_i32_80 = arith.constant 64 : i32
    %322 = vector.broadcast %c64_i32_80 : i32 to vector<1x128xi32>
    %323 = arith.cmpi sge, %69, %322 : vector<1x128xi32>
    %c128_i32_81 = arith.constant 128 : i32
    %324 = vector.broadcast %c128_i32_81 : i32 to vector<1x128xi32>
    %325 = arith.cmpi slt, %69, %324 : vector<1x128xi32>
    %326 = arith.andi %323, %325 : vector<1x128xi1>
    %cst_82 = arith.constant 0.000000e+00 : f32
    %327 = vector.shape_cast %326 : vector<1x128xi1> to vector<1x128xi1>
    %328 = vector.broadcast %327 : vector<1x128xi1> to vector<8x128xi1>
    %329 = vector.broadcast %cst_82 : f32 to vector<8x128xf32>
    %330 = arith.select %328, %275, %329 : vector<8x128xi1>, vector<8x128xf32>
    %331 = arith.truncf %321 : vector<8x8xf32> to vector<8x8xbf16>
    %332 = arith.truncf %330 : vector<8x128xf32> to vector<8x128xbf16>
    %cst_83 = arith.constant dense<0.000000e+00> : vector<8x128xf32>
    %333 = tpu.matmul %331, %332, %cst_83 {dimension_numbers = #tpu.dot_dimension_numbers<[1], [0], [0], [1], [0, 0, 1, 1], [], []>} : vector<8x8xbf16>, vector<8x128xbf16>, vector<8x128xf32> -> vector<8x128xf32>
    %334 = arith.addf %304, %333 : vector<8x128xf32>
    %335 = vector.extract_strided_slice %274 {offsets = [8, 0], sizes = [8, 128], strides = [1, 1]} : vector<16x128xf32> to vector<8x128xf32>
    %336 = vector.extract_strided_slice %268 {offsets = [8, 0], sizes = [8, 64], strides = [1, 1]} : vector<16x128xf32> to vector<8x64xf32>
    %337 = arith.truncf %336 : vector<8x64xf32> to vector<8x64xbf16>
    %338 = vector.extract_strided_slice %271 {offsets = [8, 0], sizes = [8, 64], strides = [1, 1]} : vector<16x128xf32> to vector<8x64xf32>
    %339 = arith.truncf %338 : vector<8x64xf32> to vector<8x64xbf16>
    %cst_84 = arith.constant dense<0.000000e+00> : vector<8x8xf32>
    %340 = tpu.matmul %337, %339, %cst_84 {dimension_numbers = #tpu.dot_dimension_numbers<[1], [1], [0], [0], [0, 0, 1, 0], [], []>} : vector<8x64xbf16>, vector<8x64xbf16>, vector<8x8xf32> -> vector<8x8xf32>
    %cst_85 = arith.constant 1.250000e-01 : f32
    %341 = vector.broadcast %cst_85 : f32 to vector<8x8xf32>
    %342 = arith.mulf %340, %341 : vector<8x8xf32>
    %cst_86 = arith.constant dense<0xFF800000> : vector<8xf32>
    %343 = vector.multi_reduction <maximumf>, %342, %cst_86 [1] : vector<8x8xf32> to vector<8xf32>
    %344 = vector.shape_cast %343 : vector<8xf32> to vector<8x1xf32>
    %345 = vector.broadcast %344 : vector<8x1xf32> to vector<8x8xf32>
    %346 = arith.subf %342, %345 : vector<8x8xf32>
    %347 = math.exp %346 : vector<8x8xf32>
    %cst_87 = arith.constant dense<0.000000e+00> : vector<8xf32>
    %348 = vector.multi_reduction <add>, %347, %cst_87 [1] : vector<8x8xf32> to vector<8xf32>
    %349 = vector.shape_cast %348 : vector<8xf32> to vector<8x1xf32>
    %350 = tpu.reciprocal %349 {approx = true} : vector<8x1xf32> -> vector<8x1xf32>
    %351 = vector.broadcast %350 : vector<8x1xf32> to vector<8x8xf32>
    %352 = arith.mulf %347, %351 : vector<8x8xf32>
    %c0_i32_88 = arith.constant 0 : i32
    %353 = vector.broadcast %c0_i32_88 : i32 to vector<1x128xi32>
    %354 = arith.cmpi sge, %69, %353 : vector<1x128xi32>
    %c64_i32_89 = arith.constant 64 : i32
    %355 = vector.broadcast %c64_i32_89 : i32 to vector<1x128xi32>
    %356 = arith.cmpi slt, %69, %355 : vector<1x128xi32>
    %357 = arith.andi %354, %356 : vector<1x128xi1>
    %cst_90 = arith.constant 0.000000e+00 : f32
    %358 = vector.shape_cast %357 : vector<1x128xi1> to vector<1x128xi1>
    %359 = vector.broadcast %358 : vector<1x128xi1> to vector<8x128xi1>
    %360 = vector.broadcast %cst_90 : f32 to vector<8x128xf32>
    %361 = arith.select %359, %335, %360 : vector<8x128xi1>, vector<8x128xf32>
    %362 = arith.truncf %352 : vector<8x8xf32> to vector<8x8xbf16>
    %363 = arith.truncf %361 : vector<8x128xf32> to vector<8x128xbf16>
    %cst_91 = arith.constant dense<0.000000e+00> : vector<8x128xf32>
    %364 = tpu.matmul %362, %363, %cst_91 {dimension_numbers = #tpu.dot_dimension_numbers<[1], [0], [0], [1], [0, 0, 1, 1], [], []>} : vector<8x8xbf16>, vector<8x128xbf16>, vector<8x128xf32> -> vector<8x128xf32>
    %365 = vector.extract_strided_slice %268 {offsets = [8, 64], sizes = [8, 64], strides = [1, 1]} : vector<16x128xf32> to vector<8x64xf32>
    %366 = arith.truncf %365 : vector<8x64xf32> to vector<8x64xbf16>
    %367 = vector.extract_strided_slice %271 {offsets = [8, 64], sizes = [8, 64], strides = [1, 1]} : vector<16x128xf32> to vector<8x64xf32>
    %368 = arith.truncf %367 : vector<8x64xf32> to vector<8x64xbf16>
    %cst_92 = arith.constant dense<0.000000e+00> : vector<8x8xf32>
    %369 = tpu.matmul %366, %368, %cst_92 {dimension_numbers = #tpu.dot_dimension_numbers<[1], [1], [0], [0], [0, 0, 1, 0], [], []>} : vector<8x64xbf16>, vector<8x64xbf16>, vector<8x8xf32> -> vector<8x8xf32>
    %cst_93 = arith.constant 1.250000e-01 : f32
    %370 = vector.broadcast %cst_93 : f32 to vector<8x8xf32>
    %371 = arith.mulf %369, %370 : vector<8x8xf32>
    %cst_94 = arith.constant dense<0xFF800000> : vector<8xf32>
    %372 = vector.multi_reduction <maximumf>, %371, %cst_94 [1] : vector<8x8xf32> to vector<8xf32>
    %373 = vector.shape_cast %372 : vector<8xf32> to vector<8x1xf32>
    %374 = vector.broadcast %373 : vector<8x1xf32> to vector<8x8xf32>
    %375 = arith.subf %371, %374 : vector<8x8xf32>
    %376 = math.exp %375 : vector<8x8xf32>
    %cst_95 = arith.constant dense<0.000000e+00> : vector<8xf32>
    %377 = vector.multi_reduction <add>, %376, %cst_95 [1] : vector<8x8xf32> to vector<8xf32>
    %378 = vector.shape_cast %377 : vector<8xf32> to vector<8x1xf32>
    %379 = tpu.reciprocal %378 {approx = true} : vector<8x1xf32> -> vector<8x1xf32>
    %380 = vector.broadcast %379 : vector<8x1xf32> to vector<8x8xf32>
    %381 = arith.mulf %376, %380 : vector<8x8xf32>
    %c64_i32_96 = arith.constant 64 : i32
    %382 = vector.broadcast %c64_i32_96 : i32 to vector<1x128xi32>
    %383 = arith.cmpi sge, %69, %382 : vector<1x128xi32>
    %c128_i32_97 = arith.constant 128 : i32
    %384 = vector.broadcast %c128_i32_97 : i32 to vector<1x128xi32>
    %385 = arith.cmpi slt, %69, %384 : vector<1x128xi32>
    %386 = arith.andi %383, %385 : vector<1x128xi1>
    %cst_98 = arith.constant 0.000000e+00 : f32
    %387 = vector.shape_cast %386 : vector<1x128xi1> to vector<1x128xi1>
    %388 = vector.broadcast %387 : vector<1x128xi1> to vector<8x128xi1>
    %389 = vector.broadcast %cst_98 : f32 to vector<8x128xf32>
    %390 = arith.select %388, %335, %389 : vector<8x128xi1>, vector<8x128xf32>
    %391 = arith.truncf %381 : vector<8x8xf32> to vector<8x8xbf16>
    %392 = arith.truncf %390 : vector<8x128xf32> to vector<8x128xbf16>
    %cst_99 = arith.constant dense<0.000000e+00> : vector<8x128xf32>
    %393 = tpu.matmul %391, %392, %cst_99 {dimension_numbers = #tpu.dot_dimension_numbers<[1], [0], [0], [1], [0, 0, 1, 1], [], []>} : vector<8x8xbf16>, vector<8x128xbf16>, vector<8x128xf32> -> vector<8x128xf32>
    %394 = arith.addf %364, %393 : vector<8x128xf32>
    %395 = tpu.concatenate %334, %394 in 0 : vector<8x128xf32>, vector<8x128xf32> -> vector<16x128xf32>
    %396 = arith.truncf %395 : vector<16x128xf32> to vector<16x128xbf16>
    %cst_100 = arith.constant dense<0.000000e+00> : vector<16x128xf32>
    %397 = tpu.matmul %396, %15, %cst_100 {dimension_numbers = #tpu.dot_dimension_numbers<[1], [0], [0], [1], [0, 0, 1, 1], [], []>} : vector<16x128xbf16>, vector<128x128xbf16>, vector<16x128xf32> -> vector<16x128xf32>
    %398 = vector.broadcast %2 : vector<1x128xf32> to vector<16x128xf32>
    %399 = arith.addf %397, %398 : vector<16x128xf32>
    %400 = arith.addf %263, %399 : vector<16x128xf32>
    %cst_101 = arith.constant dense<0.000000e+00> : vector<16xf32>
    %401 = vector.multi_reduction <add>, %400, %cst_101 [1] : vector<16x128xf32> to vector<16xf32>
    %402 = vector.shape_cast %401 : vector<16xf32> to vector<16x1xf32>
    %cst_102 = arith.constant 1.280000e+02 : f32
    %403 = vector.broadcast %cst_102 : f32 to vector<16x1xf32>
    %404 = arith.divf %402, %403 : vector<16x1xf32>
    %405 = vector.broadcast %404 : vector<16x1xf32> to vector<16x128xf32>
    %406 = arith.subf %400, %405 : vector<16x128xf32>
    %407 = arith.mulf %406, %406 : vector<16x128xf32>
    %cst_103 = arith.constant dense<0.000000e+00> : vector<16xf32>
    %408 = vector.multi_reduction <add>, %407, %cst_103 [1] : vector<16x128xf32> to vector<16xf32>
    %409 = vector.shape_cast %408 : vector<16xf32> to vector<16x1xf32>
    %cst_104 = arith.constant 1.280000e+02 : f32
    %410 = vector.broadcast %cst_104 : f32 to vector<16x1xf32>
    %411 = arith.divf %409, %410 : vector<16x1xf32>
    %412 = vector.broadcast %404 : vector<16x1xf32> to vector<16x128xf32>
    %413 = arith.subf %400, %412 : vector<16x128xf32>
    %cst_105 = arith.constant 9.99999974E-6 : f32
    %414 = vector.broadcast %cst_105 : f32 to vector<16x1xf32>
    %415 = arith.addf %411, %414 : vector<16x1xf32>
    %416 = math.rsqrt %415 : vector<16x1xf32>
    %417 = vector.broadcast %416 : vector<16x1xf32> to vector<16x128xf32>
    %418 = arith.mulf %413, %417 : vector<16x128xf32>
    %419 = vector.broadcast %4 : vector<1x128xf32> to vector<16x128xf32>
    %420 = arith.mulf %418, %419 : vector<16x128xf32>
    %421 = vector.broadcast %5 : vector<1x128xf32> to vector<16x128xf32>
    %422 = arith.addf %420, %421 : vector<16x128xf32>
    %cst_106 = arith.constant 0.000000e+00 : f32
    %423 = vector.broadcast %cst_106 : f32 to vector<16x128xf32>
    %424 = arith.truncf %422 : vector<16x128xf32> to vector<16x128xbf16>
    %cst_107 = arith.constant dense<0.000000e+00> : vector<16x2048xf32>
    %425 = tpu.matmul %424, %16, %cst_107 {dimension_numbers = #tpu.dot_dimension_numbers<[1], [0], [0], [1], [0, 0, 1, 1], [], []>} : vector<16x128xbf16>, vector<128x2048xbf16>, vector<16x2048xf32> -> vector<16x2048xf32>
    %426 = vector.broadcast %18 : vector<1x2048xf32> to vector<16x2048xf32>
    %427 = arith.addf %425, %426 : vector<16x2048xf32>
    %cst_108 = arith.constant 0.000000e+00 : f32
    %428 = vector.broadcast %cst_108 : f32 to vector<16x2048xf32>
    %429 = arith.maximumf %427, %428 : vector<16x2048xf32>
    %430 = arith.truncf %429 : vector<16x2048xf32> to vector<16x2048xbf16>
    %cst_109 = arith.constant dense<0.000000e+00> : vector<16x128xf32>
    %431 = tpu.matmul %430, %17, %cst_109 {dimension_numbers = #tpu.dot_dimension_numbers<[1], [0], [0], [1], [0, 0, 1, 1], [], []>} : vector<16x2048xbf16>, vector<2048x128xbf16>, vector<16x128xf32> -> vector<16x128xf32>
    %432 = arith.addf %423, %431 : vector<16x128xf32>
    %433 = vector.broadcast %3 : vector<1x128xf32> to vector<16x128xf32>
    %434 = arith.addf %432, %433 : vector<16x128xf32>
    %435 = arith.addf %422, %434 : vector<16x128xf32>
    %cst_110 = arith.constant dense<0.000000e+00> : vector<16xf32>
    %436 = vector.multi_reduction <add>, %435, %cst_110 [1] : vector<16x128xf32> to vector<16xf32>
    %437 = vector.shape_cast %436 : vector<16xf32> to vector<16x1xf32>
    %cst_111 = arith.constant 1.280000e+02 : f32
    %438 = vector.broadcast %cst_111 : f32 to vector<16x1xf32>
    %439 = arith.divf %437, %438 : vector<16x1xf32>
    %440 = vector.broadcast %439 : vector<16x1xf32> to vector<16x128xf32>
    %441 = arith.subf %435, %440 : vector<16x128xf32>
    %442 = arith.mulf %441, %441 : vector<16x128xf32>
    %cst_112 = arith.constant dense<0.000000e+00> : vector<16xf32>
    %443 = vector.multi_reduction <add>, %442, %cst_112 [1] : vector<16x128xf32> to vector<16xf32>
    %444 = vector.shape_cast %443 : vector<16xf32> to vector<16x1xf32>
    %cst_113 = arith.constant 1.280000e+02 : f32
    %445 = vector.broadcast %cst_113 : f32 to vector<16x1xf32>
    %446 = arith.divf %444, %445 : vector<16x1xf32>
    %447 = vector.broadcast %439 : vector<16x1xf32> to vector<16x128xf32>
    %448 = arith.subf %435, %447 : vector<16x128xf32>
    %cst_114 = arith.constant 9.99999974E-6 : f32
    %449 = vector.broadcast %cst_114 : f32 to vector<16x1xf32>
    %450 = arith.addf %446, %449 : vector<16x1xf32>
    %451 = math.rsqrt %450 : vector<16x1xf32>
    %452 = vector.broadcast %451 : vector<16x1xf32> to vector<16x128xf32>
    %453 = arith.mulf %448, %452 : vector<16x128xf32>
    %454 = vector.broadcast %6 : vector<1x128xf32> to vector<16x128xf32>
    %455 = arith.mulf %453, %454 : vector<16x128xf32>
    %456 = vector.broadcast %7 : vector<1x128xf32> to vector<16x128xf32>
    %457 = arith.addf %455, %456 : vector<16x128xf32>
    %458 = arith.truncf %457 : vector<16x128xf32> to vector<16x128xbf16>
    %cst_115 = arith.constant dense<0.000000e+00> : vector<16x128xf32>
    %459 = tpu.matmul %458, %13, %cst_115 {dimension_numbers = #tpu.dot_dimension_numbers<[1], [0], [0], [1], [0, 0, 1, 1], [], []>} : vector<16x128xbf16>, vector<128x128xbf16>, vector<16x128xf32> -> vector<16x128xf32>
    %460 = vector.broadcast %1 : vector<1x128xf32> to vector<16x128xf32>
    %461 = arith.addf %459, %460 : vector<16x128xf32>
    %462 = vector.extract_strided_slice %461 {offsets = [0, 0], sizes = [8, 128], strides = [1, 1]} : vector<16x128xf32> to vector<8x128xf32>
    %cst_116 = arith.constant dense<0.000000e+00> : vector<128xf32>
    %463 = vector.multi_reduction <add>, %462, %cst_116 [0] : vector<8x128xf32> to vector<128xf32>
    %464 = vector.shape_cast %463 : vector<128xf32> to vector<1x128xf32>
    %cst_117 = arith.constant 8.000000e+00 : f32
    %465 = vector.broadcast %cst_117 : f32 to vector<1x128xf32>
    %466 = arith.divf %464, %465 : vector<1x128xf32>
    %467 = vector.broadcast %466 : vector<1x128xf32> to vector<8x128xf32>
    %468 = arith.subf %462, %467 : vector<8x128xf32>
    %469 = arith.mulf %468, %468 : vector<8x128xf32>
    %cst_118 = arith.constant dense<0.000000e+00> : vector<128xf32>
    %470 = vector.multi_reduction <add>, %469, %cst_118 [0] : vector<8x128xf32> to vector<128xf32>
    %471 = vector.shape_cast %470 : vector<128xf32> to vector<1x128xf32>
    %cst_119 = arith.constant 8.000000e+00 : f32
    %472 = vector.broadcast %cst_119 : f32 to vector<1x128xf32>
    %473 = arith.divf %471, %472 : vector<1x128xf32>
    %474 = vector.extract_strided_slice %461 {offsets = [8, 0], sizes = [8, 128], strides = [1, 1]} : vector<16x128xf32> to vector<8x128xf32>
    %cst_120 = arith.constant dense<0.000000e+00> : vector<128xf32>
    %475 = vector.multi_reduction <add>, %474, %cst_120 [0] : vector<8x128xf32> to vector<128xf32>
    %476 = vector.shape_cast %475 : vector<128xf32> to vector<1x128xf32>
    %cst_121 = arith.constant 8.000000e+00 : f32
    %477 = vector.broadcast %cst_121 : f32 to vector<1x128xf32>
    %478 = arith.divf %476, %477 : vector<1x128xf32>
    %479 = vector.broadcast %478 : vector<1x128xf32> to vector<8x128xf32>
    %480 = arith.subf %474, %479 : vector<8x128xf32>
    %481 = arith.mulf %480, %480 : vector<8x128xf32>
    %cst_122 = arith.constant dense<0.000000e+00> : vector<128xf32>
    %482 = vector.multi_reduction <add>, %481, %cst_122 [0] : vector<8x128xf32> to vector<128xf32>
    %483 = vector.shape_cast %482 : vector<128xf32> to vector<1x128xf32>
    %cst_123 = arith.constant 8.000000e+00 : f32
    %484 = vector.broadcast %cst_123 : f32 to vector<1x128xf32>
    %485 = arith.divf %483, %484 : vector<1x128xf32>
    %486 = tpu.iota {dimensions = array<i32: 0>} : vector<16x1xi32>
    %c8_i32_124 = arith.constant 8 : i32
    %487 = vector.broadcast %c8_i32_124 : i32 to vector<16x1xi32>
    %488 = arith.cmpi sge, %486, %487 : vector<16x1xi32>
    %489 = vector.shape_cast %488 : vector<16x1xi1> to vector<16x1xi1>
    %490 = vector.broadcast %489 : vector<16x1xi1> to vector<16x128xi1>
    %491 = vector.shape_cast %478 : vector<1x128xf32> to vector<1x128xf32>
    %492 = vector.broadcast %491 : vector<1x128xf32> to vector<16x128xf32>
    %493 = vector.shape_cast %466 : vector<1x128xf32> to vector<1x128xf32>
    %494 = vector.broadcast %493 : vector<1x128xf32> to vector<16x128xf32>
    %495 = arith.select %490, %492, %494 : vector<16x128xi1>, vector<16x128xf32>
    %496 = tpu.iota {dimensions = array<i32: 0>} : vector<16x1xi32>
    %c8_i32_125 = arith.constant 8 : i32
    %497 = vector.broadcast %c8_i32_125 : i32 to vector<16x1xi32>
    %498 = arith.cmpi sge, %496, %497 : vector<16x1xi32>
    %499 = vector.shape_cast %498 : vector<16x1xi1> to vector<16x1xi1>
    %500 = vector.broadcast %499 : vector<16x1xi1> to vector<16x128xi1>
    %501 = vector.shape_cast %485 : vector<1x128xf32> to vector<1x128xf32>
    %502 = vector.broadcast %501 : vector<1x128xf32> to vector<16x128xf32>
    %503 = vector.shape_cast %473 : vector<1x128xf32> to vector<1x128xf32>
    %504 = vector.broadcast %503 : vector<1x128xf32> to vector<16x128xf32>
    %505 = arith.select %500, %502, %504 : vector<16x128xi1>, vector<16x128xf32>
    %506 = arith.subf %461, %495 : vector<16x128xf32>
    %cst_126 = arith.constant 9.99999974E-6 : f32
    %507 = vector.broadcast %cst_126 : f32 to vector<16x128xf32>
    %508 = arith.addf %505, %507 : vector<16x128xf32>
    %509 = math.rsqrt %508 : vector<16x128xf32>
    %510 = arith.mulf %506, %509 : vector<16x128xf32>
    %511 = vector.broadcast %8 : vector<1x128xf32> to vector<16x128xf32>
    %512 = arith.mulf %510, %511 : vector<16x128xf32>
    %513 = vector.broadcast %9 : vector<1x128xf32> to vector<16x128xf32>
    %514 = arith.addf %512, %513 : vector<16x128xf32>
    %c0_127 = arith.constant 0 : index
    %c0_128 = arith.constant 0 : index
    %515 = vector.load %arg9[%c0_127, %c0_128] : memref<16x128xf32, #tpu.memory_space<vmem>>, vector<16x128xf32>
    tpu.vector_store %arg9[%c0_127, %c0_128], %514 {strides = array<i32>} : memref<16x128xf32, #tpu.memory_space<vmem>>, vector<16x128xf32>,
    return
  }
}

</mosaic_0001>

<llo_original>
// kernel: tpu_custom_call.1
$region0: #{tpu_custom_call.1}
  #allocation0 [shape = 'u32[]', space=smem, size = 0x4, offset = 0x4, fixed_abs, tag = 'smem constant byte address 0x4 - core index']
  #allocation1 [shape = 'u32[144,128]{1,0:T(1,128)}', space=vmem, size = 0x12000, scoped, tag = 'internal scratch']
  %s0 = inlined_call_operand.hbm [shape: f32[16,128], index: 0, kind: input, shape index: {}]
  %s1 = inlined_call_operand.hbm [shape: f32[16,128], index: 1, kind: input, shape index: {}]
  %s2 = inlined_call_operand.hbm [shape: bf16[128,128], index: 2, kind: input, shape index: {}]
  %s3 = inlined_call_operand.hbm [shape: bf16[128,384], index: 3, kind: input, shape index: {}]
  %s4 = inlined_call_operand.hbm [shape: bf16[128,128], index: 4, kind: input, shape index: {}]
  %s5 = inlined_call_operand.hbm [shape: bf16[128,2048], index: 5, kind: input, shape index: {}]
  %s6 = inlined_call_operand.hbm [shape: bf16[2048,128], index: 6, kind: input, shape index: {}]
  %s7 = inlined_call_operand.vmem [shape: f32[16,128], index: 7, kind: input, shape index: {}]
  %s8 = inlined_call_operand.hbm [shape: f32[1,2048], index: 8, kind: input, shape index: {}]
  %s9 = inlined_call_operand.hbm [shape: f32[16,128], index: 9, kind: output, shape index: {}]
  %s10 = sld [smem:[#allocation0]]
  $region78: #{tpu_custom_call.1} parent=0
    _
  %s12 = ssub.s32 1, %s10
  %s13 = scalar_select 0, %s12, %s10
  $region1: #{tpu_custom_call.1} parent=0
    #allocation2 [shape = 'u8[8192]{0}', space=vmem, size = 0x2000, scoped, tag = 'input window, operand 0, single buffered']
    #allocation3 [shape = 's32[1]{0}', space=sflag, size = 0x4, scoped, tag = 'scoped memory for tpu_custom_call.1']
    #allocation4 [shape = 's32[1]{0}', space=sflag, size = 0x4, scoped, tag = 'scoped memory for tpu_custom_call.1']
    #allocation5 [shape = 'u8[8192]{0}', space=vmem, size = 0x2000, scoped, tag = 'input window, operand 1, single buffered']
    #allocation6 [shape = 's32[1]{0}', space=sflag, size = 0x4, scoped, tag = 'scoped memory for tpu_custom_call.1']
    #allocation7 [shape = 'u8[32768]{0}', space=vmem, size = 0x8000, scoped, tag = 'input window, operand 2, single buffered']
    #allocation8 [shape = 'u8[98304]{0}', space=vmem, size = 0x18000, scoped, tag = 'input window, operand 3, single buffered']
    #allocation9 [shape = 's32[1]{0}', space=sflag, size = 0x4, scoped, tag = 'scoped memory for tpu_custom_call.1']
    #allocation10 [shape = 'u8[32768]{0}', space=vmem, size = 0x8000, scoped, tag = 'input window, operand 4, single buffered']
    #allocation11 [shape = 'u8[524288]{0}', space=vmem, size = 0x80000, scoped, tag = 'input window, operand 5, single buffered']
    #allocation12 [shape = 's32[1]{0}', space=sflag, size = 0x4, scoped, tag = 'scoped memory for tpu_custom_call.1']
    #allocation13 [shape = 'u8[524288]{0}', space=vmem, size = 0x80000, scoped, tag = 'input window, operand 6, single buffered']
    #allocation14 [shape = 'u8[8192]{0}', space=vmem, size = 0x2000, scoped, tag = 'input window, operand 8, single buffered']
    #allocation15 [shape = 's32[1]{0}', space=sflag, size = 0x4, scoped, tag = 'scoped memory for tpu_custom_call.1']
    #allocation16 [shape = 'u8[8192]{0}', space=vmem, size = 0x2000, scoped, tag = 'output window, operand 0, single buffered']
    %14 = vsyncpa [#allocation3], 0
    %15 = vsyncpa [#allocation6], 0
    %16 = vsyncpa [#allocation9], 0
    %17 = vsyncpa [#allocation12], 0
    %18 = vsyncpa [#allocation15], 0
    %19 = vsyncpa [#allocation4], 0
    // Predicated region
    $region2: #{tpu_custom_call.1} parent=1 // pred_check
      _
    $region3: #{tpu_custom_call.1} parent=1 // pred_check_branch
      %21 = sbr.rel (0) target = $region5
    $region4: #{tpu_custom_call.1} parent=1 // pred_region
      %s23 = ssub.s32 256, 256
      %24 = vsyncadd [#allocation3], %s23
      %s25 = sshll.u32 [#allocation2], 4
      %s26 = int_to_ptr.vmem [resolvable:$true] %s25
      %31 = dma.hbm_to_vmem [thread:$0]  %s0, 256, %s26, [#allocation3], 128, 128, 8
    $region5: #{tpu_custom_call.1} parent=1 // pred_fallthru
      _
    // Predicated region
    $region6: #{tpu_custom_call.1} parent=1 // pred_check
      _
    $region7: #{tpu_custom_call.1} parent=1 // pred_check_branch
      %33 = sbr.rel (0) target = $region9
    $region8: #{tpu_custom_call.1} parent=1 // pred_region
      %s35 = ssub.s32 256, 256
      %36 = vsyncadd [#allocation6], %s35
      %s37 = sshll.u32 [#allocation5], 4
      %s38 = int_to_ptr.vmem [resolvable:$true] %s37
      %43 = dma.hbm_to_vmem [thread:$0]  %s1, 256, %s38, [#allocation6], 128, 128, 8
    $region9: #{tpu_custom_call.1} parent=1 // pred_fallthru
      _
    // Predicated region
    $region10: #{tpu_custom_call.1} parent=1 // pred_check
      _
    $region11: #{tpu_custom_call.1} parent=1 // pred_check_branch
      %45 = sbr.rel (0) target = $region13
    $region12: #{tpu_custom_call.1} parent=1 // pred_region
      %s47 = ssub.s32 1024, 1024
      %48 = vsyncadd [#allocation6], %s47
      %s49 = sshll.u32 [#allocation7], 4
      %s50 = int_to_ptr.vmem [resolvable:$true] %s49
      %55 = dma.hbm_to_vmem [thread:$0]  %s2, 1024, %s50, [#allocation6], 64, 64, 4
    $region13: #{tpu_custom_call.1} parent=1 // pred_fallthru
      _
    // Predicated region
    $region14: #{tpu_custom_call.1} parent=1 // pred_check
      _
    $region15: #{tpu_custom_call.1} parent=1 // pred_check_branch
      %57 = sbr.rel (0) target = $region17
    $region16: #{tpu_custom_call.1} parent=1 // pred_region
      %s59 = ssub.s32 3072, 3072
      %60 = vsyncadd [#allocation9], %s59
      %s61 = sshll.u32 [#allocation8], 4
      %s62 = int_to_ptr.vmem [resolvable:$true] %s61
      %67 = dma.hbm_to_vmem [thread:$0]  %s3, 3072, %s62, [#allocation9], 192, 192, 12
    $region17: #{tpu_custom_call.1} parent=1 // pred_fallthru
      _
    // Predicated region
    $region18: #{tpu_custom_call.1} parent=1 // pred_check
      _
    $region19: #{tpu_custom_call.1} parent=1 // pred_check_branch
      %69 = sbr.rel (0) target = $region21
    $region20: #{tpu_custom_call.1} parent=1 // pred_region
      %s71 = ssub.s32 1024, 1024
      %72 = vsyncadd [#allocation9], %s71
      %s73 = sshll.u32 [#allocation10], 4
      %s74 = int_to_ptr.vmem [resolvable:$true] %s73
      %79 = dma.hbm_to_vmem [thread:$0]  %s4, 1024, %s74, [#allocation9], 64, 64, 4
    $region21: #{tpu_custom_call.1} parent=1 // pred_fallthru
      _
    // Predicated region
    $region22: #{tpu_custom_call.1} parent=1 // pred_check
      _
    $region23: #{tpu_custom_call.1} parent=1 // pred_check_branch
      %81 = sbr.rel (0) target = $region25
    $region24: #{tpu_custom_call.1} parent=1 // pred_region
      %s83 = ssub.s32 16384, 16384
      %84 = vsyncadd [#allocation12], %s83
      %s85 = sshll.u32 [#allocation11], 4
      %s86 = int_to_ptr.vmem [resolvable:$true] %s85
      %91 = dma.hbm_to_vmem [thread:$0]  %s5, 16384, %s86, [#allocation12], 1024, 1024, 64
    $region25: #{tpu_custom_call.1} parent=1 // pred_fallthru
      _
    // Predicated region
    $region26: #{tpu_custom_call.1} parent=1 // pred_check
      _
    $region27: #{tpu_custom_call.1} parent=1 // pred_check_branch
      %93 = sbr.rel (0) target = $region29
    $region28: #{tpu_custom_call.1} parent=1 // pred_region
      %s95 = ssub.s32 16384, 16384
      %96 = vsyncadd [#allocation12], %s95
      %s97 = sshll.u32 [#allocation13], 4
      %s98 = int_to_ptr.vmem [resolvable:$true] %s97
      %103 = dma.hbm_to_vmem [thread:$0]  %s6, 16384, %s98, [#allocation12], 64, 64, 4
    $region29: #{tpu_custom_call.1} parent=1 // pred_fallthru
      _
    // Predicated region
    $region30: #{tpu_custom_call.1} parent=1 // pred_check
      _
    $region31: #{tpu_custom_call.1} parent=1 // pred_check_branch
      %105 = sbr.rel (0) target = $region33
    $region32: #{tpu_custom_call.1} parent=1 // pred_region
      _
    $region33: #{tpu_custom_call.1} parent=1 // pred_fallthru
      _
    // Predicated region
    $region34: #{tpu_custom_call.1} parent=1 // pred_check
      _
    $region35: #{tpu_custom_call.1} parent=1 // pred_check_branch
      %107 = sbr.rel (0) target = $region37
    $region36: #{tpu_custom_call.1} parent=1 // pred_region
      %s109 = ssub.s32 256, 256
      %110 = vsyncadd [#allocation15], %s109
      %s112 = sshll.u32 [#allocation14], 4
      %s113 = int_to_ptr.vmem [resolvable:$true] %s112
      %115 = dma.hbm_to_vmem [thread:$0]  %s8, 256, %s113, [#allocation15]
    $region37: #{tpu_custom_call.1} parent=1 // pred_fallthru
      _
    // Predicated region
    $region38: #{tpu_custom_call.1} parent=1 // pred_check
      _
    $region39: #{tpu_custom_call.1} parent=1 // pred_check_branch
      %117 = sbr.rel (0) target = $region41
    $region40: #{tpu_custom_call.1} parent=1 // pred_region
      %118 = dma.done [#allocation3], 256
    $region41: #{tpu_custom_call.1} parent=1 // pred_fallthru
      _
    // Predicated region
    $region42: #{tpu_custom_call.1} parent=1 // pred_check
      _
    $region43: #{tpu_custom_call.1} parent=1 // pred_check_branch
      %120 = sbr.rel (0) target = $region45
    $region44: #{tpu_custom_call.1} parent=1 // pred_region
      %121 = dma.done [#allocation6], 256
    $region45: #{tpu_custom_call.1} parent=1 // pred_fallthru
      _
    // Predicated region
    $region46: #{tpu_custom_call.1} parent=1 // pred_check
      _
    $region47: #{tpu_custom_call.1} parent=1 // pred_check_branch
      %123 = sbr.rel (0) target = $region49
    $region48: #{tpu_custom_call.1} parent=1 // pred_region
      %124 = dma.done [#allocation6], 1024
    $region49: #{tpu_custom_call.1} parent=1 // pred_fallthru
      _
    // Predicated region
    $region50: #{tpu_custom_call.1} parent=1 // pred_check
      _
    $region51: #{tpu_custom_call.1} parent=1 // pred_check_branch
      %126 = sbr.rel (0) target = $region53
    $region52: #{tpu_custom_call.1} parent=1 // pred_region
      %127 = dma.done [#allocation9], 3072
    $region53: #{tpu_custom_call.1} parent=1 // pred_fallthru
      _
    // Predicated region
    $region54: #{tpu_custom_call.1} parent=1 // pred_check
      _
    $region55: #{tpu_custom_call.1} parent=1 // pred_check_branch
      %129 = sbr.rel (0) target = $region57
    $region56: #{tpu_custom_call.1} parent=1 // pred_region
      %130 = dma.done [#allocation9], 1024
    $region57: #{tpu_custom_call.1} parent=1 // pred_fallthru
      _
    // Predicated region
    $region58: #{tpu_custom_call.1} parent=1 // pred_check
      _
    $region59: #{tpu_custom_call.1} parent=1 // pred_check_branch
      %132 = sbr.rel (0) target = $region61
    $region60: #{tpu_custom_call.1} parent=1 // pred_region
      %133 = dma.done [#allocation12], 16384
    $region61: #{tpu_custom_call.1} parent=1 // pred_fallthru
      _
    // Predicated region
    $region62: #{tpu_custom_call.1} parent=1 // pred_check
      _
    $region63: #{tpu_custom_call.1} parent=1 // pred_check_branch
      %135 = sbr.rel (0) target = $region65
    $region64: #{tpu_custom_call.1} parent=1 // pred_region
      %136 = dma.done [#allocation12], 16384
    $region65: #{tpu_custom_call.1} parent=1 // pred_fallthru
      _
    // Predicated region
    $region66: #{tpu_custom_call.1} parent=1 // pred_check
      _
    $region67: #{tpu_custom_call.1} parent=1 // pred_check_branch
      %138 = sbr.rel (0) target = $region69
    $region68: #{tpu_custom_call.1} parent=1 // pred_region
      %139 = dma.done [#allocation15], 256
    $region69: #{tpu_custom_call.1} parent=1 // pred_fallthru
      _
    %v141 = vld [vmem:[%s7] sm:$0xff]
    %v142 = vld [vmem:[%s7 + $0x8] sm:$0xff]
    %v143 = vld [vmem:[#allocation7] sm:$0xf]
    %v144 = vld [vmem:[#allocation7 + $0x4] sm:$0xf]
    %v145 = vld [vmem:[#allocation7 + $0x8] sm:$0xf]
    %v146 = vld [vmem:[#allocation7 + $0xc] sm:$0xf]
    %v147 = vld [vmem:[#allocation7 + $0x10] sm:$0xf]
    %v148 = vld [vmem:[#allocation7 + $0x14] sm:$0xf]
    %v149 = vld [vmem:[#allocation7 + $0x18] sm:$0xf]
    %v150 = vld [vmem:[#allocation7 + $0x1c] sm:$0xf]
    %v151 = vld [vmem:[#allocation7 + $0x20] sm:$0xf]
    %v152 = vld [vmem:[#allocation7 + $0x24] sm:$0xf]
    %v153 = vld [vmem:[#allocation7 + $0x28] sm:$0xf]
    %v154 = vld [vmem:[#allocation7 + $0x2c] sm:$0xf]
    %v155 = vld [vmem:[#allocation7 + $0x30] sm:$0xf]
    %v156 = vld [vmem:[#allocation7 + $0x34] sm:$0xf]
    %v157 = vld [vmem:[#allocation7 + $0x38] sm:$0xf]
    %v158 = vld [vmem:[#allocation7 + $0x3c] sm:$0xf]
    %v159 = vld [vmem:[#allocation8] sm:$0xff]
    %v160 = vld [vmem:[#allocation8 + $0x8] sm:$0xf]
    %v161 = vld [vmem:[#allocation8 + $0xc] sm:$0xff]
    %v162 = vld [vmem:[#allocation8 + $0x14] sm:$0xf]
    %v163 = vld [vmem:[#allocation8 + $0x18] sm:$0xff]
    %v164 = vld [vmem:[#allocation8 + $0x20] sm:$0xf]
    %v165 = vld [vmem:[#allocation8 + $0x24] sm:$0xff]
    %v166 = vld [vmem:[#allocation8 + $0x2c] sm:$0xf]
    %v167 = vld [vmem:[#allocation8 + $0x30] sm:$0xff]
    %v168 = vld [vmem:[#allocation8 + $0x38] sm:$0xf]
    %v169 = vld [vmem:[#allocation8 + $0x3c] sm:$0xff]
    %v170 = vld [vmem:[#allocation8 + $0x44] sm:$0xf]
    %v171 = vld [vmem:[#allocation8 + $0x48] sm:$0xff]
    %v172 = vld [vmem:[#allocation8 + $0x50] sm:$0xf]
    %v173 = vld [vmem:[#allocation8 + $0x54] sm:$0xff]
    %v174 = vld [vmem:[#allocation8 + $0x5c] sm:$0xf]
    %v175 = vld [vmem:[#allocation8 + $0x60] sm:$0xff]
    %v176 = vld [vmem:[#allocation8 + $0x68] sm:$0xf]
    %v177 = vld [vmem:[#allocation8 + $0x6c] sm:$0xff]
    %v178 = vld [vmem:[#allocation8 + $0x74] sm:$0xf]
    %v179 = vld [vmem:[#allocation8 + $0x78] sm:$0xff]
    %v180 = vld [vmem:[#allocation8 + $0x80] sm:$0xf]
    %v181 = vld [vmem:[#allocation8 + $0x84] sm:$0xff]
    %v182 = vld [vmem:[#allocation8 + $0x8c] sm:$0xf]
    %v183 = vld [vmem:[#allocation8 + $0x90] sm:$0xff]
    %v184 = vld [vmem:[#allocation8 + $0x98] sm:$0xf]
    %v185 = vld [vmem:[#allocation8 + $0x9c] sm:$0xff]
    %v186 = vld [vmem:[#allocation8 + $0xa4] sm:$0xf]
    %v187 = vld [vmem:[#allocation8 + $0xa8] sm:$0xff]
    %v188 = vld [vmem:[#allocation8 + $0xb0] sm:$0xf]
    %v189 = vld [vmem:[#allocation8 + $0xb4] sm:$0xff]
    %v190 = vld [vmem:[#allocation8 + $0xbc] sm:$0xf]
    %v191 = vld [vmem:[#allocation10] sm:$0xf]
    %v192 = vld [vmem:[#allocation10 + $0x4] sm:$0xf]
    %v193 = vld [vmem:[#allocation10 + $0x8] sm:$0xf]
    %v194 = vld [vmem:[#allocation10 + $0xc] sm:$0xf]
    %v195 = vld [vmem:[#allocation10 + $0x10] sm:$0xf]
    %v196 = vld [vmem:[#allocation10 + $0x14] sm:$0xf]
    %v197 = vld [vmem:[#allocation10 + $0x18] sm:$0xf]
    %v198 = vld [vmem:[#allocation10 + $0x1c] sm:$0xf]
    %v199 = vld [vmem:[#allocation10 + $0x20] sm:$0xf]
    %v200 = vld [vmem:[#allocation10 + $0x24] sm:$0xf]
    %v201 = vld [vmem:[#allocation10 + $0x28] sm:$0xf]
    %v202 = vld [vmem:[#allocation10 + $0x2c] sm:$0xf]
    %v203 = vld [vmem:[#allocation10 + $0x30] sm:$0xf]
    %v204 = vld [vmem:[#allocation10 + $0x34] sm:$0xf]
    %v205 = vld [vmem:[#allocation10 + $0x38] sm:$0xf]
    %v206 = vld [vmem:[#allocation10 + $0x3c] sm:$0xf]
    %v207 = vld [vmem:[#allocation11] sm:$0xff]
    %v208 = vld [vmem:[#allocation11 + $0x8] sm:$0xff]
    %v209 = vld [vmem:[#allocation11 + $0x10] sm:$0xff]
    %v210 = vld [vmem:[#allocation11 + $0x18] sm:$0xff]
    %v211 = vld [vmem:[#allocation11 + $0x20] sm:$0xff]
    %v212 = vld [vmem:[#allocation11 + $0x28] sm:$0xff]
    %v213 = vld [vmem:[#allocation11 + $0x30] sm:$0xff]
    %v214 = vld [vmem:[#allocation11 + $0x38] sm:$0xff]
    %v215 = vld [vmem:[#allocation11 + $0x40] sm:$0xff]
    %v216 = vld [vmem:[#allocation11 + $0x48] sm:$0xff]
    %v217 = vld [vmem:[#allocation11 + $0x50] sm:$0xff]
    %v218 = vld [vmem:[#allocation11 + $0x58] sm:$0xff]
    %v219 = vld [vmem:[#allocation11 + $0x60] sm:$0xff]
    %v220 = vld [vmem:[#allocation11 + $0x68] sm:$0xff]
    %v221 = vld [vmem:[#allocation11 + $0x70] sm:$0xff]
    %v222 = vld [vmem:[#allocation11 + $0x78] sm:$0xff]
    %v223 = vld [vmem:[#allocation11 + $0x80] sm:$0xff]
    %v224 = vld [vmem:[#allocation11 + $0x88] sm:$0xff]
    %v225 = vld [vmem:[#allocation11 + $0x90] sm:$0xff]
    %v226 = vld [vmem:[#allocation11 + $0x98] sm:$0xff]
    %v227 = vld [vmem:[#allocation11 + $0xa0] sm:$0xff]
    %v228 = vld [vmem:[#allocation11 + $0xa8] sm:$0xff]
    %v229 = vld [vmem:[#allocation11 + $0xb0] sm:$0xff]
    %v230 = vld [vmem:[#allocation11 + $0xb8] sm:$0xff]
    %v231 = vld [vmem:[#allocation11 + $0xc0] sm:$0xff]
    %v232 = vld [vmem:[#allocation11 + $0xc8] sm:$0xff]
    %v233 = vld [vmem:[#allocation11 + $0xd0] sm:$0xff]
    %v234 = vld [vmem:[#allocation11 + $0xd8] sm:$0xff]
    %v235 = vld [vmem:[#allocation11 + $0xe0] sm:$0xff]
    %v236 = vld [vmem:[#allocation11 + $0xe8] sm:$0xff]
    %v237 = vld [vmem:[#allocation11 + $0xf0] sm:$0xff]
    %v238 = vld [vmem:[#allocation11 + $0xf8] sm:$0xff]
    %v239 = vld [vmem:[#allocation11 + $0x100] sm:$0xff]
    %v240 = vld [vmem:[#allocation11 + $0x108] sm:$0xff]
    %v241 = vld [vmem:[#allocation11 + $0x110] sm:$0xff]
    %v242 = vld [vmem:[#allocation11 + $0x118] sm:$0xff]
    %v243 = vld [vmem:[#allocation11 + $0x120] sm:$0xff]
    %v244 = vld [vmem:[#allocation11 + $0x128] sm:$0xff]
    %v245 = vld [vmem:[#allocation11 + $0x130] sm:$0xff]
    %v246 = vld [vmem:[#allocation11 + $0x138] sm:$0xff]
    %v247 = vld [vmem:[#allocation11 + $0x140] sm:$0xff]
    %v248 = vld [vmem:[#allocation11 + $0x148] sm:$0xff]
    %v249 = vld [vmem:[#allocation11 + $0x150] sm:$0xff]
    %v250 = vld [vmem:[#allocation11 + $0x158] sm:$0xff]
    %v251 = vld [vmem:[#allocation11 + $0x160] sm:$0xff]
    %v252 = vld [vmem:[#allocation11 + $0x168] sm:$0xff]
    %v253 = vld [vmem:[#allocation11 + $0x170] sm:$0xff]
    %v254 = vld [vmem:[#allocation11 + $0x178] sm:$0xff]
    %v255 = vld [vmem:[#allocation11 + $0x180] sm:$0xff]
    %v256 = vld [vmem:[#allocation11 + $0x188] sm:$0xff]
    %v257 = vld [vmem:[#allocation11 + $0x190] sm:$0xff]
    %v258 = vld [vmem:[#allocation11 + $0x198] sm:$0xff]
    %v259 = vld [vmem:[#allocation11 + $0x1a0] sm:$0xff]
    %v260 = vld [vmem:[#allocation11 + $0x1a8] sm:$0xff]
    %v261 = vld [vmem:[#allocation11 + $0x1b0] sm:$0xff]
    %v262 = vld [vmem:[#allocation11 + $0x1b8] sm:$0xff]
    %v263 = vld [vmem:[#allocation11 + $0x1c0] sm:$0xff]
    %v264 = vld [vmem:[#allocation11 + $0x1c8] sm:$0xff]
    %v265 = vld [vmem:[#allocation11 + $0x1d0] sm:$0xff]
    %v266 = vld [vmem:[#allocation11 + $0x1d8] sm:$0xff]
    %v267 = vld [vmem:[#allocation11 + $0x1e0] sm:$0xff]
    %v268 = vld [vmem:[#allocation11 + $0x1e8] sm:$0xff]
    %v269 = vld [vmem:[#allocation11 + $0x1f0] sm:$0xff]
    %v270 = vld [vmem:[#allocation11 + $0x1f8] sm:$0xff]
    %v271 = vld [vmem:[#allocation11 + $0x200] sm:$0xff]
    %v272 = vld [vmem:[#allocation11 + $0x208] sm:$0xff]
    %v273 = vld [vmem:[#allocation11 + $0x210] sm:$0xff]
    %v274 = vld [vmem:[#allocation11 + $0x218] sm:$0xff]
    %v275 = vld [vmem:[#allocation11 + $0x220] sm:$0xff]
    %v276 = vld [vmem:[#allocation11 + $0x228] sm:$0xff]
    %v277 = vld [vmem:[#allocation11 + $0x230] sm:$0xff]
    %v278 = vld [vmem:[#allocation11 + $0x238] sm:$0xff]
    %v279 = vld [vmem:[#allocation11 + $0x240] sm:$0xff]
    %v280 = vld [vmem:[#allocation11 + $0x248] sm:$0xff]
    %v281 = vld [vmem:[#allocation11 + $0x250] sm:$0xff]
    %v282 = vld [vmem:[#allocation11 + $0x258] sm:$0xff]
    %v283 = vld [vmem:[#allocation11 + $0x260] sm:$0xff]
    %v284 = vld [vmem:[#allocation11 + $0x268] sm:$0xff]
    %v285 = vld [vmem:[#allocation11 + $0x270] sm:$0xff]
    %v286 = vld [vmem:[#allocation11 + $0x278] sm:$0xff]
    %v287 = vld [vmem:[#allocation11 + $0x280] sm:$0xff]
    %v288 = vld [vmem:[#allocation11 + $0x288] sm:$0xff]
    %v289 = vld [vmem:[#allocation11 + $0x290] sm:$0xff]
    %v290 = vld [vmem:[#allocation11 + $0x298] sm:$0xff]
    %v291 = vld [vmem:[#allocation11 + $0x2a0] sm:$0xff]
    %v292 = vld [vmem:[#allocation11 + $0x2a8] sm:$0xff]
    %v293 = vld [vmem:[#allocation11 + $0x2b0] sm:$0xff]
    %v294 = vld [vmem:[#allocation11 + $0x2b8] sm:$0xff]
    %v295 = vld [vmem:[#allocation11 + $0x2c0] sm:$0xff]
    %v296 = vld [vmem:[#allocation11 + $0x2c8] sm:$0xff]
    %v297 = vld [vmem:[#allocation11 + $0x2d0] sm:$0xff]
    %v298 = vld [vmem:[#allocation11 + $0x2d8] sm:$0xff]
    %v299 = vld [vmem:[#allocation11 + $0x2e0] sm:$0xff]
    %v300 = vld [vmem:[#allocation11 + $0x2e8] sm:$0xff]
    %v301 = vld [vmem:[#allocation11 + $0x2f0] sm:$0xff]
    %v302 = vld [vmem:[#allocation11 + $0x2f8] sm:$0xff]
    %v303 = vld [vmem:[#allocation11 + $0x300] sm:$0xff]
    %v304 = vld [vmem:[#allocation11 + $0x308] sm:$0xff]
    %v305 = vld [vmem:[#allocation11 + $0x310] sm:$0xff]
    %v306 = vld [vmem:[#allocation11 + $0x318] sm:$0xff]
    %v307 = vld [vmem:[#allocation11 + $0x320] sm:$0xff]
    %v308 = vld [vmem:[#allocation11 + $0x328] sm:$0xff]
    %v309 = vld [vmem:[#allocation11 + $0x330] sm:$0xff]
    %v310 = vld [vmem:[#allocation11 + $0x338] sm:$0xff]
    %v311 = vld [vmem:[#allocation11 + $0x340] sm:$0xff]
    %v312 = vld [vmem:[#allocation11 + $0x348] sm:$0xff]
    %v313 = vld [vmem:[#allocation11 + $0x350] sm:$0xff]
    %v314 = vld [vmem:[#allocation11 + $0x358] sm:$0xff]
    %v315 = vld [vmem:[#allocation11 + $0x360] sm:$0xff]
    %v316 = vld [vmem:[#allocation11 + $0x368] sm:$0xff]
    %v317 = vld [vmem:[#allocation11 + $0x370] sm:$0xff]
    %v318 = vld [vmem:[#allocation11 + $0x378] sm:$0xff]
    %v319 = vld [vmem:[#allocation11 + $0x380] sm:$0xff]
    %v320 = vld [vmem:[#allocation11 + $0x388] sm:$0xff]
    %v321 = vld [vmem:[#allocation11 + $0x390] sm:$0xff]
    %v322 = vld [vmem:[#allocation11 + $0x398] sm:$0xff]
    %v323 = vld [vmem:[#allocation11 + $0x3a0] sm:$0xff]
    %v324 = vld [vmem:[#allocation11 + $0x3a8] sm:$0xff]
    %v325 = vld [vmem:[#allocation11 + $0x3b0] sm:$0xff]
    %v326 = vld [vmem:[#allocation11 + $0x3b8] sm:$0xff]
    %v327 = vld [vmem:[#allocation11 + $0x3c0] sm:$0xff]
    %v328 = vld [vmem:[#allocation11 + $0x3c8] sm:$0xff]
    %v329 = vld [vmem:[#allocation11 + $0x3d0] sm:$0xff]
    %v330 = vld [vmem:[#allocation11 + $0x3d8] sm:$0xff]
    %v331 = vld [vmem:[#allocation11 + $0x3e0] sm:$0xff]
    %v332 = vld [vmem:[#allocation11 + $0x3e8] sm:$0xff]
    %v333 = vld [vmem:[#allocation11 + $0x3f0] sm:$0xff]
    %v334 = vld [vmem:[#allocation11 + $0x3f8] sm:$0xff]
    %v335 = vld [vmem:[#allocation13] sm:$0xf]
    %v336 = vld [vmem:[#allocation13 + $0x4] sm:$0xf]
    %v337 = vld [vmem:[#allocation13 + $0x8] sm:$0xf]
    %v338 = vld [vmem:[#allocation13 + $0xc] sm:$0xf]
    %v339 = vld [vmem:[#allocation13 + $0x10] sm:$0xf]
    %v340 = vld [vmem:[#allocation13 + $0x14] sm:$0xf]
    %v341 = vld [vmem:[#allocation13 + $0x18] sm:$0xf]
    %v342 = vld [vmem:[#allocation13 + $0x1c] sm:$0xf]
    %v343 = vld [vmem:[#allocation13 + $0x20] sm:$0xf]
    %v344 = vld [vmem:[#allocation13 + $0x24] sm:$0xf]
    %v345 = vld [vmem:[#allocation13 + $0x28] sm:$0xf]
    %v346 = vld [vmem:[#allocation13 + $0x2c] sm:$0xf]
    %v347 = vld [vmem:[#allocation13 + $0x30] sm:$0xf]
    %v348 = vld [vmem:[#allocation13 + $0x34] sm:$0xf]
    %v349 = vld [vmem:[#allocation13 + $0x38] sm:$0xf]
    %v350 = vld [vmem:[#allocation13 + $0x3c] sm:$0xf]
    %v351 = vld [vmem:[#allocation13 + $0x40] sm:$0xf]
    %v352 = vld [vmem:[#allocation13 + $0x44] sm:$0xf]
    %v353 = vld [vmem:[#allocation13 + $0x48] sm:$0xf]
    %v354 = vld [vmem:[#allocation13 + $0x4c] sm:$0xf]
    %v355 = vld [vmem:[#allocation13 + $0x50] sm:$0xf]
    %v356 = vld [vmem:[#allocation13 + $0x54] sm:$0xf]
    %v357 = vld [vmem:[#allocation13 + $0x58] sm:$0xf]
    %v358 = vld [vmem:[#allocation13 + $0x5c] sm:$0xf]
    %v359 = vld [vmem:[#allocation13 + $0x60] sm:$0xf]
    %v360 = vld [vmem:[#allocation13 + $0x64] sm:$0xf]
    %v361 = vld [vmem:[#allocation13 + $0x68] sm:$0xf]
    %v362 = vld [vmem:[#allocation13 + $0x6c] sm:$0xf]
    %v363 = vld [vmem:[#allocation13 + $0x70] sm:$0xf]
    %v364 = vld [vmem:[#allocation13 + $0x74] sm:$0xf]
    %v365 = vld [vmem:[#allocation13 + $0x78] sm:$0xf]
    %v366 = vld [vmem:[#allocation13 + $0x7c] sm:$0xf]
    %v367 = vld [vmem:[#allocation13 + $0x80] sm:$0xf]
    %v368 = vld [vmem:[#allocation13 + $0x84] sm:$0xf]
    %v369 = vld [vmem:[#allocation13 + $0x88] sm:$0xf]
    %v370 = vld [vmem:[#allocation13 + $0x8c] sm:$0xf]
    %v371 = vld [vmem:[#allocation13 + $0x90] sm:$0xf]
    %v372 = vld [vmem:[#allocation13 + $0x94] sm:$0xf]
    %v373 = vld [vmem:[#allocation13 + $0x98] sm:$0xf]
    %v374 = vld [vmem:[#allocation13 + $0x9c] sm:$0xf]
    %v375 = vld [vmem:[#allocation13 + $0xa0] sm:$0xf]
    %v376 = vld [vmem:[#allocation13 + $0xa4] sm:$0xf]
    %v377 = vld [vmem:[#allocation13 + $0xa8] sm:$0xf]
    %v378 = vld [vmem:[#allocation13 + $0xac] sm:$0xf]
    %v379 = vld [vmem:[#allocation13 + $0xb0] sm:$0xf]
    %v380 = vld [vmem:[#allocation13 + $0xb4] sm:$0xf]
    %v381 = vld [vmem:[#allocation13 + $0xb8] sm:$0xf]
    %v382 = vld [vmem:[#allocation13 + $0xbc] sm:$0xf]
    %v383 = vld [vmem:[#allocation13 + $0xc0] sm:$0xf]
    %v384 = vld [vmem:[#allocation13 + $0xc4] sm:$0xf]
    %v385 = vld [vmem:[#allocation13 + $0xc8] sm:$0xf]
    %v386 = vld [vmem:[#allocation13 + $0xcc] sm:$0xf]
    %v387 = vld [vmem:[#allocation13 + $0xd0] sm:$0xf]
    %v388 = vld [vmem:[#allocation13 + $0xd4] sm:$0xf]
    %v389 = vld [vmem:[#allocation13 + $0xd8] sm:$0xf]
    %v390 = vld [vmem:[#allocation13 + $0xdc] sm:$0xf]
    %v391 = vld [vmem:[#allocation13 + $0xe0] sm:$0xf]
    %v392 = vld [vmem:[#allocation13 + $0xe4] sm:$0xf]
    %v393 = vld [vmem:[#allocation13 + $0xe8] sm:$0xf]
    %v394 = vld [vmem:[#allocation13 + $0xec] sm:$0xf]
    %v395 = vld [vmem:[#allocation13 + $0xf0] sm:$0xf]
    %v396 = vld [vmem:[#allocation13 + $0xf4] sm:$0xf]
    %v397 = vld [vmem:[#allocation13 + $0xf8] sm:$0xf]
    %v398 = vld [vmem:[#allocation13 + $0xfc] sm:$0xf]
    %v399 = vld [vmem:[#allocation13 + $0x100] sm:$0xf]
    %v400 = vld [vmem:[#allocation13 + $0x104] sm:$0xf]
    %v401 = vld [vmem:[#allocation13 + $0x108] sm:$0xf]
    %v402 = vld [vmem:[#allocation13 + $0x10c] sm:$0xf]
    %v403 = vld [vmem:[#allocation13 + $0x110] sm:$0xf]
    %v404 = vld [vmem:[#allocation13 + $0x114] sm:$0xf]
    %v405 = vld [vmem:[#allocation13 + $0x118] sm:$0xf]
    %v406 = vld [vmem:[#allocation13 + $0x11c] sm:$0xf]
    %v407 = vld [vmem:[#allocation13 + $0x120] sm:$0xf]
    %v408 = vld [vmem:[#allocation13 + $0x124] sm:$0xf]
    %v409 = vld [vmem:[#allocation13 + $0x128] sm:$0xf]
    %v410 = vld [vmem:[#allocation13 + $0x12c] sm:$0xf]
    %v411 = vld [vmem:[#allocation13 + $0x130] sm:$0xf]
    %v412 = vld [vmem:[#allocation13 + $0x134] sm:$0xf]
    %v413 = vld [vmem:[#allocation13 + $0x138] sm:$0xf]
    %v414 = vld [vmem:[#allocation13 + $0x13c] sm:$0xf]
    %v415 = vld [vmem:[#allocation13 + $0x140] sm:$0xf]
    %v416 = vld [vmem:[#allocation13 + $0x144] sm:$0xf]
    %v417 = vld [vmem:[#allocation13 + $0x148] sm:$0xf]
    %v418 = vld [vmem:[#allocation13 + $0x14c] sm:$0xf]
    %v419 = vld [vmem:[#allocation13 + $0x150] sm:$0xf]
    %v420 = vld [vmem:[#allocation13 + $0x154] sm:$0xf]
    %v421 = vld [vmem:[#allocation13 + $0x158] sm:$0xf]
    %v422 = vld [vmem:[#allocation13 + $0x15c] sm:$0xf]
    %v423 = vld [vmem:[#allocation13 + $0x160] sm:$0xf]
    %v424 = vld [vmem:[#allocation13 + $0x164] sm:$0xf]
    %v425 = vld [vmem:[#allocation13 + $0x168] sm:$0xf]
    %v426 = vld [vmem:[#allocation13 + $0x16c] sm:$0xf]
    %v427 = vld [vmem:[#allocation13 + $0x170] sm:$0xf]
    %v428 = vld [vmem:[#allocation13 + $0x174] sm:$0xf]
    %v429 = vld [vmem:[#allocation13 + $0x178] sm:$0xf]
    %v430 = vld [vmem:[#allocation13 + $0x17c] sm:$0xf]
    %v431 = vld [vmem:[#allocation13 + $0x180] sm:$0xf]
    %v432 = vld [vmem:[#allocation13 + $0x184] sm:$0xf]
    %v433 = vld [vmem:[#allocation13 + $0x188] sm:$0xf]
    %v434 = vld [vmem:[#allocation13 + $0x18c] sm:$0xf]
    %v435 = vld [vmem:[#allocation13 + $0x190] sm:$0xf]
    %v436 = vld [vmem:[#allocation13 + $0x194] sm:$0xf]
    %v437 = vld [vmem:[#allocation13 + $0x198] sm:$0xf]
    %v438 = vld [vmem:[#allocation13 + $0x19c] sm:$0xf]
    %v439 = vld [vmem:[#allocation13 + $0x1a0] sm:$0xf]
    %v440 = vld [vmem:[#allocation13 + $0x1a4] sm:$0xf]
    %v441 = vld [vmem:[#allocation13 + $0x1a8] sm:$0xf]
    %v442 = vld [vmem:[#allocation13 + $0x1ac] sm:$0xf]
    %v443 = vld [vmem:[#allocation13 + $0x1b0] sm:$0xf]
    %v444 = vld [vmem:[#allocation13 + $0x1b4] sm:$0xf]
    %v445 = vld [vmem:[#allocation13 + $0x1b8] sm:$0xf]
    %v446 = vld [vmem:[#allocation13 + $0x1bc] sm:$0xf]
    %v447 = vld [vmem:[#allocation13 + $0x1c0] sm:$0xf]
    %v448 = vld [vmem:[#allocation13 + $0x1c4] sm:$0xf]
    %v449 = vld [vmem:[#allocation13 + $0x1c8] sm:$0xf]
    %v450 = vld [vmem:[#allocation13 + $0x1cc] sm:$0xf]
    %v451 = vld [vmem:[#allocation13 + $0x1d0] sm:$0xf]
    %v452 = vld [vmem:[#allocation13 + $0x1d4] sm:$0xf]
    %v453 = vld [vmem:[#allocation13 + $0x1d8] sm:$0xf]
    %v454 = vld [vmem:[#allocation13 + $0x1dc] sm:$0xf]
    %v455 = vld [vmem:[#allocation13 + $0x1e0] sm:$0xf]
    %v456 = vld [vmem:[#allocation13 + $0x1e4] sm:$0xf]
    %v457 = vld [vmem:[#allocation13 + $0x1e8] sm:$0xf]
    %v458 = vld [vmem:[#allocation13 + $0x1ec] sm:$0xf]
    %v459 = vld [vmem:[#allocation13 + $0x1f0] sm:$0xf]
    %v460 = vld [vmem:[#allocation13 + $0x1f4] sm:$0xf]
    %v461 = vld [vmem:[#allocation13 + $0x1f8] sm:$0xf]
    %v462 = vld [vmem:[#allocation13 + $0x1fc] sm:$0xf]
    %v463 = vld [vmem:[#allocation13 + $0x200] sm:$0xf]
    %v464 = vld [vmem:[#allocation13 + $0x204] sm:$0xf]
    %v465 = vld [vmem:[#allocation13 + $0x208] sm:$0xf]
    %v466 = vld [vmem:[#allocation13 + $0x20c] sm:$0xf]
    %v467 = vld [vmem:[#allocation13 + $0x210] sm:$0xf]
    %v468 = vld [vmem:[#allocation13 + $0x214] sm:$0xf]
    %v469 = vld [vmem:[#allocation13 + $0x218] sm:$0xf]
    %v470 = vld [vmem:[#allocation13 + $0x21c] sm:$0xf]
    %v471 = vld [vmem:[#allocation13 + $0x220] sm:$0xf]
    %v472 = vld [vmem:[#allocation13 + $0x224] sm:$0xf]
    %v473 = vld [vmem:[#allocation13 + $0x228] sm:$0xf]
    %v474 = vld [vmem:[#allocation13 + $0x22c] sm:$0xf]
    %v475 = vld [vmem:[#allocation13 + $0x230] sm:$0xf]
    %v476 = vld [vmem:[#allocation13 + $0x234] sm:$0xf]
    %v477 = vld [vmem:[#allocation13 + $0x238] sm:$0xf]
    %v478 = vld [vmem:[#allocation13 + $0x23c] sm:$0xf]
    %v479 = vld [vmem:[#allocation13 + $0x240] sm:$0xf]
    %v480 = vld [vmem:[#allocation13 + $0x244] sm:$0xf]
    %v481 = vld [vmem:[#allocation13 + $0x248] sm:$0xf]
    %v482 = vld [vmem:[#allocation13 + $0x24c] sm:$0xf]
    %v483 = vld [vmem:[#allocation13 + $0x250] sm:$0xf]
    %v484 = vld [vmem:[#allocation13 + $0x254] sm:$0xf]
    %v485 = vld [vmem:[#allocation13 + $0x258] sm:$0xf]
    %v486 = vld [vmem:[#allocation13 + $0x25c] sm:$0xf]
    %v487 = vld [vmem:[#allocation13 + $0x260] sm:$0xf]
    %v488 = vld [vmem:[#allocation13 + $0x264] sm:$0xf]
    %v489 = vld [vmem:[#allocation13 + $0x268] sm:$0xf]
    %v490 = vld [vmem:[#allocation13 + $0x26c] sm:$0xf]
    %v491 = vld [vmem:[#allocation13 + $0x270] sm:$0xf]
    %v492 = vld [vmem:[#allocation13 + $0x274] sm:$0xf]
    %v493 = vld [vmem:[#allocation13 + $0x278] sm:$0xf]
    %v494 = vld [vmem:[#allocation13 + $0x27c] sm:$0xf]
    %v495 = vld [vmem:[#allocation13 + $0x280] sm:$0xf]
    %v496 = vld [vmem:[#allocation13 + $0x284] sm:$0xf]
    %v497 = vld [vmem:[#allocation13 + $0x288] sm:$0xf]
    %v498 = vld [vmem:[#allocation13 + $0x28c] sm:$0xf]
    %v499 = vld [vmem:[#allocation13 + $0x290] sm:$0xf]
    %v500 = vld [vmem:[#allocation13 + $0x294] sm:$0xf]
    %v501 = vld [vmem:[#allocation13 + $0x298] sm:$0xf]
    %v502 = vld [vmem:[#allocation13 + $0x29c] sm:$0xf]
    %v503 = vld [vmem:[#allocation13 + $0x2a0] sm:$0xf]
    %v504 = vld [vmem:[#allocation13 + $0x2a4] sm:$0xf]
    %v505 = vld [vmem:[#allocation13 + $0x2a8] sm:$0xf]
    %v506 = vld [vmem:[#allocation13 + $0x2ac] sm:$0xf]
    %v507 = vld [vmem:[#allocation13 + $0x2b0] sm:$0xf]
    %v508 = vld [vmem:[#allocation13 + $0x2b4] sm:$0xf]
    %v509 = vld [vmem:[#allocation13 + $0x2b8] sm:$0xf]
    %v510 = vld [vmem:[#allocation13 + $0x2bc] sm:$0xf]
    %v511 = vld [vmem:[#allocation13 + $0x2c0] sm:$0xf]
    %v512 = vld [vmem:[#allocation13 + $0x2c4] sm:$0xf]
    %v513 = vld [vmem:[#allocation13 + $0x2c8] sm:$0xf]
    %v514 = vld [vmem:[#allocation13 + $0x2cc] sm:$0xf]
    %v515 = vld [vmem:[#allocation13 + $0x2d0] sm:$0xf]
    %v516 = vld [vmem:[#allocation13 + $0x2d4] sm:$0xf]
    %v517 = vld [vmem:[#allocation13 + $0x2d8] sm:$0xf]
    %v518 = vld [vmem:[#allocation13 + $0x2dc] sm:$0xf]
    %v519 = vld [vmem:[#allocation13 + $0x2e0] sm:$0xf]
    %v520 = vld [vmem:[#allocation13 + $0x2e4] sm:$0xf]
    %v521 = vld [vmem:[#allocation13 + $0x2e8] sm:$0xf]
    %v522 = vld [vmem:[#allocation13 + $0x2ec] sm:$0xf]
    %v523 = vld [vmem:[#allocation13 + $0x2f0] sm:$0xf]
    %v524 = vld [vmem:[#allocation13 + $0x2f4] sm:$0xf]
    %v525 = vld [vmem:[#allocation13 + $0x2f8] sm:$0xf]
    %v526 = vld [vmem:[#allocation13 + $0x2fc] sm:$0xf]
    %v527 = vld [vmem:[#allocation13 + $0x300] sm:$0xf]
    %v528 = vld [vmem:[#allocation13 + $0x304] sm:$0xf]
    %v529 = vld [vmem:[#allocation13 + $0x308] sm:$0xf]
    %v530 = vld [vmem:[#allocation13 + $0x30c] sm:$0xf]
    %v531 = vld [vmem:[#allocation13 + $0x310] sm:$0xf]
    %v532 = vld [vmem:[#allocation13 + $0x314] sm:$0xf]
    %v533 = vld [vmem:[#allocation13 + $0x318] sm:$0xf]
    %v534 = vld [vmem:[#allocation13 + $0x31c] sm:$0xf]
    %v535 = vld [vmem:[#allocation13 + $0x320] sm:$0xf]
    %v536 = vld [vmem:[#allocation13 + $0x324] sm:$0xf]
    %v537 = vld [vmem:[#allocation13 + $0x328] sm:$0xf]
    %v538 = vld [vmem:[#allocation13 + $0x32c] sm:$0xf]
    %v539 = vld [vmem:[#allocation13 + $0x330] sm:$0xf]
    %v540 = vld [vmem:[#allocation13 + $0x334] sm:$0xf]
    %v541 = vld [vmem:[#allocation13 + $0x338] sm:$0xf]
    %v542 = vld [vmem:[#allocation13 + $0x33c] sm:$0xf]
    %v543 = vld [vmem:[#allocation13 + $0x340] sm:$0xf]
    %v544 = vld [vmem:[#allocation13 + $0x344] sm:$0xf]
    %v545 = vld [vmem:[#allocation13 + $0x348] sm:$0xf]
    %v546 = vld [vmem:[#allocation13 + $0x34c] sm:$0xf]
    %v547 = vld [vmem:[#allocation13 + $0x350] sm:$0xf]
    %v548 = vld [vmem:[#allocation13 + $0x354] sm:$0xf]
    %v549 = vld [vmem:[#allocation13 + $0x358] sm:$0xf]
    %v550 = vld [vmem:[#allocation13 + $0x35c] sm:$0xf]
    %v551 = vld [vmem:[#allocation13 + $0x360] sm:$0xf]
    %v552 = vld [vmem:[#allocation13 + $0x364] sm:$0xf]
    %v553 = vld [vmem:[#allocation13 + $0x368] sm:$0xf]
    %v554 = vld [vmem:[#allocation13 + $0x36c] sm:$0xf]
    %v555 = vld [vmem:[#allocation13 + $0x370] sm:$0xf]
    %v556 = vld [vmem:[#allocation13 + $0x374] sm:$0xf]
    %v557 = vld [vmem:[#allocation13 + $0x378] sm:$0xf]
    %v558 = vld [vmem:[#allocation13 + $0x37c] sm:$0xf]
    %v559 = vld [vmem:[#allocation13 + $0x380] sm:$0xf]
    %v560 = vld [vmem:[#allocation13 + $0x384] sm:$0xf]
    %v561 = vld [vmem:[#allocation13 + $0x388] sm:$0xf]
    %v562 = vld [vmem:[#allocation13 + $0x38c] sm:$0xf]
    %v563 = vld [vmem:[#allocation13 + $0x390] sm:$0xf]
    %v564 = vld [vmem:[#allocation13 + $0x394] sm:$0xf]
    %v565 = vld [vmem:[#allocation13 + $0x398] sm:$0xf]
    %v566 = vld [vmem:[#allocation13 + $0x39c] sm:$0xf]
    %v567 = vld [vmem:[#allocation13 + $0x3a0] sm:$0xf]
    %v568 = vld [vmem:[#allocation13 + $0x3a4] sm:$0xf]
    %v569 = vld [vmem:[#allocation13 + $0x3a8] sm:$0xf]
    %v570 = vld [vmem:[#allocation13 + $0x3ac] sm:$0xf]
    %v571 = vld [vmem:[#allocation13 + $0x3b0] sm:$0xf]
    %v572 = vld [vmem:[#allocation13 + $0x3b4] sm:$0xf]
    %v573 = vld [vmem:[#allocation13 + $0x3b8] sm:$0xf]
    %v574 = vld [vmem:[#allocation13 + $0x3bc] sm:$0xf]
    %v575 = vld [vmem:[#allocation13 + $0x3c0] sm:$0xf]
    %v576 = vld [vmem:[#allocation13 + $0x3c4] sm:$0xf]
    %v577 = vld [vmem:[#allocation13 + $0x3c8] sm:$0xf]
    %v578 = vld [vmem:[#allocation13 + $0x3cc] sm:$0xf]
    %v579 = vld [vmem:[#allocation13 + $0x3d0] sm:$0xf]
    %v580 = vld [vmem:[#allocation13 + $0x3d4] sm:$0xf]
    %v581 = vld [vmem:[#allocation13 + $0x3d8] sm:$0xf]
    %v582 = vld [vmem:[#allocation13 + $0x3dc] sm:$0xf]
    %v583 = vld [vmem:[#allocation13 + $0x3e0] sm:$0xf]
    %v584 = vld [vmem:[#allocation13 + $0x3e4] sm:$0xf]
    %v585 = vld [vmem:[#allocation13 + $0x3e8] sm:$0xf]
    %v586 = vld [vmem:[#allocation13 + $0x3ec] sm:$0xf]
    %v587 = vld [vmem:[#allocation13 + $0x3f0] sm:$0xf]
    %v588 = vld [vmem:[#allocation13 + $0x3f4] sm:$0xf]
    %v589 = vld [vmem:[#allocation13 + $0x3f8] sm:$0xf]
    %v590 = vld [vmem:[#allocation13 + $0x3fc] sm:$0xf]
    %v591 = vld [vmem:[#allocation14] sm:$0xff]
    %v592 = vld [vmem:[#allocation14 + $0x8] sm:$0xff]
    %v593 = vld [vmem:[#allocation2] sm:$0xff]
    %v594 = vld [vmem:[#allocation2 + $0x8] sm:$0xff]
    %595 = vmin.xlane.f32.xlu0 %v593
    %v596 = vpop.xlane.xlu0 %595
    %v597 = vrot.slane %v596, 4
    %v598 = vmin.f32 %v596, %v597
    %v599 = vrot.slane %v598, 2
    %v600 = vmin.f32 %v598, %v599
    %v601 = vrot.slane %v600, 1
    %v602 = vmin.f32 %v600, %v601
    %s603 = vtos %v602
    %604 = vmax.xlane.f32.xlu0 %v593
    %v605 = vpop.xlane.xlu0 %604
    %v606 = vrot.slane %v605, 4
    %v607 = vmax.f32 %v605, %v606
    %v608 = vrot.slane %v607, 2
    %v609 = vmax.f32 %v607, %v608
    %v610 = vrot.slane %v609, 1
    %v611 = vmax.f32 %v609, %v610
    %s612 = vtos %v611
    %613 = vmin.xlane.f32.xlu0 %v594
    %v614 = vpop.xlane.xlu0 %613
    %v615 = vrot.slane %v614, 4
    %v616 = vmin.f32 %v614, %v615
    %v617 = vrot.slane %v616, 2
    %v618 = vmin.f32 %v616, %v617
    %v619 = vrot.slane %v618, 1
    %v620 = vmin.f32 %v618, %v619
    %s621 = vtos %v620
    %622 = vmax.xlane.f32.xlu0 %v594
    %v623 = vpop.xlane.xlu0 %622
    %v624 = vrot.slane %v623, 4
    %v625 = vmax.f32 %v623, %v624
    %v626 = vrot.slane %v625, 2
    %v627 = vmax.f32 %v625, %v626
    %v628 = vrot.slane %v627, 1
    %v629 = vmax.f32 %v627, %v628
    %s630 = vtos %v629
    %v631 = vlaneseq
    %v632 = vshrl.u32 %v631, 7
    %v633 = vadd.s32 %v632, 8
    %vm634 = vcmp.ge.s32.totalorder %v632, 8
    %vm635 = vcmp.ge.s32.totalorder %v633, 8
    %v636 = vstv %s621
    %v637 = vstv %s603
    %v638 = vsel %vm634, %v636, %v637
    %v639 = vsel %vm635, %v636, %v637
    %v640 = vstv %s630
    %v641 = vstv %s612
    %v642 = vsel %vm634, %v640, %v641
    %v643 = vsel %vm635, %v640, %v641
    %v644 = vsub.f32 %v593, %v638
    %v645 = vsub.f32 %v594, %v639
    %v646 = vsub.f32 %v642, %v638
    %v647 = vsub.f32 %v643, %v639
    %v648 = vrcp.pop %v646
    %v649 = vmul.f32 %v644, %v648
    %v650 = vrcp.pop %v647
    %v651 = vmul.f32 %v645, %v650
    %v652 = vpack.c.bf16 %v651, %v649
    %v653 = vlaneseq
    %v654 = vshrl.u32 %v653, 7
    %v655 = vsub.s32 0, %v654
    %v656 = vrot.slane %v141, %v655
    %v673 = vunpack.c.l.b16 %v143
    %v674 = vunpack.c.l.b16 %v144
    %v675 = vunpack.c.l.b16 %v145
    %v676 = vunpack.c.l.b16 %v146
    %v677 = vunpack.c.l.b16 %v147
    %v678 = vunpack.c.l.b16 %v148
    %v679 = vunpack.c.l.b16 %v149
    %v680 = vunpack.c.l.b16 %v150
    %v681 = vunpack.c.l.b16 %v151
    %v682 = vunpack.c.l.b16 %v152
    %v683 = vunpack.c.l.b16 %v153
    %v684 = vunpack.c.l.b16 %v154
    %v685 = vunpack.c.l.b16 %v155
    %v686 = vunpack.c.l.b16 %v156
    %v687 = vunpack.c.l.b16 %v157
    %v688 = vunpack.c.l.b16 %v158
    %v689 = vpack.c.b16 %v674, %v673
    %v690 = vpack.c.b16 %v676, %v675
    %v691 = vpack.c.b16 %v678, %v677
    %v692 = vpack.c.b16 %v680, %v679
    %v693 = vpack.c.b16 %v682, %v681
    %v694 = vpack.c.b16 %v684, %v683
    %v695 = vpack.c.b16 %v686, %v685
    %v696 = vpack.c.b16 %v688, %v687
    %705 = vmatprep.subr.bf16.mxu0 0
    %706 = vmatpush1.bf16.msra.mxu0 %v689
    %707 = vmatprep.subr.bf16.mxu0 0
    %708 = vmatpush1.bf16.msra.mxu0 %v690
    %709 = vmatprep.subr.bf16.mxu0 0
    %710 = vmatpush1.bf16.msra.mxu0 %v691
    %711 = vmatprep.subr.bf16.mxu0 0
    %712 = vmatpush1.bf16.msra.mxu0 %v692
    %713 = vmatprep.subr.bf16.mxu0 0
    %714 = vmatpush1.bf16.msra.mxu0 %v693
    %715 = vmatprep.subr.bf16.mxu0 0
    %716 = vmatpush1.bf16.msra.mxu0 %v694
    %717 = vmatprep.subr.bf16.mxu0 0
    %718 = vmatpush1.bf16.msra.mxu0 %v695
    %719 = vmatprep.subr.bf16.mxu0 0
    %720 = vmatpush1.bf16.msra.mxu0 %v696
    %721 = vmatprep.subr.bf16.mxu0 0
    %722 = vmatpush1.bf16.msra.mxu0 0
    %723 = vmatprep.subr.bf16.mxu0 0
    %724 = vmatpush1.bf16.msra.mxu0 0
    %725 = vmatprep.subr.bf16.mxu0 0
    %726 = vmatpush1.bf16.msra.mxu0 0
    %727 = vmatprep.subr.bf16.mxu0 0
    %728 = vmatpush1.bf16.msra.mxu0 0
    %729 = vmatprep.subr.bf16.mxu0 0
    %730 = vmatpush1.bf16.msra.mxu0 0
    %731 = vmatprep.subr.bf16.mxu0 0
    %732 = vmatpush1.bf16.msra.mxu0 0
    %733 = vmatprep.subr.bf16.mxu0 0
    %734 = vmatpush1.bf16.msra.mxu0 0
    %735 = vmatprep.subr.bf16.mxu0 0
    %736 = vmatpush1.bf16.msra.mxu0 0
    %737 = vmatprep.mubr.bf16.mxu0 0
    %738 = vmatmul.mubr.bf16.gmra.mrb[0].mxu0 %v652
    %v739 = vpop.f32.mrb[0].mxu0
    %v740 = vadd.f32 %v656, %v739
    %v741 = vpop.f32.mrb[0].mxu0
    %v742 = vpop.f32.mrb[0].mxu0
    %v743 = vadd.f32 %v656, %v742
    %v744 = vpop.f32.mrb[0].mxu0
    %745 = vdwg.mxu0
    %v746 = vld [vmem:[#allocation5] sm:$0xff]
    %v747 = vld [vmem:[#allocation5 + $0x8] sm:$0xff]
    %v748 = vadd.f32 %v740, %v746
    %v749 = vadd.f32 %v743, %v747
    %v750 = vlaneseq
    %v751 = vand.u32 %v750, 127
    %v752 = vpack.c.bf16 %v749, %v748
    %v785 = vunpack.c.l.b16 %v159
    %v786 = vunpack.c.h.b16 %v159
    %v787 = vunpack.c.l.b16 %v160
    %v788 = vunpack.c.l.b16 %v161
    %v789 = vunpack.c.h.b16 %v161
    %v790 = vunpack.c.l.b16 %v162
    %v791 = vunpack.c.l.b16 %v163
    %v792 = vunpack.c.h.b16 %v163
    %v793 = vunpack.c.l.b16 %v164
    %v794 = vunpack.c.l.b16 %v165
    %v795 = vunpack.c.h.b16 %v165
    %v796 = vunpack.c.l.b16 %v166
    %v797 = vunpack.c.l.b16 %v167
    %v798 = vunpack.c.h.b16 %v167
    %v799 = vunpack.c.l.b16 %v168
    %v800 = vunpack.c.l.b16 %v169
    %v801 = vunpack.c.h.b16 %v169
    %v802 = vunpack.c.l.b16 %v170
    %v803 = vunpack.c.l.b16 %v171
    %v804 = vunpack.c.h.b16 %v171
    %v805 = vunpack.c.l.b16 %v172
    %v806 = vunpack.c.l.b16 %v173
    %v807 = vunpack.c.h.b16 %v173
    %v808 = vunpack.c.l.b16 %v174
    %v809 = vunpack.c.l.b16 %v175
    %v810 = vunpack.c.h.b16 %v175
    %v811 = vunpack.c.l.b16 %v176
    %v812 = vunpack.c.l.b16 %v177
    %v813 = vunpack.c.h.b16 %v177
    %v814 = vunpack.c.l.b16 %v178
    %v815 = vunpack.c.l.b16 %v179
    %v816 = vunpack.c.h.b16 %v179
    %v817 = vunpack.c.l.b16 %v180
    %v818 = vunpack.c.l.b16 %v181
    %v819 = vunpack.c.h.b16 %v181
    %v820 = vunpack.c.l.b16 %v182
    %v821 = vunpack.c.l.b16 %v183
    %v822 = vunpack.c.h.b16 %v183
    %v823 = vunpack.c.l.b16 %v184
    %v824 = vunpack.c.l.b16 %v185
    %v825 = vunpack.c.h.b16 %v185
    %v826 = vunpack.c.l.b16 %v186
    %v827 = vunpack.c.l.b16 %v187
    %v828 = vunpack.c.h.b16 %v187
    %v829 = vunpack.c.l.b16 %v188
    %v830 = vunpack.c.l.b16 %v189
    %v831 = vunpack.c.h.b16 %v189
    %v832 = vunpack.c.l.b16 %v190
    %v833 = vpack.c.b16 %v788, %v785
    %v834 = vpack.c.b16 %v789, %v786
    %v835 = vpack.c.b16 %v790, %v787
    %v836 = vpack.c.b16 %v794, %v791
    %v837 = vpack.c.b16 %v795, %v792
    %v838 = vpack.c.b16 %v796, %v793
    %v839 = vpack.c.b16 %v800, %v797
    %v840 = vpack.c.b16 %v801, %v798
    %v841 = vpack.c.b16 %v802, %v799
    %v842 = vpack.c.b16 %v806, %v803
    %v843 = vpack.c.b16 %v807, %v804
    %v844 = vpack.c.b16 %v808, %v805
    %v845 = vpack.c.b16 %v812, %v809
    %v846 = vpack.c.b16 %v813, %v810
    %v847 = vpack.c.b16 %v814, %v811
    %v848 = vpack.c.b16 %v818, %v815
    %v849 = vpack.c.b16 %v819, %v816
    %v850 = vpack.c.b16 %v820, %v817
    %v851 = vpack.c.b16 %v824, %v821
    %v852 = vpack.c.b16 %v825, %v822
    %v853 = vpack.c.b16 %v826, %v823
    %v854 = vpack.c.b16 %v830, %v827
    %v855 = vpack.c.b16 %v831, %v828
    %v856 = vpack.c.b16 %v832, %v829
    %881 = vmatprep.subr.bf16.mxu0 %v834
    %882 = vmatpush1.bf16.msra.mxu0 %v833
    %883 = vmatprep.subr.bf16.mxu0 %v837
    %884 = vmatpush1.bf16.msra.mxu0 %v836
    %885 = vmatprep.subr.bf16.mxu0 %v840
    %886 = vmatpush1.bf16.msra.mxu0 %v839
    %887 = vmatprep.subr.bf16.mxu0 %v843
    %888 = vmatpush1.bf16.msra.mxu0 %v842
    %889 = vmatprep.subr.bf16.mxu0 %v846
    %890 = vmatpush1.bf16.msra.mxu0 %v845
    %891 = vmatprep.subr.bf16.mxu0 %v849
    %892 = vmatpush1.bf16.msra.mxu0 %v848
    %893 = vmatprep.subr.bf16.mxu0 %v852
    %894 = vmatpush1.bf16.msra.mxu0 %v851
    %895 = vmatprep.subr.bf16.mxu0 %v855
    %896 = vmatpush1.bf16.msra.mxu0 %v854
    %897 = vmatprep.subr.bf16.mxu0 0
    %898 = vmatpush1.bf16.msra.mxu0 0
    %899 = vmatprep.subr.bf16.mxu0 0
    %900 = vmatpush1.bf16.msra.mxu0 0
    %901 = vmatprep.subr.bf16.mxu0 0
    %902 = vmatpush1.bf16.msra.mxu0 0
    %903 = vmatprep.subr.bf16.mxu0 0
    %904 = vmatpush1.bf16.msra.mxu0 0
    %905 = vmatprep.subr.bf16.mxu0 0
    %906 = vmatpush1.bf16.msra.mxu0 0
    %907 = vmatprep.subr.bf16.mxu0 0
    %908 = vmatpush1.bf16.msra.mxu0 0
    %909 = vmatprep.subr.bf16.mxu0 0
    %910 = vmatpush1.bf16.msra.mxu0 0
    %911 = vmatprep.subr.bf16.mxu0 0
    %912 = vmatpush1.bf16.msra.mxu0 0
    %913 = vmatprep.mubr.bf16.mxu0 0
    %914 = vmatmul.mubr.bf16.gmra.mrb[0].mxu0 %v752
    %v915 = vpop.f32.mrb[0].mxu0
    %v916 = vadd.f32 0.0, %v915
    %v917 = vpop.f32.mrb[0].mxu0
    %v918 = vadd.f32 0.0, %v917
    %v919 = vpop.f32.mrb[0].mxu0
    %v920 = vadd.f32 0.0, %v919
    %v921 = vpop.f32.mrb[0].mxu0
    %v922 = vadd.f32 0.0, %v921
    %923 = vdwg.mxu0
    %924 = vmatprep.subr.bf16.mxu0 0
    %925 = vmatpush1.bf16.msra.mxu0 %v835
    %926 = vmatprep.subr.bf16.mxu0 0
    %927 = vmatpush1.bf16.msra.mxu0 %v838
    %928 = vmatprep.subr.bf16.mxu0 0
    %929 = vmatpush1.bf16.msra.mxu0 %v841
    %930 = vmatprep.subr.bf16.mxu0 0
    %931 = vmatpush1.bf16.msra.mxu0 %v844
    %932 = vmatprep.subr.bf16.mxu0 0
    %933 = vmatpush1.bf16.msra.mxu0 %v847
    %934 = vmatprep.subr.bf16.mxu0 0
    %935 = vmatpush1.bf16.msra.mxu0 %v850
    %936 = vmatprep.subr.bf16.mxu0 0
    %937 = vmatpush1.bf16.msra.mxu0 %v853
    %938 = vmatprep.subr.bf16.mxu0 0
    %939 = vmatpush1.bf16.msra.mxu0 %v856
    %940 = vmatprep.subr.bf16.mxu0 0
    %941 = vmatpush1.bf16.msra.mxu0 0
    %942 = vmatprep.subr.bf16.mxu0 0
    %943 = vmatpush1.bf16.msra.mxu0 0
    %944 = vmatprep.subr.bf16.mxu0 0
    %945 = vmatpush1.bf16.msra.mxu0 0
    %946 = vmatprep.subr.bf16.mxu0 0
    %947 = vmatpush1.bf16.msra.mxu0 0
    %948 = vmatprep.subr.bf16.mxu0 0
    %949 = vmatpush1.bf16.msra.mxu0 0
    %950 = vmatprep.subr.bf16.mxu0 0
    %951 = vmatpush1.bf16.msra.mxu0 0
    %952 = vmatprep.subr.bf16.mxu0 0
    %953 = vmatpush1.bf16.msra.mxu0 0
    %954 = vmatprep.subr.bf16.mxu0 0
    %955 = vmatpush1.bf16.msra.mxu0 0
    %956 = vmatprep.mubr.bf16.mxu0 0
    %957 = vmatmul.mubr.bf16.gmra.mrb[0].mxu0 %v752
    %v958 = vpop.f32.mrb[0].mxu0
    %v959 = vadd.f32 0.0, %v958
    %v960 = vpop.f32.mrb[0].mxu0
    %v961 = vpop.f32.mrb[0].mxu0
    %v962 = vadd.f32 0.0, %v961
    %v963 = vpop.f32.mrb[0].mxu0
    %964 = vdwg.mxu0
    %v965 = vlaneseq
    %v966 = vshrl.u32 %v965, 7
    %v967 = vsub.s32 1, %v966
    %v968 = vrot.slane %v142, %v967
    %v969 = vadd.f32 %v916, %v968
    %v970 = vadd.f32 %v920, %v968
    %v971 = vlaneseq
    %v972 = vshrl.u32 %v971, 7
    %v973 = vsub.s32 2, %v972
    %v974 = vrot.slane %v142, %v973
    %v975 = vadd.f32 %v918, %v974
    %v976 = vadd.f32 %v922, %v974
    %v977 = vlaneseq
    %v978 = vshrl.u32 %v977, 7
    %v979 = vsub.s32 3, %v978
    %v980 = vrot.slane %v142, %v979
    %v981 = vadd.f32 %v959, %v980
    %v982 = vadd.f32 %v962, %v980
    %v983 = vpack.c.bf16 %v969, %v969
    %v984 = vpack.c.bf16 %v975, %v975
    %vm985 = vcmask 523264
    %v987 = vsel %vm985, %v983, 0
    %v990 = vsel %vm985, %v984, 0
    %992 = vmatprep.subr.bf16.mxu0 0
    %993 = vmatpush1.bf16.xpose.msra.mxu0 %v990
    %994 = vmatprep.subr.bf16.mxu0 0
    %995 = vmatpush1.bf16.xpose.msra.mxu0 0
    %996 = vmatprep.subr.bf16.mxu0 0
    %997 = vmatpush1.bf16.xpose.msra.mxu0 0
    %998 = vmatprep.subr.bf16.mxu0 0
    %999 = vmatpush1.bf16.xpose.msra.mxu0 0
    %1000 = vmatprep.subr.bf16.mxu0 0
    %1001 = vmatpush1.bf16.xpose.msra.mxu0 0
    %1002 = vmatprep.subr.bf16.mxu0 0
    %1003 = vmatpush1.bf16.xpose.msra.mxu0 0
    %1004 = vmatprep.subr.bf16.mxu0 0
    %1005 = vmatpush1.bf16.xpose.msra.mxu0 0
    %1006 = vmatprep.subr.bf16.mxu0 0
    %1007 = vmatpush1.bf16.xpose.msra.mxu0 0
    %1008 = vmatprep.subr.bf16.mxu0 0
    %1009 = vmatpush1.bf16.xpose.msra.mxu0 0
    %1010 = vmatprep.subr.bf16.mxu0 0
    %1011 = vmatpush1.bf16.xpose.msra.mxu0 0
    %1012 = vmatprep.subr.bf16.mxu0 0
    %1013 = vmatpush1.bf16.xpose.msra.mxu0 0
    %1014 = vmatprep.subr.bf16.mxu0 0
    %1015 = vmatpush1.bf16.xpose.msra.mxu0 0
    %1016 = vmatprep.subr.bf16.mxu0 0
    %1017 = vmatpush1.bf16.xpose.msra.mxu0 0
    %1018 = vmatprep.subr.bf16.mxu0 0
    %1019 = vmatpush1.bf16.xpose.msra.mxu0 0
    %1020 = vmatprep.subr.bf16.mxu0 0
    %1021 = vmatpush1.bf16.xpose.msra.mxu0 0
    %1022 = vmatprep.subr.bf16.mxu0 0
    %1023 = vmatpush1.bf16.xpose.msra.mxu0 0
    %1024 = vmatprep.mubr.bf16.mxu0 0
    %1025 = vmatmul.mubr.bf16.gmra.mrb[0].mxu0 %v987
    %v1026 = vpop.f32.mrb[0].mxu0
    %v1027 = vadd.f32 0.0, %v1026
    %v1028 = vpop.f32.mrb[0].mxu0
    %v1029 = vpop.f32.mrb[0].mxu0
    %v1030 = vpop.f32.mrb[0].mxu0
    %1031 = vdwg.mxu0
    %v1032 = vmul.f32 %v1027, 0.125
    %vm1033 = vcmask 64512
    %v1034 = vsel %vm1033, %v1032, -inf
    %1035 = vmax.xlane.f32.xlu0 %v1034
    %v1036 = vpop.xlane.xlu0 %1035
    %v1037 = vsub.f32 %v1032, %v1036
    %v1038 = vmul.f32 %v1037, 1.442695
    %v1039 = vpow.pop %v1038
    %v1040 = vsel %vm1033, %v1039, 0.0
    %1041 = vadd.xlane.f32.xlu0 %v1040
    %v1042 = vpop.xlane.xlu0 %1041
    %v1043 = vrcp.pop %v1042
    %v1044 = vmul.f32 %v1039, %v1043
    %vm1045 = vcmp.ge.s32.totalorder %v751, 0
    %vm1046 = vcmp.lt.s32.totalorder %v751, 64
    %vm1047 = vmand %vm1045, %vm1046
    %v1048 = vsel %vm1047, 1, 0
    %vm1049 = vcmp.eq.s32.totalorder %v1048, 1
    %v1050 = vsel %vm1049, %v981, 0.0
    %v1051 = vpack.c.bf16 %v1044, %v1044
    %v1052 = vpack.c.bf16 %v1050, %v1050
    %1054 = vrot.lane.b32.xlu0 %v983, 64
    %v1055 = vpop.permute.xlu0 %1054
    %1057 = vrot.lane.b32.xlu0 %v984, 64
    %v1058 = vpop.permute.xlu0 %1057
    %v1060 = vsel %vm985, %v1055, 0
    %v1063 = vsel %vm985, %v1058, 0
    %1065 = vmatprep.subr.bf16.mxu0 0
    %1066 = vmatpush1.bf16.xpose.msra.mxu0 %v1063
    %1067 = vmatprep.subr.bf16.mxu0 0
    %1068 = vmatpush1.bf16.xpose.msra.mxu0 0
    %1069 = vmatprep.subr.bf16.mxu0 0
    %1070 = vmatpush1.bf16.xpose.msra.mxu0 0
    %1071 = vmatprep.subr.bf16.mxu0 0
    %1072 = vmatpush1.bf16.xpose.msra.mxu0 0
    %1073 = vmatprep.subr.bf16.mxu0 0
    %1074 = vmatpush1.bf16.xpose.msra.mxu0 0
    %1075 = vmatprep.subr.bf16.mxu0 0
    %1076 = vmatpush1.bf16.xpose.msra.mxu0 0
    %1077 = vmatprep.subr.bf16.mxu0 0
    %1078 = vmatpush1.bf16.xpose.msra.mxu0 0
    %1079 = vmatprep.subr.bf16.mxu0 0
    %1080 = vmatpush1.bf16.xpose.msra.mxu0 0
    %1081 = vmatprep.subr.bf16.mxu0 0
    %1082 = vmatpush1.bf16.xpose.msra.mxu0 0
    %1083 = vmatprep.subr.bf16.mxu0 0
    %1084 = vmatpush1.bf16.xpose.msra.mxu0 0
    %1085 = vmatprep.subr.bf16.mxu0 0
    %1086 = vmatpush1.bf16.xpose.msra.mxu0 0
    %1087 = vmatprep.subr.bf16.mxu0 0
    %1088 = vmatpush1.bf16.xpose.msra.mxu0 0
    %1089 = vmatprep.subr.bf16.mxu0 0
    %1090 = vmatpush1.bf16.xpose.msra.mxu0 0
    %1091 = vmatprep.subr.bf16.mxu0 0
    %1092 = vmatpush1.bf16.xpose.msra.mxu0 0
    %1093 = vmatprep.subr.bf16.mxu0 0
    %1094 = vmatpush1.bf16.xpose.msra.mxu0 0
    %1095 = vmatprep.subr.bf16.mxu0 0
    %1096 = vmatpush1.bf16.xpose.msra.mxu0 0
    %1097 = vmatprep.mubr.bf16.mxu0 0
    %1098 = vmatmul.mubr.bf16.gmra.mrb[0].mxu0 %v1060
    %v1099 = vpop.f32.mrb[0].mxu0
    %v1100 = vadd.f32 0.0, %v1099
    %v1101 = vpop.f32.mrb[0].mxu0
    %v1102 = vpop.f32.mrb[0].mxu0
    %v1103 = vpop.f32.mrb[0].mxu0
    %1104 = vdwg.mxu0
    %v1105 = vmul.f32 %v1100, 0.125
    %v1106 = vsel %vm1033, %v1105, -inf
    %1107 = vmax.xlane.f32.xlu0 %v1106
    %v1108 = vpop.xlane.xlu0 %1107
    %v1109 = vsub.f32 %v1105, %v1108
    %v1110 = vmul.f32 %v1109, 1.442695
    %v1111 = vpow.pop %v1110
    %v1112 = vsel %vm1033, %v1111, 0.0
    %1113 = vadd.xlane.f32.xlu0 %v1112
    %v1114 = vpop.xlane.xlu0 %1113
    %v1115 = vrcp.pop %v1114
    %v1116 = vmul.f32 %v1111, %v1115
    %vm1117 = vcmp.ge.s32.totalorder %v751, 64
    %vm1118 = vcmp.lt.s32.totalorder %v751, 128
    %vm1119 = vmand %vm1117, %vm1118
    %v1120 = vsel %vm1119, 1, 0
    %vm1121 = vcmp.eq.s32.totalorder %v1120, 1
    %v1122 = vsel %vm1121, %v981, 0.0
    %v1123 = vpack.c.bf16 %v1116, %v1116
    %v1124 = vpack.c.bf16 %v1122, %v1122
    %v1126 = vsel %vm1033, %v1123, 0
    %vm1128 = vcmask 1043456
    %v1130 = vsel %vm1128, %v1124, 0
    %1132 = vmatprep.subr.bf16.mxu0 0
    %1133 = vmatpush1.bf16.msra.mxu0 %v1130
    %1134 = vmatprep.subr.bf16.mxu0 0
    %1135 = vmatpush1.bf16.msra.mxu0 0
    %1136 = vmatprep.subr.bf16.mxu0 0
    %1137 = vmatpush1.bf16.msra.mxu0 0
    %1138 = vmatprep.subr.bf16.mxu0 0
    %1139 = vmatpush1.bf16.msra.mxu0 0
    %1140 = vmatprep.subr.bf16.mxu0 0
    %1141 = vmatpush1.bf16.msra.mxu0 0
    %1142 = vmatprep.subr.bf16.mxu0 0
    %1143 = vmatpush1.bf16.msra.mxu0 0
    %1144 = vmatprep.subr.bf16.mxu0 0
    %1145 = vmatpush1.bf16.msra.mxu0 0
    %1146 = vmatprep.subr.bf16.mxu0 0
    %1147 = vmatpush1.bf16.msra.mxu0 0
    %1148 = vmatprep.subr.bf16.mxu0 0
    %1149 = vmatpush1.bf16.msra.mxu0 0
    %1150 = vmatprep.subr.bf16.mxu0 0
    %1151 = vmatpush1.bf16.msra.mxu0 0
    %1152 = vmatprep.subr.bf16.mxu0 0
    %1153 = vmatpush1.bf16.msra.mxu0 0
    %1154 = vmatprep.subr.bf16.mxu0 0
    %1155 = vmatpush1.bf16.msra.mxu0 0
    %1156 = vmatprep.subr.bf16.mxu0 0
    %1157 = vmatpush1.bf16.msra.mxu0 0
    %1158 = vmatprep.subr.bf16.mxu0 0
    %1159 = vmatpush1.bf16.msra.mxu0 0
    %1160 = vmatprep.subr.bf16.mxu0 0
    %1161 = vmatpush1.bf16.msra.mxu0 0
    %1162 = vmatprep.subr.bf16.mxu0 0
    %1163 = vmatpush1.bf16.msra.mxu0 0
    %1164 = vmatprep.mubr.bf16.mxu0 0
    %1165 = vmatmul.mubr.bf16.gmra.mrb[0].mxu0 %v1126
    %v1166 = vpop.f32.mrb[0].mxu0
    %v1167 = vadd.f32 0.0, %v1166
    %v1168 = vpop.f32.mrb[0].mxu0
    %v1169 = vpop.f32.mrb[0].mxu0
    %v1170 = vpop.f32.mrb[0].mxu0
    %1171 = vdwg.mxu0
    %v1173 = vsel %vm1033, %v1051, 0
    %v1176 = vsel %vm1128, %v1052, 0
    %1178 = vmatprep.subr.bf16.mxu0 0
    %1179 = vmatpush1.bf16.msra.mxu0 %v1176
    %1180 = vmatprep.subr.bf16.mxu0 0
    %1181 = vmatpush1.bf16.msra.mxu0 0
    %1182 = vmatprep.subr.bf16.mxu0 0
    %1183 = vmatpush1.bf16.msra.mxu0 0
    %1184 = vmatprep.subr.bf16.mxu0 0
    %1185 = vmatpush1.bf16.msra.mxu0 0
    %1186 = vmatprep.subr.bf16.mxu0 0
    %1187 = vmatpush1.bf16.msra.mxu0 0
    %1188 = vmatprep.subr.bf16.mxu0 0
    %1189 = vmatpush1.bf16.msra.mxu0 0
    %1190 = vmatprep.subr.bf16.mxu0 0
    %1191 = vmatpush1.bf16.msra.mxu0 0
    %1192 = vmatprep.subr.bf16.mxu0 0
    %1193 = vmatpush1.bf16.msra.mxu0 0
    %1194 = vmatprep.subr.bf16.mxu0 0
    %1195 = vmatpush1.bf16.msra.mxu0 0
    %1196 = vmatprep.subr.bf16.mxu0 0
    %1197 = vmatpush1.bf16.msra.mxu0 0
    %1198 = vmatprep.subr.bf16.mxu0 0
    %1199 = vmatpush1.bf16.msra.mxu0 0
    %1200 = vmatprep.subr.bf16.mxu0 0
    %1201 = vmatpush1.bf16.msra.mxu0 0
    %1202 = vmatprep.subr.bf16.mxu0 0
    %1203 = vmatpush1.bf16.msra.mxu0 0
    %1204 = vmatprep.subr.bf16.mxu0 0
    %1205 = vmatpush1.bf16.msra.mxu0 0
    %1206 = vmatprep.subr.bf16.mxu0 0
    %1207 = vmatpush1.bf16.msra.mxu0 0
    %1208 = vmatprep.subr.bf16.mxu0 0
    %1209 = vmatpush1.bf16.msra.mxu0 0
    %1210 = vmatprep.mubr.bf16.mxu0 0
    %1211 = vmatmul.mubr.bf16.gmra.mrb[0].mxu0 %v1173
    %v1212 = vpop.f32.mrb[0].mxu0
    %v1213 = vadd.f32 %v1167, %v1212
    %v1214 = vpop.f32.mrb[0].mxu0
    %v1215 = vpop.f32.mrb[0].mxu0
    %v1216 = vpop.f32.mrb[0].mxu0
    %1217 = vdwg.mxu0
    %v1218 = vpack.c.bf16 %v970, %v970
    %v1219 = vpack.c.bf16 %v976, %v976
    %v1221 = vsel %vm985, %v1218, 0
    %v1224 = vsel %vm985, %v1219, 0
    %1226 = vmatprep.subr.bf16.mxu0 0
    %1227 = vmatpush1.bf16.xpose.msra.mxu0 %v1224
    %1228 = vmatprep.subr.bf16.mxu0 0
    %1229 = vmatpush1.bf16.xpose.msra.mxu0 0
    %1230 = vmatprep.subr.bf16.mxu0 0
    %1231 = vmatpush1.bf16.xpose.msra.mxu0 0
    %1232 = vmatprep.subr.bf16.mxu0 0
    %1233 = vmatpush1.bf16.xpose.msra.mxu0 0
    %1234 = vmatprep.subr.bf16.mxu0 0
    %1235 = vmatpush1.bf16.xpose.msra.mxu0 0
    %1236 = vmatprep.subr.bf16.mxu0 0
    %1237 = vmatpush1.bf16.xpose.msra.mxu0 0
    %1238 = vmatprep.subr.bf16.mxu0 0
    %1239 = vmatpush1.bf16.xpose.msra.mxu0 0
    %1240 = vmatprep.subr.bf16.mxu0 0
    %1241 = vmatpush1.bf16.xpose.msra.mxu0 0
    %1242 = vmatprep.subr.bf16.mxu0 0
    %1243 = vmatpush1.bf16.xpose.msra.mxu0 0
    %1244 = vmatprep.subr.bf16.mxu0 0
    %1245 = vmatpush1.bf16.xpose.msra.mxu0 0
    %1246 = vmatprep.subr.bf16.mxu0 0
    %1247 = vmatpush1.bf16.xpose.msra.mxu0 0
    %1248 = vmatprep.subr.bf16.mxu0 0
    %1249 = vmatpush1.bf16.xpose.msra.mxu0 0
    %1250 = vmatprep.subr.bf16.mxu0 0
    %1251 = vmatpush1.bf16.xpose.msra.mxu0 0
    %1252 = vmatprep.subr.bf16.mxu0 0
    %1253 = vmatpush1.bf16.xpose.msra.mxu0 0
    %1254 = vmatprep.subr.bf16.mxu0 0
    %1255 = vmatpush1.bf16.xpose.msra.mxu0 0
    %1256 = vmatprep.subr.bf16.mxu0 0
    %1257 = vmatpush1.bf16.xpose.msra.mxu0 0
    %1258 = vmatprep.mubr.bf16.mxu0 0
    %1259 = vmatmul.mubr.bf16.gmra.mrb[0].mxu0 %v1221
    %v1260 = vpop.f32.mrb[0].mxu0
    %v1261 = vadd.f32 0.0, %v1260
    %v1262 = vpop.f32.mrb[0].mxu0
    %v1263 = vpop.f32.mrb[0].mxu0
    %v1264 = vpop.f32.mrb[0].mxu0
    %1265 = vdwg.mxu0
    %v1266 = vmul.f32 %v1261, 0.125
    %v1267 = vsel %vm1033, %v1266, -inf
    %1268 = vmax.xlane.f32.xlu0 %v1267
    %v1269 = vpop.xlane.xlu0 %1268
    %v1270 = vsub.f32 %v1266, %v1269
    %v1271 = vmul.f32 %v1270, 1.442695
    %v1272 = vpow.pop %v1271
    %v1273 = vsel %vm1033, %v1272, 0.0
    %1274 = vadd.xlane.f32.xlu0 %v1273
    %v1275 = vpop.xlane.xlu0 %1274
    %v1276 = vrcp.pop %v1275
    %v1277 = vmul.f32 %v1272, %v1276
    %v1278 = vsel %vm1049, %v982, 0.0
    %v1279 = vpack.c.bf16 %v1277, %v1277
    %v1280 = vpack.c.bf16 %v1278, %v1278
    %1282 = vrot.lane.b32.xlu0 %v1218, 64
    %v1283 = vpop.permute.xlu0 %1282
    %1285 = vrot.lane.b32.xlu0 %v1219, 64
    %v1286 = vpop.permute.xlu0 %1285
    %v1288 = vsel %vm985, %v1283, 0
    %v1291 = vsel %vm985, %v1286, 0
    %1293 = vmatprep.subr.bf16.mxu0 0
    %1294 = vmatpush1.bf16.xpose.msra.mxu0 %v1291
    %1295 = vmatprep.subr.bf16.mxu0 0
    %1296 = vmatpush1.bf16.xpose.msra.mxu0 0
    %1297 = vmatprep.subr.bf16.mxu0 0
    %1298 = vmatpush1.bf16.xpose.msra.mxu0 0
    %1299 = vmatprep.subr.bf16.mxu0 0
    %1300 = vmatpush1.bf16.xpose.msra.mxu0 0
    %1301 = vmatprep.subr.bf16.mxu0 0
    %1302 = vmatpush1.bf16.xpose.msra.mxu0 0
    %1303 = vmatprep.subr.bf16.mxu0 0
    %1304 = vmatpush1.bf16.xpose.msra.mxu0 0
    %1305 = vmatprep.subr.bf16.mxu0 0
    %1306 = vmatpush1.bf16.xpose.msra.mxu0 0
    %1307 = vmatprep.subr.bf16.mxu0 0
    %1308 = vmatpush1.bf16.xpose.msra.mxu0 0
    %1309 = vmatprep.subr.bf16.mxu0 0
    %1310 = vmatpush1.bf16.xpose.msra.mxu0 0
    %1311 = vmatprep.subr.bf16.mxu0 0
    %1312 = vmatpush1.bf16.xpose.msra.mxu0 0
    %1313 = vmatprep.subr.bf16.mxu0 0
    %1314 = vmatpush1.bf16.xpose.msra.mxu0 0
    %1315 = vmatprep.subr.bf16.mxu0 0
    %1316 = vmatpush1.bf16.xpose.msra.mxu0 0
    %1317 = vmatprep.subr.bf16.mxu0 0
    %1318 = vmatpush1.bf16.xpose.msra.mxu0 0
    %1319 = vmatprep.subr.bf16.mxu0 0
    %1320 = vmatpush1.bf16.xpose.msra.mxu0 0
    %1321 = vmatprep.subr.bf16.mxu0 0
    %1322 = vmatpush1.bf16.xpose.msra.mxu0 0
    %1323 = vmatprep.subr.bf16.mxu0 0
    %1324 = vmatpush1.bf16.xpose.msra.mxu0 0
    %1325 = vmatprep.mubr.bf16.mxu0 0
    %1326 = vmatmul.mubr.bf16.gmra.mrb[0].mxu0 %v1288
    %v1327 = vpop.f32.mrb[0].mxu0
    %v1328 = vadd.f32 0.0, %v1327
    %v1329 = vpop.f32.mrb[0].mxu0
    %v1330 = vpop.f32.mrb[0].mxu0
    %v1331 = vpop.f32.mrb[0].mxu0
    %1332 = vdwg.mxu0
    %v1333 = vmul.f32 %v1328, 0.125
    %v1334 = vsel %vm1033, %v1333, -inf
    %1335 = vmax.xlane.f32.xlu0 %v1334
    %v1336 = vpop.xlane.xlu0 %1335
    %v1337 = vsub.f32 %v1333, %v1336
    %v1338 = vmul.f32 %v1337, 1.442695
    %v1339 = vpow.pop %v1338
    %v1340 = vsel %vm1033, %v1339, 0.0
    %1341 = vadd.xlane.f32.xlu0 %v1340
    %v1342 = vpop.xlane.xlu0 %1341
    %v1343 = vrcp.pop %v1342
    %v1344 = vmul.f32 %v1339, %v1343
    %v1345 = vsel %vm1121, %v982, 0.0
    %v1346 = vpack.c.bf16 %v1344, %v1344
    %v1347 = vpack.c.bf16 %v1345, %v1345
    %v1349 = vsel %vm1033, %v1346, 0
    %v1352 = vsel %vm1128, %v1347, 0
    %1354 = vmatprep.subr.bf16.mxu0 0
    %1355 = vmatpush1.bf16.msra.mxu0 %v1352
    %1356 = vmatprep.subr.bf16.mxu0 0
    %1357 = vmatpush1.bf16.msra.mxu0 0
    %1358 = vmatprep.subr.bf16.mxu0 0
    %1359 = vmatpush1.bf16.msra.mxu0 0
    %1360 = vmatprep.subr.bf16.mxu0 0
    %1361 = vmatpush1.bf16.msra.mxu0 0
    %1362 = vmatprep.subr.bf16.mxu0 0
    %1363 = vmatpush1.bf16.msra.mxu0 0
    %1364 = vmatprep.subr.bf16.mxu0 0
    %1365 = vmatpush1.bf16.msra.mxu0 0
    %1366 = vmatprep.subr.bf16.mxu0 0
    %1367 = vmatpush1.bf16.msra.mxu0 0
    %1368 = vmatprep.subr.bf16.mxu0 0
    %1369 = vmatpush1.bf16.msra.mxu0 0
    %1370 = vmatprep.subr.bf16.mxu0 0
    %1371 = vmatpush1.bf16.msra.mxu0 0
    %1372 = vmatprep.subr.bf16.mxu0 0
    %1373 = vmatpush1.bf16.msra.mxu0 0
    %1374 = vmatprep.subr.bf16.mxu0 0
    %1375 = vmatpush1.bf16.msra.mxu0 0
    %1376 = vmatprep.subr.bf16.mxu0 0
    %1377 = vmatpush1.bf16.msra.mxu0 0
    %1378 = vmatprep.subr.bf16.mxu0 0
    %1379 = vmatpush1.bf16.msra.mxu0 0
    %1380 = vmatprep.subr.bf16.mxu0 0
    %1381 = vmatpush1.bf16.msra.mxu0 0
    %1382 = vmatprep.subr.bf16.mxu0 0
    %1383 = vmatpush1.bf16.msra.mxu0 0
    %1384 = vmatprep.subr.bf16.mxu0 0
    %1385 = vmatpush1.bf16.msra.mxu0 0
    %1386 = vmatprep.mubr.bf16.mxu0 0
    %1387 = vmatmul.mubr.bf16.gmra.mrb[0].mxu0 %v1349
    %v1388 = vpop.f32.mrb[0].mxu0
    %v1389 = vadd.f32 0.0, %v1388
    %v1390 = vpop.f32.mrb[0].mxu0
    %v1391 = vpop.f32.mrb[0].mxu0
    %v1392 = vpop.f32.mrb[0].mxu0
    %1393 = vdwg.mxu0
    %v1395 = vsel %vm1033, %v1279, 0
    %v1398 = vsel %vm1128, %v1280, 0
    %1400 = vmatprep.subr.bf16.mxu0 0
    %1401 = vmatpush1.bf16.msra.mxu0 %v1398
    %1402 = vmatprep.subr.bf16.mxu0 0
    %1403 = vmatpush1.bf16.msra.mxu0 0
    %1404 = vmatprep.subr.bf16.mxu0 0
    %1405 = vmatpush1.bf16.msra.mxu0 0
    %1406 = vmatprep.subr.bf16.mxu0 0
    %1407 = vmatpush1.bf16.msra.mxu0 0
    %1408 = vmatprep.subr.bf16.mxu0 0
    %1409 = vmatpush1.bf16.msra.mxu0 0
    %1410 = vmatprep.subr.bf16.mxu0 0
    %1411 = vmatpush1.bf16.msra.mxu0 0
    %1412 = vmatprep.subr.bf16.mxu0 0
    %1413 = vmatpush1.bf16.msra.mxu0 0
    %1414 = vmatprep.subr.bf16.mxu0 0
    %1415 = vmatpush1.bf16.msra.mxu0 0
    %1416 = vmatprep.subr.bf16.mxu0 0
    %1417 = vmatpush1.bf16.msra.mxu0 0
    %1418 = vmatprep.subr.bf16.mxu0 0
    %1419 = vmatpush1.bf16.msra.mxu0 0
    %1420 = vmatprep.subr.bf16.mxu0 0
    %1421 = vmatpush1.bf16.msra.mxu0 0
    %1422 = vmatprep.subr.bf16.mxu0 0
    %1423 = vmatpush1.bf16.msra.mxu0 0
    %1424 = vmatprep.subr.bf16.mxu0 0
    %1425 = vmatpush1.bf16.msra.mxu0 0
    %1426 = vmatprep.subr.bf16.mxu0 0
    %1427 = vmatpush1.bf16.msra.mxu0 0
    %1428 = vmatprep.subr.bf16.mxu0 0
    %1429 = vmatpush1.bf16.msra.mxu0 0
    %1430 = vmatprep.subr.bf16.mxu0 0
    %1431 = vmatpush1.bf16.msra.mxu0 0
    %1432 = vmatprep.mubr.bf16.mxu0 0
    %1433 = vmatmul.mubr.bf16.gmra.mrb[0].mxu0 %v1395
    %v1434 = vpop.f32.mrb[0].mxu0
    %v1435 = vadd.f32 %v1389, %v1434
    %v1436 = vpop.f32.mrb[0].mxu0
    %v1437 = vpop.f32.mrb[0].mxu0
    %v1438 = vpop.f32.mrb[0].mxu0
    %1439 = vdwg.mxu0
    %v1440 = vpack.c.bf16 %v1435, %v1213
    %v1441 = vlaneseq
    %v1442 = vshrl.u32 %v1441, 7
    %v1443 = vsub.s32 1, %v1442
    %v1444 = vrot.slane %v141, %v1443
    %v1461 = vunpack.c.l.b16 %v191
    %v1462 = vunpack.c.l.b16 %v192
    %v1463 = vunpack.c.l.b16 %v193
    %v1464 = vunpack.c.l.b16 %v194
    %v1465 = vunpack.c.l.b16 %v195
    %v1466 = vunpack.c.l.b16 %v196
    %v1467 = vunpack.c.l.b16 %v197
    %v1468 = vunpack.c.l.b16 %v198
    %v1469 = vunpack.c.l.b16 %v199
    %v1470 = vunpack.c.l.b16 %v200
    %v1471 = vunpack.c.l.b16 %v201
    %v1472 = vunpack.c.l.b16 %v202
    %v1473 = vunpack.c.l.b16 %v203
    %v1474 = vunpack.c.l.b16 %v204
    %v1475 = vunpack.c.l.b16 %v205
    %v1476 = vunpack.c.l.b16 %v206
    %v1477 = vpack.c.b16 %v1462, %v1461
    %v1478 = vpack.c.b16 %v1464, %v1463
    %v1479 = vpack.c.b16 %v1466, %v1465
    %v1480 = vpack.c.b16 %v1468, %v1467
    %v1481 = vpack.c.b16 %v1470, %v1469
    %v1482 = vpack.c.b16 %v1472, %v1471
    %v1483 = vpack.c.b16 %v1474, %v1473
    %v1484 = vpack.c.b16 %v1476, %v1475
    %1493 = vmatprep.subr.bf16.mxu0 0
    %1494 = vmatpush1.bf16.msra.mxu0 %v1477
    %1495 = vmatprep.subr.bf16.mxu0 0
    %1496 = vmatpush1.bf16.msra.mxu0 %v1478
    %1497 = vmatprep.subr.bf16.mxu0 0
    %1498 = vmatpush1.bf16.msra.mxu0 %v1479
    %1499 = vmatprep.subr.bf16.mxu0 0
    %1500 = vmatpush1.bf16.msra.mxu0 %v1480
    %1501 = vmatprep.subr.bf16.mxu0 0
    %1502 = vmatpush1.bf16.msra.mxu0 %v1481
    %1503 = vmatprep.subr.bf16.mxu0 0
    %1504 = vmatpush1.bf16.msra.mxu0 %v1482
    %1505 = vmatprep.subr.bf16.mxu0 0
    %1506 = vmatpush1.bf16.msra.mxu0 %v1483
    %1507 = vmatprep.subr.bf16.mxu0 0
    %1508 = vmatpush1.bf16.msra.mxu0 %v1484
    %1509 = vmatprep.subr.bf16.mxu0 0
    %1510 = vmatpush1.bf16.msra.mxu0 0
    %1511 = vmatprep.subr.bf16.mxu0 0
    %1512 = vmatpush1.bf16.msra.mxu0 0
    %1513 = vmatprep.subr.bf16.mxu0 0
    %1514 = vmatpush1.bf16.msra.mxu0 0
    %1515 = vmatprep.subr.bf16.mxu0 0
    %1516 = vmatpush1.bf16.msra.mxu0 0
    %1517 = vmatprep.subr.bf16.mxu0 0
    %1518 = vmatpush1.bf16.msra.mxu0 0
    %1519 = vmatprep.subr.bf16.mxu0 0
    %1520 = vmatpush1.bf16.msra.mxu0 0
    %1521 = vmatprep.subr.bf16.mxu0 0
    %1522 = vmatpush1.bf16.msra.mxu0 0
    %1523 = vmatprep.subr.bf16.mxu0 0
    %1524 = vmatpush1.bf16.msra.mxu0 0
    %1525 = vmatprep.mubr.bf16.mxu0 0
    %1526 = vmatmul.mubr.bf16.gmra.mrb[0].mxu0 %v1440
    %v1527 = vpop.f32.mrb[0].mxu0
    %v1528 = vadd.f32 %v1444, %v1527
    %v1529 = vpop.f32.mrb[0].mxu0
    %v1530 = vpop.f32.mrb[0].mxu0
    %v1531 = vadd.f32 %v1444, %v1530
    %v1532 = vpop.f32.mrb[0].mxu0
    %1533 = vdwg.mxu0
    %v1534 = vadd.f32 %v748, %v1528
    %v1535 = vadd.f32 %v749, %v1531
    %1536 = vadd.xlane.f32.xlu0 %v1534
    %v1537 = vpop.xlane.xlu0 %1536
    %1538 = vadd.xlane.f32.xlu0 %v1535
    %v1539 = vpop.xlane.xlu0 %1538
    %v1540 = vrcp.pop 128.0
    %v1541 = vmul.f32 %v1537, %v1540
    %v1542 = vmul.f32 %v1539, %v1540
    %v1543 = vsub.f32 %v1534, %v1541
    %v1544 = vsub.f32 %v1535, %v1542
    %v1545 = vmul.f32 %v1543, %v1543
    %v1546 = vmul.f32 %v1544, %v1544
    %1547 = vadd.xlane.f32.xlu0 %v1545
    %v1548 = vpop.xlane.xlu0 %1547
    %1549 = vadd.xlane.f32.xlu0 %v1546
    %v1550 = vpop.xlane.xlu0 %1549
    %v1551 = vmul.f32 %v1548, %v1540
    %v1552 = vmul.f32 %v1550, %v1540
    %v1553 = vadd.f32 %v1551, 1e-05
    %v1554 = vadd.f32 %v1552, 1e-05
    %v1555 = vrsqrt.pop %v1553
    %v1556 = vrsqrt.pop %v1554
    %v1557 = vmul.f32 %v1543, %v1555
    %v1558 = vmul.f32 %v1544, %v1556
    %v1559 = vlaneseq
    %v1560 = vshrl.u32 %v1559, 7
    %v1561 = vsub.s32 3, %v1560
    %v1562 = vrot.slane %v141, %v1561
    %v1563 = vmul.f32 %v1557, %v1562
    %v1564 = vmul.f32 %v1558, %v1562
    %v1565 = vlaneseq
    %v1566 = vshrl.u32 %v1565, 7
    %v1567 = vsub.s32 4, %v1566
    %v1568 = vrot.slane %v141, %v1567
    %v1569 = vadd.f32 %v1563, %v1568
    %v1570 = vadd.f32 %v1564, %v1568
    %v1571 = vpack.c.bf16 %v1570, %v1569
    %v1574 = vlaneseq
    %v1575 = vshrl.u32 %v1574, 7
    %v1576 = vsub.s32 0, %v1575
    %v1577 = vrot.slane %v591, %v1576
    %v1578 = vlaneseq
    %v1579 = vshrl.u32 %v1578, 7
    %v1580 = vsub.s32 1, %v1579
    %v1581 = vrot.slane %v591, %v1580
    %v1582 = vlaneseq
    %v1583 = vshrl.u32 %v1582, 7
    %v1584 = vsub.s32 2, %v1583
    %v1585 = vrot.slane %v591, %v1584
    %v1586 = vlaneseq
    %v1587 = vshrl.u32 %v1586, 7
    %v1588 = vsub.s32 3, %v1587
    %v1589 = vrot.slane %v591, %v1588
    %v1590 = vlaneseq
    %v1591 = vshrl.u32 %v1590, 7
    %v1592 = vsub.s32 4, %v1591
    %v1593 = vrot.slane %v591, %v1592
    %v1594 = vlaneseq
    %v1595 = vshrl.u32 %v1594, 7
    %v1596 = vsub.s32 5, %v1595
    %v1597 = vrot.slane %v591, %v1596
    %v1598 = vlaneseq
    %v1599 = vshrl.u32 %v1598, 7
    %v1600 = vsub.s32 6, %v1599
    %v1601 = vrot.slane %v591, %v1600
    %v1602 = vlaneseq
    %v1603 = vshrl.u32 %v1602, 7
    %v1604 = vsub.s32 7, %v1603
    %v1605 = vrot.slane %v591, %v1604
    %v1606 = vlaneseq
    %v1607 = vshrl.u32 %v1606, 7
    %v1608 = vsub.s32 0, %v1607
    %v1609 = vrot.slane %v592, %v1608
    %v1610 = vlaneseq
    %v1611 = vshrl.u32 %v1610, 7
    %v1612 = vsub.s32 1, %v1611
    %v1613 = vrot.slane %v592, %v1612
    %v1614 = vlaneseq
    %v1615 = vshrl.u32 %v1614, 7
    %v1616 = vsub.s32 2, %v1615
    %v1617 = vrot.slane %v592, %v1616
    %v1618 = vlaneseq
    %v1619 = vshrl.u32 %v1618, 7
    %v1620 = vsub.s32 3, %v1619
    %v1621 = vrot.slane %v592, %v1620
    %v1622 = vlaneseq
    %v1623 = vshrl.u32 %v1622, 7
    %v1624 = vsub.s32 4, %v1623
    %v1625 = vrot.slane %v592, %v1624
    %v1626 = vlaneseq
    %v1627 = vshrl.u32 %v1626, 7
    %v1628 = vsub.s32 5, %v1627
    %v1629 = vrot.slane %v592, %v1628
    %v1630 = vlaneseq
    %v1631 = vshrl.u32 %v1630, 7
    %v1632 = vsub.s32 6, %v1631
    %v1633 = vrot.slane %v592, %v1632
    %v1634 = vlaneseq
    %v1635 = vshrl.u32 %v1634, 7
    %v1636 = vsub.s32 7, %v1635
    %v1637 = vrot.slane %v592, %v1636
    %v1782 = vunpack.c.l.b16 %v207
    %v1783 = vunpack.c.h.b16 %v207
    %v1784 = vunpack.c.l.b16 %v208
    %v1785 = vunpack.c.h.b16 %v208
    %v1786 = vunpack.c.l.b16 %v209
    %v1787 = vunpack.c.h.b16 %v209
    %v1788 = vunpack.c.l.b16 %v210
    %v1789 = vunpack.c.h.b16 %v210
    %v1790 = vunpack.c.l.b16 %v211
    %v1791 = vunpack.c.h.b16 %v211
    %v1792 = vunpack.c.l.b16 %v212
    %v1793 = vunpack.c.h.b16 %v212
    %v1794 = vunpack.c.l.b16 %v213
    %v1795 = vunpack.c.h.b16 %v213
    %v1796 = vunpack.c.l.b16 %v214
    %v1797 = vunpack.c.h.b16 %v214
    %v1798 = vunpack.c.l.b16 %v215
    %v1799 = vunpack.c.h.b16 %v215
    %v1800 = vunpack.c.l.b16 %v216
    %v1801 = vunpack.c.h.b16 %v216
    %v1802 = vunpack.c.l.b16 %v217
    %v1803 = vunpack.c.h.b16 %v217
    %v1804 = vunpack.c.l.b16 %v218
    %v1805 = vunpack.c.h.b16 %v218
    %v1806 = vunpack.c.l.b16 %v219
    %v1807 = vunpack.c.h.b16 %v219
    %v1808 = vunpack.c.l.b16 %v220
    %v1809 = vunpack.c.h.b16 %v220
    %v1810 = vunpack.c.l.b16 %v221
    %v1811 = vunpack.c.h.b16 %v221
    %v1812 = vunpack.c.l.b16 %v222
    %v1813 = vunpack.c.h.b16 %v222
    %v1814 = vunpack.c.l.b16 %v223
    %v1815 = vunpack.c.h.b16 %v223
    %v1816 = vunpack.c.l.b16 %v224
    %v1817 = vunpack.c.h.b16 %v224
    %v1818 = vunpack.c.l.b16 %v225
    %v1819 = vunpack.c.h.b16 %v225
    %v1820 = vunpack.c.l.b16 %v226
    %v1821 = vunpack.c.h.b16 %v226
    %v1822 = vunpack.c.l.b16 %v227
    %v1823 = vunpack.c.h.b16 %v227
    %v1824 = vunpack.c.l.b16 %v228
    %v1825 = vunpack.c.h.b16 %v228
    %v1826 = vunpack.c.l.b16 %v229
    %v1827 = vunpack.c.h.b16 %v229
    %v1828 = vunpack.c.l.b16 %v230
    %v1829 = vunpack.c.h.b16 %v230
    %v1830 = vunpack.c.l.b16 %v231
    %v1831 = vunpack.c.h.b16 %v231
    %v1832 = vunpack.c.l.b16 %v232
    %v1833 = vunpack.c.h.b16 %v232
    %v1834 = vunpack.c.l.b16 %v233
    %v1835 = vunpack.c.h.b16 %v233
    %v1836 = vunpack.c.l.b16 %v234
    %v1837 = vunpack.c.h.b16 %v234
    %v1838 = vunpack.c.l.b16 %v235
    %v1839 = vunpack.c.h.b16 %v235
    %v1840 = vunpack.c.l.b16 %v236
    %v1841 = vunpack.c.h.b16 %v236
    %v1842 = vunpack.c.l.b16 %v237
    %v1843 = vunpack.c.h.b16 %v237
    %v1844 = vunpack.c.l.b16 %v238
    %v1845 = vunpack.c.h.b16 %v238
    %v1846 = vunpack.c.l.b16 %v239
    %v1847 = vunpack.c.h.b16 %v239
    %v1848 = vunpack.c.l.b16 %v240
    %v1849 = vunpack.c.h.b16 %v240
    %v1850 = vunpack.c.l.b16 %v241
    %v1851 = vunpack.c.h.b16 %v241
    %v1852 = vunpack.c.l.b16 %v242
    %v1853 = vunpack.c.h.b16 %v242
    %v1854 = vunpack.c.l.b16 %v243
    %v1855 = vunpack.c.h.b16 %v243
    %v1856 = vunpack.c.l.b16 %v244
    %v1857 = vunpack.c.h.b16 %v244
    %v1858 = vunpack.c.l.b16 %v245
    %v1859 = vunpack.c.h.b16 %v245
    %v1860 = vunpack.c.l.b16 %v246
    %v1861 = vunpack.c.h.b16 %v246
    %v1862 = vunpack.c.l.b16 %v247
    %v1863 = vunpack.c.h.b16 %v247
    %v1864 = vunpack.c.l.b16 %v248
    %v1865 = vunpack.c.h.b16 %v248
    %v1866 = vunpack.c.l.b16 %v249
    %v1867 = vunpack.c.h.b16 %v249
    %v1868 = vunpack.c.l.b16 %v250
    %v1869 = vunpack.c.h.b16 %v250
    %v1870 = vunpack.c.l.b16 %v251
    %v1871 = vunpack.c.h.b16 %v251
    %v1872 = vunpack.c.l.b16 %v252
    %v1873 = vunpack.c.h.b16 %v252
    %v1874 = vunpack.c.l.b16 %v253
    %v1875 = vunpack.c.h.b16 %v253
    %v1876 = vunpack.c.l.b16 %v254
    %v1877 = vunpack.c.h.b16 %v254
    %v1878 = vunpack.c.l.b16 %v255
    %v1879 = vunpack.c.h.b16 %v255
    %v1880 = vunpack.c.l.b16 %v256
    %v1881 = vunpack.c.h.b16 %v256
    %v1882 = vunpack.c.l.b16 %v257
    %v1883 = vunpack.c.h.b16 %v257
    %v1884 = vunpack.c.l.b16 %v258
    %v1885 = vunpack.c.h.b16 %v258
    %v1886 = vunpack.c.l.b16 %v259
    %v1887 = vunpack.c.h.b16 %v259
    %v1888 = vunpack.c.l.b16 %v260
    %v1889 = vunpack.c.h.b16 %v260
    %v1890 = vunpack.c.l.b16 %v261
    %v1891 = vunpack.c.h.b16 %v261
    %v1892 = vunpack.c.l.b16 %v262
    %v1893 = vunpack.c.h.b16 %v262
    %v1894 = vunpack.c.l.b16 %v263
    %v1895 = vunpack.c.h.b16 %v263
    %v1896 = vunpack.c.l.b16 %v264
    %v1897 = vunpack.c.h.b16 %v264
    %v1898 = vunpack.c.l.b16 %v265
    %v1899 = vunpack.c.h.b16 %v265
    %v1900 = vunpack.c.l.b16 %v266
    %v1901 = vunpack.c.h.b16 %v266
    %v1902 = vunpack.c.l.b16 %v267
    %v1903 = vunpack.c.h.b16 %v267
    %v1904 = vunpack.c.l.b16 %v268
    %v1905 = vunpack.c.h.b16 %v268
    %v1906 = vunpack.c.l.b16 %v269
    %v1907 = vunpack.c.h.b16 %v269
    %v1908 = vunpack.c.l.b16 %v270
    %v1909 = vunpack.c.h.b16 %v270
    %v1910 = vunpack.c.l.b16 %v271
    %v1911 = vunpack.c.h.b16 %v271
    %v1912 = vunpack.c.l.b16 %v272
    %v1913 = vunpack.c.h.b16 %v272
    %v1914 = vunpack.c.l.b16 %v273
    %v1915 = vunpack.c.h.b16 %v273
    %v1916 = vunpack.c.l.b16 %v274
    %v1917 = vunpack.c.h.b16 %v274
    %v1918 = vunpack.c.l.b16 %v275
    %v1919 = vunpack.c.h.b16 %v275
    %v1920 = vunpack.c.l.b16 %v276
    %v1921 = vunpack.c.h.b16 %v276
    %v1922 = vunpack.c.l.b16 %v277
    %v1923 = vunpack.c.h.b16 %v277
    %v1924 = vunpack.c.l.b16 %v278
    %v1925 = vunpack.c.h.b16 %v278
    %v1926 = vunpack.c.l.b16 %v279
    %v1927 = vunpack.c.h.b16 %v279
    %v1928 = vunpack.c.l.b16 %v280
    %v1929 = vunpack.c.h.b16 %v280
    %v1930 = vunpack.c.l.b16 %v281
    %v1931 = vunpack.c.h.b16 %v281
    %v1932 = vunpack.c.l.b16 %v282
    %v1933 = vunpack.c.h.b16 %v282
    %v1934 = vunpack.c.l.b16 %v283
    %v1935 = vunpack.c.h.b16 %v283
    %v1936 = vunpack.c.l.b16 %v284
    %v1937 = vunpack.c.h.b16 %v284
    %v1938 = vunpack.c.l.b16 %v285
    %v1939 = vunpack.c.h.b16 %v285
    %v1940 = vunpack.c.l.b16 %v286
    %v1941 = vunpack.c.h.b16 %v286
    %v1942 = vunpack.c.l.b16 %v287
    %v1943 = vunpack.c.h.b16 %v287
    %v1944 = vunpack.c.l.b16 %v288
    %v1945 = vunpack.c.h.b16 %v288
    %v1946 = vunpack.c.l.b16 %v289
    %v1947 = vunpack.c.h.b16 %v289
    %v1948 = vunpack.c.l.b16 %v290
    %v1949 = vunpack.c.h.b16 %v290
    %v1950 = vunpack.c.l.b16 %v291
    %v1951 = vunpack.c.h.b16 %v291
    %v1952 = vunpack.c.l.b16 %v292
    %v1953 = vunpack.c.h.b16 %v292
    %v1954 = vunpack.c.l.b16 %v293
    %v1955 = vunpack.c.h.b16 %v293
    %v1956 = vunpack.c.l.b16 %v294
    %v1957 = vunpack.c.h.b16 %v294
    %v1958 = vunpack.c.l.b16 %v295
    %v1959 = vunpack.c.h.b16 %v295
    %v1960 = vunpack.c.l.b16 %v296
    %v1961 = vunpack.c.h.b16 %v296
    %v1962 = vunpack.c.l.b16 %v297
    %v1963 = vunpack.c.h.b16 %v297
    %v1964 = vunpack.c.l.b16 %v298
    %v1965 = vunpack.c.h.b16 %v298
    %v1966 = vunpack.c.l.b16 %v299
    %v1967 = vunpack.c.h.b16 %v299
    %v1968 = vunpack.c.l.b16 %v300
    %v1969 = vunpack.c.h.b16 %v300
    %v1970 = vunpack.c.l.b16 %v301
    %v1971 = vunpack.c.h.b16 %v301
    %v1972 = vunpack.c.l.b16 %v302
    %v1973 = vunpack.c.h.b16 %v302
    %v1974 = vunpack.c.l.b16 %v303
    %v1975 = vunpack.c.h.b16 %v303
    %v1976 = vunpack.c.l.b16 %v304
    %v1977 = vunpack.c.h.b16 %v304
    %v1978 = vunpack.c.l.b16 %v305
    %v1979 = vunpack.c.h.b16 %v305
    %v1980 = vunpack.c.l.b16 %v306
    %v1981 = vunpack.c.h.b16 %v306
    %v1982 = vunpack.c.l.b16 %v307
    %v1983 = vunpack.c.h.b16 %v307
    %v1984 = vunpack.c.l.b16 %v308
    %v1985 = vunpack.c.h.b16 %v308
    %v1986 = vunpack.c.l.b16 %v309
    %v1987 = vunpack.c.h.b16 %v309
    %v1988 = vunpack.c.l.b16 %v310
    %v1989 = vunpack.c.h.b16 %v310
    %v1990 = vunpack.c.l.b16 %v311
    %v1991 = vunpack.c.h.b16 %v311
    %v1992 = vunpack.c.l.b16 %v312
    %v1993 = vunpack.c.h.b16 %v312
    %v1994 = vunpack.c.l.b16 %v313
    %v1995 = vunpack.c.h.b16 %v313
    %v1996 = vunpack.c.l.b16 %v314
    %v1997 = vunpack.c.h.b16 %v314
    %v1998 = vunpack.c.l.b16 %v315
    %v1999 = vunpack.c.h.b16 %v315
    %v2000 = vunpack.c.l.b16 %v316
    %v2001 = vunpack.c.h.b16 %v316
    %v2002 = vunpack.c.l.b16 %v317
    %v2003 = vunpack.c.h.b16 %v317
    %v2004 = vunpack.c.l.b16 %v318
    %v2005 = vunpack.c.h.b16 %v318
    %v2006 = vunpack.c.l.b16 %v319
    %v2007 = vunpack.c.h.b16 %v319
    %v2008 = vunpack.c.l.b16 %v320
    %v2009 = vunpack.c.h.b16 %v320
    %v2010 = vunpack.c.l.b16 %v321
    %v2011 = vunpack.c.h.b16 %v321
    %v2012 = vunpack.c.l.b16 %v322
    %v2013 = vunpack.c.h.b16 %v322
    %v2014 = vunpack.c.l.b16 %v323
    %v2015 = vunpack.c.h.b16 %v323
    %v2016 = vunpack.c.l.b16 %v324
    %v2017 = vunpack.c.h.b16 %v324
    %v2018 = vunpack.c.l.b16 %v325
    %v2019 = vunpack.c.h.b16 %v325
    %v2020 = vunpack.c.l.b16 %v326
    %v2021 = vunpack.c.h.b16 %v326
    %v2022 = vunpack.c.l.b16 %v327
    %v2023 = vunpack.c.h.b16 %v327
    %v2024 = vunpack.c.l.b16 %v328
    %v2025 = vunpack.c.h.b16 %v328
    %v2026 = vunpack.c.l.b16 %v329
    %v2027 = vunpack.c.h.b16 %v329
    %v2028 = vunpack.c.l.b16 %v330
    %v2029 = vunpack.c.h.b16 %v330
    %v2030 = vunpack.c.l.b16 %v331
    %v2031 = vunpack.c.h.b16 %v331
    %v2032 = vunpack.c.l.b16 %v332
    %v2033 = vunpack.c.h.b16 %v332
    %v2034 = vunpack.c.l.b16 %v333
    %v2035 = vunpack.c.h.b16 %v333
    %v2036 = vunpack.c.l.b16 %v334
    %v2037 = vunpack.c.h.b16 %v334
    %v2038 = vpack.c.b16 %v1798, %v1782
    %v2039 = vpack.c.b16 %v1799, %v1783
    %v2040 = vpack.c.b16 %v1800, %v1784
    %v2041 = vpack.c.b16 %v1801, %v1785
    %v2042 = vpack.c.b16 %v1802, %v1786
    %v2043 = vpack.c.b16 %v1803, %v1787
    %v2044 = vpack.c.b16 %v1804, %v1788
    %v2045 = vpack.c.b16 %v1805, %v1789
    %v2046 = vpack.c.b16 %v1806, %v1790
    %v2047 = vpack.c.b16 %v1807, %v1791
    %v2048 = vpack.c.b16 %v1808, %v1792
    %v2049 = vpack.c.b16 %v1809, %v1793
    %v2050 = vpack.c.b16 %v1810, %v1794
    %v2051 = vpack.c.b16 %v1811, %v1795
    %v2052 = vpack.c.b16 %v1812, %v1796
    %v2053 = vpack.c.b16 %v1813, %v1797
    %v2054 = vpack.c.b16 %v1830, %v1814
    %v2055 = vpack.c.b16 %v1831, %v1815
    %v2056 = vpack.c.b16 %v1832, %v1816
    %v2057 = vpack.c.b16 %v1833, %v1817
    %v2058 = vpack.c.b16 %v1834, %v1818
    %v2059 = vpack.c.b16 %v1835, %v1819
    %v2060 = vpack.c.b16 %v1836, %v1820
    %v2061 = vpack.c.b16 %v1837, %v1821
    %v2062 = vpack.c.b16 %v1838, %v1822
    %v2063 = vpack.c.b16 %v1839, %v1823
    %v2064 = vpack.c.b16 %v1840, %v1824
    %v2065 = vpack.c.b16 %v1841, %v1825
    %v2066 = vpack.c.b16 %v1842, %v1826
    %v2067 = vpack.c.b16 %v1843, %v1827
    %v2068 = vpack.c.b16 %v1844, %v1828
    %v2069 = vpack.c.b16 %v1845, %v1829
    %v2070 = vpack.c.b16 %v1862, %v1846
    %v2071 = vpack.c.b16 %v1863, %v1847
    %v2072 = vpack.c.b16 %v1864, %v1848
    %v2073 = vpack.c.b16 %v1865, %v1849
    %v2074 = vpack.c.b16 %v1866, %v1850
    %v2075 = vpack.c.b16 %v1867, %v1851
    %v2076 = vpack.c.b16 %v1868, %v1852
    %v2077 = vpack.c.b16 %v1869, %v1853
    %v2078 = vpack.c.b16 %v1870, %v1854
    %v2079 = vpack.c.b16 %v1871, %v1855
    %v2080 = vpack.c.b16 %v1872, %v1856
    %v2081 = vpack.c.b16 %v1873, %v1857
    %v2082 = vpack.c.b16 %v1874, %v1858
    %v2083 = vpack.c.b16 %v1875, %v1859
    %v2084 = vpack.c.b16 %v1876, %v1860
    %v2085 = vpack.c.b16 %v1877, %v1861
    %v2086 = vpack.c.b16 %v1894, %v1878
    %v2087 = vpack.c.b16 %v1895, %v1879
    %v2088 = vpack.c.b16 %v1896, %v1880
    %v2089 = vpack.c.b16 %v1897, %v1881
    %v2090 = vpack.c.b16 %v1898, %v1882
    %v2091 = vpack.c.b16 %v1899, %v1883
    %v2092 = vpack.c.b16 %v1900, %v1884
    %v2093 = vpack.c.b16 %v1901, %v1885
    %v2094 = vpack.c.b16 %v1902, %v1886
    %v2095 = vpack.c.b16 %v1903, %v1887
    %v2096 = vpack.c.b16 %v1904, %v1888
    %v2097 = vpack.c.b16 %v1905, %v1889
    %v2098 = vpack.c.b16 %v1906, %v1890
    %v2099 = vpack.c.b16 %v1907, %v1891
    %v2100 = vpack.c.b16 %v1908, %v1892
    %v2101 = vpack.c.b16 %v1909, %v1893
    %v2102 = vpack.c.b16 %v1926, %v1910
    %v2103 = vpack.c.b16 %v1927, %v1911
    %v2104 = vpack.c.b16 %v1928, %v1912
    %v2105 = vpack.c.b16 %v1929, %v1913
    %v2106 = vpack.c.b16 %v1930, %v1914
    %v2107 = vpack.c.b16 %v1931, %v1915
    %v2108 = vpack.c.b16 %v1932, %v1916
    %v2109 = vpack.c.b16 %v1933, %v1917
    %v2110 = vpack.c.b16 %v1934, %v1918
    %v2111 = vpack.c.b16 %v1935, %v1919
    %v2112 = vpack.c.b16 %v1936, %v1920
    %v2113 = vpack.c.b16 %v1937, %v1921
    %v2114 = vpack.c.b16 %v1938, %v1922
    %v2115 = vpack.c.b16 %v1939, %v1923
    %v2116 = vpack.c.b16 %v1940, %v1924
    %v2117 = vpack.c.b16 %v1941, %v1925
    %v2118 = vpack.c.b16 %v1958, %v1942
    %v2119 = vpack.c.b16 %v1959, %v1943
    %v2120 = vpack.c.b16 %v1960, %v1944
    %v2121 = vpack.c.b16 %v1961, %v1945
    %v2122 = vpack.c.b16 %v1962, %v1946
    %v2123 = vpack.c.b16 %v1963, %v1947
    %v2124 = vpack.c.b16 %v1964, %v1948
    %v2125 = vpack.c.b16 %v1965, %v1949
    %v2126 = vpack.c.b16 %v1966, %v1950
    %v2127 = vpack.c.b16 %v1967, %v1951
    %v2128 = vpack.c.b16 %v1968, %v1952
    %v2129 = vpack.c.b16 %v1969, %v1953
    %v2130 = vpack.c.b16 %v1970, %v1954
    %v2131 = vpack.c.b16 %v1971, %v1955
    %v2132 = vpack.c.b16 %v1972, %v1956
    %v2133 = vpack.c.b16 %v1973, %v1957
    %v2134 = vpack.c.b16 %v1990, %v1974
    %v2135 = vpack.c.b16 %v1991, %v1975
    %v2136 = vpack.c.b16 %v1992, %v1976
    %v2137 = vpack.c.b16 %v1993, %v1977
    %v2138 = vpack.c.b16 %v1994, %v1978
    %v2139 = vpack.c.b16 %v1995, %v1979
    %v2140 = vpack.c.b16 %v1996, %v1980
    %v2141 = vpack.c.b16 %v1997, %v1981
    %v2142 = vpack.c.b16 %v1998, %v1982
    %v2143 = vpack.c.b16 %v1999, %v1983
    %v2144 = vpack.c.b16 %v2000, %v1984
    %v2145 = vpack.c.b16 %v2001, %v1985
    %v2146 = vpack.c.b16 %v2002, %v1986
    %v2147 = vpack.c.b16 %v2003, %v1987
    %v2148 = vpack.c.b16 %v2004, %v1988
    %v2149 = vpack.c.b16 %v2005, %v1989
    %v2150 = vpack.c.b16 %v2022, %v2006
    %v2151 = vpack.c.b16 %v2023, %v2007
    %v2152 = vpack.c.b16 %v2024, %v2008
    %v2153 = vpack.c.b16 %v2025, %v2009
    %v2154 = vpack.c.b16 %v2026, %v2010
    %v2155 = vpack.c.b16 %v2027, %v2011
    %v2156 = vpack.c.b16 %v2028, %v2012
    %v2157 = vpack.c.b16 %v2029, %v2013
    %v2158 = vpack.c.b16 %v2030, %v2014
    %v2159 = vpack.c.b16 %v2031, %v2015
    %v2160 = vpack.c.b16 %v2032, %v2016
    %v2161 = vpack.c.b16 %v2033, %v2017
    %v2162 = vpack.c.b16 %v2034, %v2018
    %v2163 = vpack.c.b16 %v2035, %v2019
    %v2164 = vpack.c.b16 %v2036, %v2020
    %v2165 = vpack.c.b16 %v2037, %v2021
    %2294 = vmatprep.subr.bf16.mxu0 %v2039
    %2295 = vmatpush1.bf16.msra.mxu0 %v2038
    %2296 = vmatprep.subr.bf16.mxu0 %v2055
    %2297 = vmatpush1.bf16.msra.mxu0 %v2054
    %2298 = vmatprep.subr.bf16.mxu0 %v2071
    %2299 = vmatpush1.bf16.msra.mxu0 %v2070
    %2300 = vmatprep.subr.bf16.mxu0 %v2087
    %2301 = vmatpush1.bf16.msra.mxu0 %v2086
    %2302 = vmatprep.subr.bf16.mxu0 %v2103
    %2303 = vmatpush1.bf16.msra.mxu0 %v2102
    %2304 = vmatprep.subr.bf16.mxu0 %v2119
    %2305 = vmatpush1.bf16.msra.mxu0 %v2118
    %2306 = vmatprep.subr.bf16.mxu0 %v2135
    %2307 = vmatpush1.bf16.msra.mxu0 %v2134
    %2308 = vmatprep.subr.bf16.mxu0 %v2151
    %2309 = vmatpush1.bf16.msra.mxu0 %v2150
    %2310 = vmatprep.subr.bf16.mxu0 0
    %2311 = vmatpush1.bf16.msra.mxu0 0
    %2312 = vmatprep.subr.bf16.mxu0 0
    %2313 = vmatpush1.bf16.msra.mxu0 0
    %2314 = vmatprep.subr.bf16.mxu0 0
    %2315 = vmatpush1.bf16.msra.mxu0 0
    %2316 = vmatprep.subr.bf16.mxu0 0
    %2317 = vmatpush1.bf16.msra.mxu0 0
    %2318 = vmatprep.subr.bf16.mxu0 0
    %2319 = vmatpush1.bf16.msra.mxu0 0
    %2320 = vmatprep.subr.bf16.mxu0 0
    %2321 = vmatpush1.bf16.msra.mxu0 0
    %2322 = vmatprep.subr.bf16.mxu0 0
    %2323 = vmatpush1.bf16.msra.mxu0 0
    %2324 = vmatprep.subr.bf16.mxu0 0
    %2325 = vmatpush1.bf16.msra.mxu0 0
    %2326 = vmatprep.mubr.bf16.mxu0 0
    %2327 = vmatmul.mubr.bf16.gmra.mrb[0].mxu0 %v1571
    %v2328 = vpop.f32.mrb[0].mxu0
    %v2329 = vadd.f32 %v1577, %v2328
    %v2330 = vpop.f32.mrb[0].mxu0
    %v2331 = vadd.f32 %v1581, %v2330
    %v2332 = vpop.f32.mrb[0].mxu0
    %v2333 = vadd.f32 %v1577, %v2332
    %v2334 = vpop.f32.mrb[0].mxu0
    %v2335 = vadd.f32 %v1581, %v2334
    %2336 = vdwg.mxu0
    %2337 = vmatprep.subr.bf16.mxu0 %v2041
    %2338 = vmatpush1.bf16.msra.mxu0 %v2040
    %2339 = vmatprep.subr.bf16.mxu0 %v2057
    %2340 = vmatpush1.bf16.msra.mxu0 %v2056
    %2341 = vmatprep.subr.bf16.mxu0 %v2073
    %2342 = vmatpush1.bf16.msra.mxu0 %v2072
    %2343 = vmatprep.subr.bf16.mxu0 %v2089
    %2344 = vmatpush1.bf16.msra.mxu0 %v2088
    %2345 = vmatprep.subr.bf16.mxu0 %v2105
    %2346 = vmatpush1.bf16.msra.mxu0 %v2104
    %2347 = vmatprep.subr.bf16.mxu0 %v2121
    %2348 = vmatpush1.bf16.msra.mxu0 %v2120
    %2349 = vmatprep.subr.bf16.mxu0 %v2137
    %2350 = vmatpush1.bf16.msra.mxu0 %v2136
    %2351 = vmatprep.subr.bf16.mxu0 %v2153
    %2352 = vmatpush1.bf16.msra.mxu0 %v2152
    %2353 = vmatprep.subr.bf16.mxu0 0
    %2354 = vmatpush1.bf16.msra.mxu0 0
    %2355 = vmatprep.subr.bf16.mxu0 0
    %2356 = vmatpush1.bf16.msra.mxu0 0
    %2357 = vmatprep.subr.bf16.mxu0 0
    %2358 = vmatpush1.bf16.msra.mxu0 0
    %2359 = vmatprep.subr.bf16.mxu0 0
    %2360 = vmatpush1.bf16.msra.mxu0 0
    %2361 = vmatprep.subr.bf16.mxu0 0
    %2362 = vmatpush1.bf16.msra.mxu0 0
    %2363 = vmatprep.subr.bf16.mxu0 0
    %2364 = vmatpush1.bf16.msra.mxu0 0
    %2365 = vmatprep.subr.bf16.mxu0 0
    %2366 = vmatpush1.bf16.msra.mxu0 0
    %2367 = vmatprep.subr.bf16.mxu0 0
    %2368 = vmatpush1.bf16.msra.mxu0 0
    %2369 = vmatprep.mubr.bf16.mxu0 0
    %2370 = vmatmul.mubr.bf16.gmra.mrb[0].mxu0 %v1571
    %v2371 = vpop.f32.mrb[0].mxu0
    %v2372 = vadd.f32 %v1585, %v2371
    %v2373 = vpop.f32.mrb[0].mxu0
    %v2374 = vadd.f32 %v1589, %v2373
    %v2375 = vpop.f32.mrb[0].mxu0
    %v2376 = vadd.f32 %v1585, %v2375
    %v2377 = vpop.f32.mrb[0].mxu0
    %v2378 = vadd.f32 %v1589, %v2377
    %2379 = vdwg.mxu0
    %2380 = vmatprep.subr.bf16.mxu0 %v2043
    %2381 = vmatpush1.bf16.msra.mxu0 %v2042
    %2382 = vmatprep.subr.bf16.mxu0 %v2059
    %2383 = vmatpush1.bf16.msra.mxu0 %v2058
    %2384 = vmatprep.subr.bf16.mxu0 %v2075
    %2385 = vmatpush1.bf16.msra.mxu0 %v2074
    %2386 = vmatprep.subr.bf16.mxu0 %v2091
    %2387 = vmatpush1.bf16.msra.mxu0 %v2090
    %2388 = vmatprep.subr.bf16.mxu0 %v2107
    %2389 = vmatpush1.bf16.msra.mxu0 %v2106
    %2390 = vmatprep.subr.bf16.mxu0 %v2123
    %2391 = vmatpush1.bf16.msra.mxu0 %v2122
    %2392 = vmatprep.subr.bf16.mxu0 %v2139
    %2393 = vmatpush1.bf16.msra.mxu0 %v2138
    %2394 = vmatprep.subr.bf16.mxu0 %v2155
    %2395 = vmatpush1.bf16.msra.mxu0 %v2154
    %2396 = vmatprep.subr.bf16.mxu0 0
    %2397 = vmatpush1.bf16.msra.mxu0 0
    %2398 = vmatprep.subr.bf16.mxu0 0
    %2399 = vmatpush1.bf16.msra.mxu0 0
    %2400 = vmatprep.subr.bf16.mxu0 0
    %2401 = vmatpush1.bf16.msra.mxu0 0
    %2402 = vmatprep.subr.bf16.mxu0 0
    %2403 = vmatpush1.bf16.msra.mxu0 0
    %2404 = vmatprep.subr.bf16.mxu0 0
    %2405 = vmatpush1.bf16.msra.mxu0 0
    %2406 = vmatprep.subr.bf16.mxu0 0
    %2407 = vmatpush1.bf16.msra.mxu0 0
    %2408 = vmatprep.subr.bf16.mxu0 0
    %2409 = vmatpush1.bf16.msra.mxu0 0
    %2410 = vmatprep.subr.bf16.mxu0 0
    %2411 = vmatpush1.bf16.msra.mxu0 0
    %2412 = vmatprep.mubr.bf16.mxu0 0
    %2413 = vmatmul.mubr.bf16.gmra.mrb[0].mxu0 %v1571
    %v2414 = vpop.f32.mrb[0].mxu0
    %v2415 = vadd.f32 %v1593, %v2414
    %v2416 = vpop.f32.mrb[0].mxu0
    %v2417 = vadd.f32 %v1597, %v2416
    %v2418 = vpop.f32.mrb[0].mxu0
    %v2419 = vadd.f32 %v1593, %v2418
    %v2420 = vpop.f32.mrb[0].mxu0
    %v2421 = vadd.f32 %v1597, %v2420
    %2422 = vdwg.mxu0
    %2423 = vmatprep.subr.bf16.mxu0 %v2045
    %2424 = vmatpush1.bf16.msra.mxu0 %v2044
    %2425 = vmatprep.subr.bf16.mxu0 %v2061
    %2426 = vmatpush1.bf16.msra.mxu0 %v2060
    %2427 = vmatprep.subr.bf16.mxu0 %v2077
    %2428 = vmatpush1.bf16.msra.mxu0 %v2076
    %2429 = vmatprep.subr.bf16.mxu0 %v2093
    %2430 = vmatpush1.bf16.msra.mxu0 %v2092
    %2431 = vmatprep.subr.bf16.mxu0 %v2109
    %2432 = vmatpush1.bf16.msra.mxu0 %v2108
    %2433 = vmatprep.subr.bf16.mxu0 %v2125
    %2434 = vmatpush1.bf16.msra.mxu0 %v2124
    %2435 = vmatprep.subr.bf16.mxu0 %v2141
    %2436 = vmatpush1.bf16.msra.mxu0 %v2140
    %2437 = vmatprep.subr.bf16.mxu0 %v2157
    %2438 = vmatpush1.bf16.msra.mxu0 %v2156
    %2439 = vmatprep.subr.bf16.mxu0 0
    %2440 = vmatpush1.bf16.msra.mxu0 0
    %2441 = vmatprep.subr.bf16.mxu0 0
    %2442 = vmatpush1.bf16.msra.mxu0 0
    %2443 = vmatprep.subr.bf16.mxu0 0
    %2444 = vmatpush1.bf16.msra.mxu0 0
    %2445 = vmatprep.subr.bf16.mxu0 0
    %2446 = vmatpush1.bf16.msra.mxu0 0
    %2447 = vmatprep.subr.bf16.mxu0 0
    %2448 = vmatpush1.bf16.msra.mxu0 0
    %2449 = vmatprep.subr.bf16.mxu0 0
    %2450 = vmatpush1.bf16.msra.mxu0 0
    %2451 = vmatprep.subr.bf16.mxu0 0
    %2452 = vmatpush1.bf16.msra.mxu0 0
    %2453 = vmatprep.subr.bf16.mxu0 0
    %2454 = vmatpush1.bf16.msra.mxu0 0
    %2455 = vmatprep.mubr.bf16.mxu0 0
    %2456 = vmatmul.mubr.bf16.gmra.mrb[0].mxu0 %v1571
    %v2457 = vpop.f32.mrb[0].mxu0
    %v2458 = vadd.f32 %v1601, %v2457
    %v2459 = vpop.f32.mrb[0].mxu0
    %v2460 = vadd.f32 %v1605, %v2459
    %v2461 = vpop.f32.mrb[0].mxu0
    %v2462 = vadd.f32 %v1601, %v2461
    %v2463 = vpop.f32.mrb[0].mxu0
    %v2464 = vadd.f32 %v1605, %v2463
    %2465 = vdwg.mxu0
    %2466 = vmatprep.subr.bf16.mxu0 %v2047
    %2467 = vmatpush1.bf16.msra.mxu0 %v2046
    %2468 = vmatprep.subr.bf16.mxu0 %v2063
    %2469 = vmatpush1.bf16.msra.mxu0 %v2062
    %2470 = vmatprep.subr.bf16.mxu0 %v2079
    %2471 = vmatpush1.bf16.msra.mxu0 %v2078
    %2472 = vmatprep.subr.bf16.mxu0 %v2095
    %2473 = vmatpush1.bf16.msra.mxu0 %v2094
    %2474 = vmatprep.subr.bf16.mxu0 %v2111
    %2475 = vmatpush1.bf16.msra.mxu0 %v2110
    %2476 = vmatprep.subr.bf16.mxu0 %v2127
    %2477 = vmatpush1.bf16.msra.mxu0 %v2126
    %2478 = vmatprep.subr.bf16.mxu0 %v2143
    %2479 = vmatpush1.bf16.msra.mxu0 %v2142
    %2480 = vmatprep.subr.bf16.mxu0 %v2159
    %2481 = vmatpush1.bf16.msra.mxu0 %v2158
    %2482 = vmatprep.subr.bf16.mxu0 0
    %2483 = vmatpush1.bf16.msra.mxu0 0
    %2484 = vmatprep.subr.bf16.mxu0 0
    %2485 = vmatpush1.bf16.msra.mxu0 0
    %2486 = vmatprep.subr.bf16.mxu0 0
    %2487 = vmatpush1.bf16.msra.mxu0 0
    %2488 = vmatprep.subr.bf16.mxu0 0
    %2489 = vmatpush1.bf16.msra.mxu0 0
    %2490 = vmatprep.subr.bf16.mxu0 0
    %2491 = vmatpush1.bf16.msra.mxu0 0
    %2492 = vmatprep.subr.bf16.mxu0 0
    %2493 = vmatpush1.bf16.msra.mxu0 0
    %2494 = vmatprep.subr.bf16.mxu0 0
    %2495 = vmatpush1.bf16.msra.mxu0 0
    %2496 = vmatprep.subr.bf16.mxu0 0
    %2497 = vmatpush1.bf16.msra.mxu0 0
    %2498 = vmatprep.mubr.bf16.mxu0 0
    %2499 = vmatmul.mubr.bf16.gmra.mrb[0].mxu0 %v1571
    %v2500 = vpop.f32.mrb[0].mxu0
    %v2501 = vadd.f32 %v1609, %v2500
    %v2502 = vpop.f32.mrb[0].mxu0
    %v2503 = vadd.f32 %v1613, %v2502
    %v2504 = vpop.f32.mrb[0].mxu0
    %v2505 = vadd.f32 %v1609, %v2504
    %v2506 = vpop.f32.mrb[0].mxu0
    %v2507 = vadd.f32 %v1613, %v2506
    %2508 = vdwg.mxu0
    %2509 = vmatprep.subr.bf16.mxu0 %v2049
    %2510 = vmatpush1.bf16.msra.mxu0 %v2048
    %2511 = vmatprep.subr.bf16.mxu0 %v2065
    %2512 = vmatpush1.bf16.msra.mxu0 %v2064
    %2513 = vmatprep.subr.bf16.mxu0 %v2081
    %2514 = vmatpush1.bf16.msra.mxu0 %v2080
    %2515 = vmatprep.subr.bf16.mxu0 %v2097
    %2516 = vmatpush1.bf16.msra.mxu0 %v2096
    %2517 = vmatprep.subr.bf16.mxu0 %v2113
    %2518 = vmatpush1.bf16.msra.mxu0 %v2112
    %2519 = vmatprep.subr.bf16.mxu0 %v2129
    %2520 = vmatpush1.bf16.msra.mxu0 %v2128
    %2521 = vmatprep.subr.bf16.mxu0 %v2145
    %2522 = vmatpush1.bf16.msra.mxu0 %v2144
    %2523 = vmatprep.subr.bf16.mxu0 %v2161
    %2524 = vmatpush1.bf16.msra.mxu0 %v2160
    %2525 = vmatprep.subr.bf16.mxu0 0
    %2526 = vmatpush1.bf16.msra.mxu0 0
    %2527 = vmatprep.subr.bf16.mxu0 0
    %2528 = vmatpush1.bf16.msra.mxu0 0
    %2529 = vmatprep.subr.bf16.mxu0 0
    %2530 = vmatpush1.bf16.msra.mxu0 0
    %2531 = vmatprep.subr.bf16.mxu0 0
    %2532 = vmatpush1.bf16.msra.mxu0 0
    %2533 = vmatprep.subr.bf16.mxu0 0
    %2534 = vmatpush1.bf16.msra.mxu0 0
    %2535 = vmatprep.subr.bf16.mxu0 0
    %2536 = vmatpush1.bf16.msra.mxu0 0
    %2537 = vmatprep.subr.bf16.mxu0 0
    %2538 = vmatpush1.bf16.msra.mxu0 0
    %2539 = vmatprep.subr.bf16.mxu0 0
    %2540 = vmatpush1.bf16.msra.mxu0 0
    %2541 = vmatprep.mubr.bf16.mxu0 0
    %2542 = vmatmul.mubr.bf16.gmra.mrb[0].mxu0 %v1571
    %v2543 = vpop.f32.mrb[0].mxu0
    %v2544 = vadd.f32 %v1617, %v2543
    %v2545 = vpop.f32.mrb[0].mxu0
    %v2546 = vadd.f32 %v1621, %v2545
    %v2547 = vpop.f32.mrb[0].mxu0
    %v2548 = vadd.f32 %v1617, %v2547
    %v2549 = vpop.f32.mrb[0].mxu0
    %v2550 = vadd.f32 %v1621, %v2549
    %2551 = vdwg.mxu0
    %2552 = vmatprep.subr.bf16.mxu0 %v2051
    %2553 = vmatpush1.bf16.msra.mxu0 %v2050
    %2554 = vmatprep.subr.bf16.mxu0 %v2067
    %2555 = vmatpush1.bf16.msra.mxu0 %v2066
    %2556 = vmatprep.subr.bf16.mxu0 %v2083
    %2557 = vmatpush1.bf16.msra.mxu0 %v2082
    %2558 = vmatprep.subr.bf16.mxu0 %v2099
    %2559 = vmatpush1.bf16.msra.mxu0 %v2098
    %2560 = vmatprep.subr.bf16.mxu0 %v2115
    %2561 = vmatpush1.bf16.msra.mxu0 %v2114
    %2562 = vmatprep.subr.bf16.mxu0 %v2131
    %2563 = vmatpush1.bf16.msra.mxu0 %v2130
    %2564 = vmatprep.subr.bf16.mxu0 %v2147
    %2565 = vmatpush1.bf16.msra.mxu0 %v2146
    %2566 = vmatprep.subr.bf16.mxu0 %v2163
    %2567 = vmatpush1.bf16.msra.mxu0 %v2162
    %2568 = vmatprep.subr.bf16.mxu0 0
    %2569 = vmatpush1.bf16.msra.mxu0 0
    %2570 = vmatprep.subr.bf16.mxu0 0
    %2571 = vmatpush1.bf16.msra.mxu0 0
    %2572 = vmatprep.subr.bf16.mxu0 0
    %2573 = vmatpush1.bf16.msra.mxu0 0
    %2574 = vmatprep.subr.bf16.mxu0 0
    %2575 = vmatpush1.bf16.msra.mxu0 0
    %2576 = vmatprep.subr.bf16.mxu0 0
    %2577 = vmatpush1.bf16.msra.mxu0 0
    %2578 = vmatprep.subr.bf16.mxu0 0
    %2579 = vmatpush1.bf16.msra.mxu0 0
    %2580 = vmatprep.subr.bf16.mxu0 0
    %2581 = vmatpush1.bf16.msra.mxu0 0
    %2582 = vmatprep.subr.bf16.mxu0 0
    %2583 = vmatpush1.bf16.msra.mxu0 0
    %2584 = vmatprep.mubr.bf16.mxu0 0
    %2585 = vmatmul.mubr.bf16.gmra.mrb[0].mxu0 %v1571
    %v2586 = vpop.f32.mrb[0].mxu0
    %v2587 = vadd.f32 %v1625, %v2586
    %v2588 = vpop.f32.mrb[0].mxu0
    %v2589 = vadd.f32 %v1629, %v2588
    %v2590 = vpop.f32.mrb[0].mxu0
    %v2591 = vadd.f32 %v1625, %v2590
    %v2592 = vpop.f32.mrb[0].mxu0
    %v2593 = vadd.f32 %v1629, %v2592
    %2594 = vdwg.mxu0
    %2595 = vmatprep.subr.bf16.mxu0 %v2053
    %2596 = vmatpush1.bf16.msra.mxu0 %v2052
    %2597 = vmatprep.subr.bf16.mxu0 %v2069
    %2598 = vmatpush1.bf16.msra.mxu0 %v2068
    %2599 = vmatprep.subr.bf16.mxu0 %v2085
    %2600 = vmatpush1.bf16.msra.mxu0 %v2084
    %2601 = vmatprep.subr.bf16.mxu0 %v2101
    %2602 = vmatpush1.bf16.msra.mxu0 %v2100
    %2603 = vmatprep.subr.bf16.mxu0 %v2117
    %2604 = vmatpush1.bf16.msra.mxu0 %v2116
    %2605 = vmatprep.subr.bf16.mxu0 %v2133
    %2606 = vmatpush1.bf16.msra.mxu0 %v2132
    %2607 = vmatprep.subr.bf16.mxu0 %v2149
    %2608 = vmatpush1.bf16.msra.mxu0 %v2148
    %2609 = vmatprep.subr.bf16.mxu0 %v2165
    %2610 = vmatpush1.bf16.msra.mxu0 %v2164
    %2611 = vmatprep.subr.bf16.mxu0 0
    %2612 = vmatpush1.bf16.msra.mxu0 0
    %2613 = vmatprep.subr.bf16.mxu0 0
    %2614 = vmatpush1.bf16.msra.mxu0 0
    %2615 = vmatprep.subr.bf16.mxu0 0
    %2616 = vmatpush1.bf16.msra.mxu0 0
    %2617 = vmatprep.subr.bf16.mxu0 0
    %2618 = vmatpush1.bf16.msra.mxu0 0
    %2619 = vmatprep.subr.bf16.mxu0 0
    %2620 = vmatpush1.bf16.msra.mxu0 0
    %2621 = vmatprep.subr.bf16.mxu0 0
    %2622 = vmatpush1.bf16.msra.mxu0 0
    %2623 = vmatprep.subr.bf16.mxu0 0
    %2624 = vmatpush1.bf16.msra.mxu0 0
    %2625 = vmatprep.subr.bf16.mxu0 0
    %2626 = vmatpush1.bf16.msra.mxu0 0
    %2627 = vmatprep.mubr.bf16.mxu0 0
    %2628 = vmatmul.mubr.bf16.gmra.mrb[0].mxu0 %v1571
    %v2629 = vpop.f32.mrb[0].mxu0
    %v2630 = vadd.f32 %v1633, %v2629
    %v2631 = vpop.f32.mrb[0].mxu0
    %v2632 = vadd.f32 %v1637, %v2631
    %v2633 = vpop.f32.mrb[0].mxu0
    %v2634 = vadd.f32 %v1633, %v2633
    %v2635 = vpop.f32.mrb[0].mxu0
    %v2636 = vadd.f32 %v1637, %v2635
    %2637 = vdwg.mxu0
    %v2638 = vmax.f32 %v2329, 0.0
    %v2639 = vmax.f32 %v2331, 0.0
    %v2640 = vmax.f32 %v2372, 0.0
    %v2641 = vmax.f32 %v2374, 0.0
    %v2642 = vmax.f32 %v2415, 0.0
    %v2643 = vmax.f32 %v2417, 0.0
    %v2644 = vmax.f32 %v2458, 0.0
    %v2645 = vmax.f32 %v2460, 0.0
    %v2646 = vmax.f32 %v2501, 0.0
    %v2647 = vmax.f32 %v2503, 0.0
    %v2648 = vmax.f32 %v2544, 0.0
    %v2649 = vmax.f32 %v2546, 0.0
    %v2650 = vmax.f32 %v2587, 0.0
    %v2651 = vmax.f32 %v2589, 0.0
    %v2652 = vmax.f32 %v2630, 0.0
    %v2653 = vmax.f32 %v2632, 0.0
    %v2654 = vmax.f32 %v2333, 0.0
    %v2655 = vmax.f32 %v2335, 0.0
    %v2656 = vmax.f32 %v2376, 0.0
    %v2657 = vmax.f32 %v2378, 0.0
    %v2658 = vmax.f32 %v2419, 0.0
    %v2659 = vmax.f32 %v2421, 0.0
    %v2660 = vmax.f32 %v2462, 0.0
    %v2661 = vmax.f32 %v2464, 0.0
    %v2662 = vmax.f32 %v2505, 0.0
    %v2663 = vmax.f32 %v2507, 0.0
    %v2664 = vmax.f32 %v2548, 0.0
    %v2665 = vmax.f32 %v2550, 0.0
    %v2666 = vmax.f32 %v2591, 0.0
    %v2667 = vmax.f32 %v2593, 0.0
    %v2668 = vmax.f32 %v2634, 0.0
    %v2669 = vmax.f32 %v2636, 0.0
    %v2670 = vpack.c.bf16 %v2654, %v2638
    %v2671 = vpack.c.bf16 %v2655, %v2639
    %v2672 = vpack.c.bf16 %v2656, %v2640
    %v2673 = vpack.c.bf16 %v2657, %v2641
    %v2674 = vpack.c.bf16 %v2658, %v2642
    %v2675 = vpack.c.bf16 %v2659, %v2643
    %v2676 = vpack.c.bf16 %v2660, %v2644
    %v2677 = vpack.c.bf16 %v2661, %v2645
    %v2678 = vpack.c.bf16 %v2662, %v2646
    %v2679 = vpack.c.bf16 %v2663, %v2647
    %v2680 = vpack.c.bf16 %v2664, %v2648
    %v2681 = vpack.c.bf16 %v2665, %v2649
    %v2682 = vpack.c.bf16 %v2666, %v2650
    %v2683 = vpack.c.bf16 %v2667, %v2651
    %v2684 = vpack.c.bf16 %v2668, %v2652
    %v2685 = vpack.c.bf16 %v2669, %v2653
    %v2686 = vlaneseq
    %v2687 = vshrl.u32 %v2686, 7
    %v2688 = vsub.s32 2, %v2687
    %v2689 = vrot.slane %v141, %v2688
    %v2946 = vunpack.c.l.b16 %v335
    %v2947 = vunpack.c.l.b16 %v336
    %v2948 = vunpack.c.l.b16 %v337
    %v2949 = vunpack.c.l.b16 %v338
    %v2950 = vunpack.c.l.b16 %v339
    %v2951 = vunpack.c.l.b16 %v340
    %v2952 = vunpack.c.l.b16 %v341
    %v2953 = vunpack.c.l.b16 %v342
    %v2954 = vunpack.c.l.b16 %v343
    %v2955 = vunpack.c.l.b16 %v344
    %v2956 = vunpack.c.l.b16 %v345
    %v2957 = vunpack.c.l.b16 %v346
    %v2958 = vunpack.c.l.b16 %v347
    %v2959 = vunpack.c.l.b16 %v348
    %v2960 = vunpack.c.l.b16 %v349
    %v2961 = vunpack.c.l.b16 %v350
    %v2962 = vunpack.c.l.b16 %v351
    %v2963 = vunpack.c.l.b16 %v352
    %v2964 = vunpack.c.l.b16 %v353
    %v2965 = vunpack.c.l.b16 %v354
    %v2966 = vunpack.c.l.b16 %v355
    %v2967 = vunpack.c.l.b16 %v356
    %v2968 = vunpack.c.l.b16 %v357
    %v2969 = vunpack.c.l.b16 %v358
    %v2970 = vunpack.c.l.b16 %v359
    %v2971 = vunpack.c.l.b16 %v360
    %v2972 = vunpack.c.l.b16 %v361
    %v2973 = vunpack.c.l.b16 %v362
    %v2974 = vunpack.c.l.b16 %v363
    %v2975 = vunpack.c.l.b16 %v364
    %v2976 = vunpack.c.l.b16 %v365
    %v2977 = vunpack.c.l.b16 %v366
    %v2978 = vunpack.c.l.b16 %v367
    %v2979 = vunpack.c.l.b16 %v368
    %v2980 = vunpack.c.l.b16 %v369
    %v2981 = vunpack.c.l.b16 %v370
    %v2982 = vunpack.c.l.b16 %v371
    %v2983 = vunpack.c.l.b16 %v372
    %v2984 = vunpack.c.l.b16 %v373
    %v2985 = vunpack.c.l.b16 %v374
    %v2986 = vunpack.c.l.b16 %v375
    %v2987 = vunpack.c.l.b16 %v376
    %v2988 = vunpack.c.l.b16 %v377
    %v2989 = vunpack.c.l.b16 %v378
    %v2990 = vunpack.c.l.b16 %v379
    %v2991 = vunpack.c.l.b16 %v380
    %v2992 = vunpack.c.l.b16 %v381
    %v2993 = vunpack.c.l.b16 %v382
    %v2994 = vunpack.c.l.b16 %v383
    %v2995 = vunpack.c.l.b16 %v384
    %v2996 = vunpack.c.l.b16 %v385
    %v2997 = vunpack.c.l.b16 %v386
    %v2998 = vunpack.c.l.b16 %v387
    %v2999 = vunpack.c.l.b16 %v388
    %v3000 = vunpack.c.l.b16 %v389
    %v3001 = vunpack.c.l.b16 %v390
    %v3002 = vunpack.c.l.b16 %v391
    %v3003 = vunpack.c.l.b16 %v392
    %v3004 = vunpack.c.l.b16 %v393
    %v3005 = vunpack.c.l.b16 %v394
    %v3006 = vunpack.c.l.b16 %v395
    %v3007 = vunpack.c.l.b16 %v396
    %v3008 = vunpack.c.l.b16 %v397
    %v3009 = vunpack.c.l.b16 %v398
    %v3010 = vunpack.c.l.b16 %v399
    %v3011 = vunpack.c.l.b16 %v400
    %v3012 = vunpack.c.l.b16 %v401
    %v3013 = vunpack.c.l.b16 %v402
    %v3014 = vunpack.c.l.b16 %v403
    %v3015 = vunpack.c.l.b16 %v404
    %v3016 = vunpack.c.l.b16 %v405
    %v3017 = vunpack.c.l.b16 %v406
    %v3018 = vunpack.c.l.b16 %v407
    %v3019 = vunpack.c.l.b16 %v408
    %v3020 = vunpack.c.l.b16 %v409
    %v3021 = vunpack.c.l.b16 %v410
    %v3022 = vunpack.c.l.b16 %v411
    %v3023 = vunpack.c.l.b16 %v412
    %v3024 = vunpack.c.l.b16 %v413
    %v3025 = vunpack.c.l.b16 %v414
    %v3026 = vunpack.c.l.b16 %v415
    %v3027 = vunpack.c.l.b16 %v416
    %v3028 = vunpack.c.l.b16 %v417
    %v3029 = vunpack.c.l.b16 %v418
    %v3030 = vunpack.c.l.b16 %v419
    %v3031 = vunpack.c.l.b16 %v420
    %v3032 = vunpack.c.l.b16 %v421
    %v3033 = vunpack.c.l.b16 %v422
    %v3034 = vunpack.c.l.b16 %v423
    %v3035 = vunpack.c.l.b16 %v424
    %v3036 = vunpack.c.l.b16 %v425
    %v3037 = vunpack.c.l.b16 %v426
    %v3038 = vunpack.c.l.b16 %v427
    %v3039 = vunpack.c.l.b16 %v428
    %v3040 = vunpack.c.l.b16 %v429
    %v3041 = vunpack.c.l.b16 %v430
    %v3042 = vunpack.c.l.b16 %v431
    %v3043 = vunpack.c.l.b16 %v432
    %v3044 = vunpack.c.l.b16 %v433
    %v3045 = vunpack.c.l.b16 %v434
    %v3046 = vunpack.c.l.b16 %v435
    %v3047 = vunpack.c.l.b16 %v436
    %v3048 = vunpack.c.l.b16 %v437
    %v3049 = vunpack.c.l.b16 %v438
    %v3050 = vunpack.c.l.b16 %v439
    %v3051 = vunpack.c.l.b16 %v440
    %v3052 = vunpack.c.l.b16 %v441
    %v3053 = vunpack.c.l.b16 %v442
    %v3054 = vunpack.c.l.b16 %v443
    %v3055 = vunpack.c.l.b16 %v444
    %v3056 = vunpack.c.l.b16 %v445
    %v3057 = vunpack.c.l.b16 %v446
    %v3058 = vunpack.c.l.b16 %v447
    %v3059 = vunpack.c.l.b16 %v448
    %v3060 = vunpack.c.l.b16 %v449
    %v3061 = vunpack.c.l.b16 %v450
    %v3062 = vunpack.c.l.b16 %v451
    %v3063 = vunpack.c.l.b16 %v452
    %v3064 = vunpack.c.l.b16 %v453
    %v3065 = vunpack.c.l.b16 %v454
    %v3066 = vunpack.c.l.b16 %v455
    %v3067 = vunpack.c.l.b16 %v456
    %v3068 = vunpack.c.l.b16 %v457
    %v3069 = vunpack.c.l.b16 %v458
    %v3070 = vunpack.c.l.b16 %v459
    %v3071 = vunpack.c.l.b16 %v460
    %v3072 = vunpack.c.l.b16 %v461
    %v3073 = vunpack.c.l.b16 %v462
    %v3074 = vunpack.c.l.b16 %v463
    %v3075 = vunpack.c.l.b16 %v464
    %v3076 = vunpack.c.l.b16 %v465
    %v3077 = vunpack.c.l.b16 %v466
    %v3078 = vunpack.c.l.b16 %v467
    %v3079 = vunpack.c.l.b16 %v468
    %v3080 = vunpack.c.l.b16 %v469
    %v3081 = vunpack.c.l.b16 %v470
    %v3082 = vunpack.c.l.b16 %v471
    %v3083 = vunpack.c.l.b16 %v472
    %v3084 = vunpack.c.l.b16 %v473
    %v3085 = vunpack.c.l.b16 %v474
    %v3086 = vunpack.c.l.b16 %v475
    %v3087 = vunpack.c.l.b16 %v476
    %v3088 = vunpack.c.l.b16 %v477
    %v3089 = vunpack.c.l.b16 %v478
    %v3090 = vunpack.c.l.b16 %v479
    %v3091 = vunpack.c.l.b16 %v480
    %v3092 = vunpack.c.l.b16 %v481
    %v3093 = vunpack.c.l.b16 %v482
    %v3094 = vunpack.c.l.b16 %v483
    %v3095 = vunpack.c.l.b16 %v484
    %v3096 = vunpack.c.l.b16 %v485
    %v3097 = vunpack.c.l.b16 %v486
    %v3098 = vunpack.c.l.b16 %v487
    %v3099 = vunpack.c.l.b16 %v488
    %v3100 = vunpack.c.l.b16 %v489
    %v3101 = vunpack.c.l.b16 %v490
    %v3102 = vunpack.c.l.b16 %v491
    %v3103 = vunpack.c.l.b16 %v492
    %v3104 = vunpack.c.l.b16 %v493
    %v3105 = vunpack.c.l.b16 %v494
    %v3106 = vunpack.c.l.b16 %v495
    %v3107 = vunpack.c.l.b16 %v496
    %v3108 = vunpack.c.l.b16 %v497
    %v3109 = vunpack.c.l.b16 %v498
    %v3110 = vunpack.c.l.b16 %v499
    %v3111 = vunpack.c.l.b16 %v500
    %v3112 = vunpack.c.l.b16 %v501
    %v3113 = vunpack.c.l.b16 %v502
    %v3114 = vunpack.c.l.b16 %v503
    %v3115 = vunpack.c.l.b16 %v504
    %v3116 = vunpack.c.l.b16 %v505
    %v3117 = vunpack.c.l.b16 %v506
    %v3118 = vunpack.c.l.b16 %v507
    %v3119 = vunpack.c.l.b16 %v508
    %v3120 = vunpack.c.l.b16 %v509
    %v3121 = vunpack.c.l.b16 %v510
    %v3122 = vunpack.c.l.b16 %v511
    %v3123 = vunpack.c.l.b16 %v512
    %v3124 = vunpack.c.l.b16 %v513
    %v3125 = vunpack.c.l.b16 %v514
    %v3126 = vunpack.c.l.b16 %v515
    %v3127 = vunpack.c.l.b16 %v516
    %v3128 = vunpack.c.l.b16 %v517
    %v3129 = vunpack.c.l.b16 %v518
    %v3130 = vunpack.c.l.b16 %v519
    %v3131 = vunpack.c.l.b16 %v520
    %v3132 = vunpack.c.l.b16 %v521
    %v3133 = vunpack.c.l.b16 %v522
    %v3134 = vunpack.c.l.b16 %v523
    %v3135 = vunpack.c.l.b16 %v524
    %v3136 = vunpack.c.l.b16 %v525
    %v3137 = vunpack.c.l.b16 %v526
    %v3138 = vunpack.c.l.b16 %v527
    %v3139 = vunpack.c.l.b16 %v528
    %v3140 = vunpack.c.l.b16 %v529
    %v3141 = vunpack.c.l.b16 %v530
    %v3142 = vunpack.c.l.b16 %v531
    %v3143 = vunpack.c.l.b16 %v532
    %v3144 = vunpack.c.l.b16 %v533
    %v3145 = vunpack.c.l.b16 %v534
    %v3146 = vunpack.c.l.b16 %v535
    %v3147 = vunpack.c.l.b16 %v536
    %v3148 = vunpack.c.l.b16 %v537
    %v3149 = vunpack.c.l.b16 %v538
    %v3150 = vunpack.c.l.b16 %v539
    %v3151 = vunpack.c.l.b16 %v540
    %v3152 = vunpack.c.l.b16 %v541
    %v3153 = vunpack.c.l.b16 %v542
    %v3154 = vunpack.c.l.b16 %v543
    %v3155 = vunpack.c.l.b16 %v544
    %v3156 = vunpack.c.l.b16 %v545
    %v3157 = vunpack.c.l.b16 %v546
    %v3158 = vunpack.c.l.b16 %v547
    %v3159 = vunpack.c.l.b16 %v548
    %v3160 = vunpack.c.l.b16 %v549
    %v3161 = vunpack.c.l.b16 %v550
    %v3162 = vunpack.c.l.b16 %v551
    %v3163 = vunpack.c.l.b16 %v552
    %v3164 = vunpack.c.l.b16 %v553
    %v3165 = vunpack.c.l.b16 %v554
    %v3166 = vunpack.c.l.b16 %v555
    %v3167 = vunpack.c.l.b16 %v556
    %v3168 = vunpack.c.l.b16 %v557
    %v3169 = vunpack.c.l.b16 %v558
    %v3170 = vunpack.c.l.b16 %v559
    %v3171 = vunpack.c.l.b16 %v560
    %v3172 = vunpack.c.l.b16 %v561
    %v3173 = vunpack.c.l.b16 %v562
    %v3174 = vunpack.c.l.b16 %v563
    %v3175 = vunpack.c.l.b16 %v564
    %v3176 = vunpack.c.l.b16 %v565
    %v3177 = vunpack.c.l.b16 %v566
    %v3178 = vunpack.c.l.b16 %v567
    %v3179 = vunpack.c.l.b16 %v568
    %v3180 = vunpack.c.l.b16 %v569
    %v3181 = vunpack.c.l.b16 %v570
    %v3182 = vunpack.c.l.b16 %v571
    %v3183 = vunpack.c.l.b16 %v572
    %v3184 = vunpack.c.l.b16 %v573
    %v3185 = vunpack.c.l.b16 %v574
    %v3186 = vunpack.c.l.b16 %v575
    %v3187 = vunpack.c.l.b16 %v576
    %v3188 = vunpack.c.l.b16 %v577
    %v3189 = vunpack.c.l.b16 %v578
    %v3190 = vunpack.c.l.b16 %v579
    %v3191 = vunpack.c.l.b16 %v580
    %v3192 = vunpack.c.l.b16 %v581
    %v3193 = vunpack.c.l.b16 %v582
    %v3194 = vunpack.c.l.b16 %v583
    %v3195 = vunpack.c.l.b16 %v584
    %v3196 = vunpack.c.l.b16 %v585
    %v3197 = vunpack.c.l.b16 %v586
    %v3198 = vunpack.c.l.b16 %v587
    %v3199 = vunpack.c.l.b16 %v588
    %v3200 = vunpack.c.l.b16 %v589
    %v3201 = vunpack.c.l.b16 %v590
    %v3202 = vpack.c.b16 %v2947, %v2946
    %v3203 = vpack.c.b16 %v2949, %v2948
    %v3204 = vpack.c.b16 %v2951, %v2950
    %v3205 = vpack.c.b16 %v2953, %v2952
    %v3206 = vpack.c.b16 %v2955, %v2954
    %v3207 = vpack.c.b16 %v2957, %v2956
    %v3208 = vpack.c.b16 %v2959, %v2958
    %v3209 = vpack.c.b16 %v2961, %v2960
    %v3210 = vpack.c.b16 %v2963, %v2962
    %v3211 = vpack.c.b16 %v2965, %v2964
    %v3212 = vpack.c.b16 %v2967, %v2966
    %v3213 = vpack.c.b16 %v2969, %v2968
    %v3214 = vpack.c.b16 %v2971, %v2970
    %v3215 = vpack.c.b16 %v2973, %v2972
    %v3216 = vpack.c.b16 %v2975, %v2974
    %v3217 = vpack.c.b16 %v2977, %v2976
    %v3218 = vpack.c.b16 %v2979, %v2978
    %v3219 = vpack.c.b16 %v2981, %v2980
    %v3220 = vpack.c.b16 %v2983, %v2982
    %v3221 = vpack.c.b16 %v2985, %v2984
    %v3222 = vpack.c.b16 %v2987, %v2986
    %v3223 = vpack.c.b16 %v2989, %v2988
    %v3224 = vpack.c.b16 %v2991, %v2990
    %v3225 = vpack.c.b16 %v2993, %v2992
    %v3226 = vpack.c.b16 %v2995, %v2994
    %v3227 = vpack.c.b16 %v2997, %v2996
    %v3228 = vpack.c.b16 %v2999, %v2998
    %v3229 = vpack.c.b16 %v3001, %v3000
    %v3230 = vpack.c.b16 %v3003, %v3002
    %v3231 = vpack.c.b16 %v3005, %v3004
    %v3232 = vpack.c.b16 %v3007, %v3006
    %v3233 = vpack.c.b16 %v3009, %v3008
    %v3234 = vpack.c.b16 %v3011, %v3010
    %v3235 = vpack.c.b16 %v3013, %v3012
    %v3236 = vpack.c.b16 %v3015, %v3014
    %v3237 = vpack.c.b16 %v3017, %v3016
    %v3238 = vpack.c.b16 %v3019, %v3018
    %v3239 = vpack.c.b16 %v3021, %v3020
    %v3240 = vpack.c.b16 %v3023, %v3022
    %v3241 = vpack.c.b16 %v3025, %v3024
    %v3242 = vpack.c.b16 %v3027, %v3026
    %v3243 = vpack.c.b16 %v3029, %v3028
    %v3244 = vpack.c.b16 %v3031, %v3030
    %v3245 = vpack.c.b16 %v3033, %v3032
    %v3246 = vpack.c.b16 %v3035, %v3034
    %v3247 = vpack.c.b16 %v3037, %v3036
    %v3248 = vpack.c.b16 %v3039, %v3038
    %v3249 = vpack.c.b16 %v3041, %v3040
    %v3250 = vpack.c.b16 %v3043, %v3042
    %v3251 = vpack.c.b16 %v3045, %v3044
    %v3252 = vpack.c.b16 %v3047, %v3046
    %v3253 = vpack.c.b16 %v3049, %v3048
    %v3254 = vpack.c.b16 %v3051, %v3050
    %v3255 = vpack.c.b16 %v3053, %v3052
    %v3256 = vpack.c.b16 %v3055, %v3054
    %v3257 = vpack.c.b16 %v3057, %v3056
    %v3258 = vpack.c.b16 %v3059, %v3058
    %v3259 = vpack.c.b16 %v3061, %v3060
    %v3260 = vpack.c.b16 %v3063, %v3062
    %v3261 = vpack.c.b16 %v3065, %v3064
    %v3262 = vpack.c.b16 %v3067, %v3066
    %v3263 = vpack.c.b16 %v3069, %v3068
    %v3264 = vpack.c.b16 %v3071, %v3070
    %v3265 = vpack.c.b16 %v3073, %v3072
    %v3266 = vpack.c.b16 %v3075, %v3074
    %v3267 = vpack.c.b16 %v3077, %v3076
    %v3268 = vpack.c.b16 %v3079, %v3078
    %v3269 = vpack.c.b16 %v3081, %v3080
    %v3270 = vpack.c.b16 %v3083, %v3082
    %v3271 = vpack.c.b16 %v3085, %v3084
    %v3272 = vpack.c.b16 %v3087, %v3086
    %v3273 = vpack.c.b16 %v3089, %v3088
    %v3274 = vpack.c.b16 %v3091, %v3090
    %v3275 = vpack.c.b16 %v3093, %v3092
    %v3276 = vpack.c.b16 %v3095, %v3094
    %v3277 = vpack.c.b16 %v3097, %v3096
    %v3278 = vpack.c.b16 %v3099, %v3098
    %v3279 = vpack.c.b16 %v3101, %v3100
    %v3280 = vpack.c.b16 %v3103, %v3102
    %v3281 = vpack.c.b16 %v3105, %v3104
    %v3282 = vpack.c.b16 %v3107, %v3106
    %v3283 = vpack.c.b16 %v3109, %v3108
    %v3284 = vpack.c.b16 %v3111, %v3110
    %v3285 = vpack.c.b16 %v3113, %v3112
    %v3286 = vpack.c.b16 %v3115, %v3114
    %v3287 = vpack.c.b16 %v3117, %v3116
    %v3288 = vpack.c.b16 %v3119, %v3118
    %v3289 = vpack.c.b16 %v3121, %v3120
    %v3290 = vpack.c.b16 %v3123, %v3122
    %v3291 = vpack.c.b16 %v3125, %v3124
    %v3292 = vpack.c.b16 %v3127, %v3126
    %v3293 = vpack.c.b16 %v3129, %v3128
    %v3294 = vpack.c.b16 %v3131, %v3130
    %v3295 = vpack.c.b16 %v3133, %v3132
    %v3296 = vpack.c.b16 %v3135, %v3134
    %v3297 = vpack.c.b16 %v3137, %v3136
    %v3298 = vpack.c.b16 %v3139, %v3138
    %v3299 = vpack.c.b16 %v3141, %v3140
    %v3300 = vpack.c.b16 %v3143, %v3142
    %v3301 = vpack.c.b16 %v3145, %v3144
    %v3302 = vpack.c.b16 %v3147, %v3146
    %v3303 = vpack.c.b16 %v3149, %v3148
    %v3304 = vpack.c.b16 %v3151, %v3150
    %v3305 = vpack.c.b16 %v3153, %v3152
    %v3306 = vpack.c.b16 %v3155, %v3154
    %v3307 = vpack.c.b16 %v3157, %v3156
    %v3308 = vpack.c.b16 %v3159, %v3158
    %v3309 = vpack.c.b16 %v3161, %v3160
    %v3310 = vpack.c.b16 %v3163, %v3162
    %v3311 = vpack.c.b16 %v3165, %v3164
    %v3312 = vpack.c.b16 %v3167, %v3166
    %v3313 = vpack.c.b16 %v3169, %v3168
    %v3314 = vpack.c.b16 %v3171, %v3170
    %v3315 = vpack.c.b16 %v3173, %v3172
    %v3316 = vpack.c.b16 %v3175, %v3174
    %v3317 = vpack.c.b16 %v3177, %v3176
    %v3318 = vpack.c.b16 %v3179, %v3178
    %v3319 = vpack.c.b16 %v3181, %v3180
    %v3320 = vpack.c.b16 %v3183, %v3182
    %v3321 = vpack.c.b16 %v3185, %v3184
    %v3322 = vpack.c.b16 %v3187, %v3186
    %v3323 = vpack.c.b16 %v3189, %v3188
    %v3324 = vpack.c.b16 %v3191, %v3190
    %v3325 = vpack.c.b16 %v3193, %v3192
    %v3326 = vpack.c.b16 %v3195, %v3194
    %v3327 = vpack.c.b16 %v3197, %v3196
    %v3328 = vpack.c.b16 %v3199, %v3198
    %v3329 = vpack.c.b16 %v3201, %v3200
    %3458 = vmatprep.subr.bf16.mxu0 0
    %3459 = vmatpush1.bf16.msra.mxu0 %v3202
    %3460 = vmatprep.subr.bf16.mxu0 0
    %3461 = vmatpush1.bf16.msra.mxu0 %v3203
    %3462 = vmatprep.subr.bf16.mxu0 0
    %3463 = vmatpush1.bf16.msra.mxu0 %v3204
    %3464 = vmatprep.subr.bf16.mxu0 0
    %3465 = vmatpush1.bf16.msra.mxu0 %v3205
    %3466 = vmatprep.subr.bf16.mxu0 0
    %3467 = vmatpush1.bf16.msra.mxu0 %v3206
    %3468 = vmatprep.subr.bf16.mxu0 0
    %3469 = vmatpush1.bf16.msra.mxu0 %v3207
    %3470 = vmatprep.subr.bf16.mxu0 0
    %3471 = vmatpush1.bf16.msra.mxu0 %v3208
    %3472 = vmatprep.subr.bf16.mxu0 0
    %3473 = vmatpush1.bf16.msra.mxu0 %v3209
    %3474 = vmatprep.subr.bf16.mxu0 0
    %3475 = vmatpush1.bf16.msra.mxu0 %v3210
    %3476 = vmatprep.subr.bf16.mxu0 0
    %3477 = vmatpush1.bf16.msra.mxu0 %v3211
    %3478 = vmatprep.subr.bf16.mxu0 0
    %3479 = vmatpush1.bf16.msra.mxu0 %v3212
    %3480 = vmatprep.subr.bf16.mxu0 0
    %3481 = vmatpush1.bf16.msra.mxu0 %v3213
    %3482 = vmatprep.subr.bf16.mxu0 0
    %3483 = vmatpush1.bf16.msra.mxu0 %v3214
    %3484 = vmatprep.subr.bf16.mxu0 0
    %3485 = vmatpush1.bf16.msra.mxu0 %v3215
    %3486 = vmatprep.subr.bf16.mxu0 0
    %3487 = vmatpush1.bf16.msra.mxu0 %v3216
    %3488 = vmatprep.subr.bf16.mxu0 0
    %3489 = vmatpush1.bf16.msra.mxu0 %v3217
    %3490 = vmatprep.mubr.bf16.mxu0 %v2671
    %3491 = vmatmul.mubr.bf16.gmra.mrb[0].mxu0 %v2670
    %v3492 = vpop.f32.mrb[0].mxu0
    %v3493 = vadd.f32 %v2689, %v3492
    %v3494 = vpop.f32.mrb[0].mxu0
    %v3495 = vpop.f32.mrb[0].mxu0
    %v3496 = vadd.f32 %v2689, %v3495
    %v3497 = vpop.f32.mrb[0].mxu0
    %3498 = vdwg.mxu0
    %3499 = vmatprep.subr.bf16.mxu0 0
    %3500 = vmatpush1.bf16.msra.mxu0 %v3218
    %3501 = vmatprep.subr.bf16.mxu0 0
    %3502 = vmatpush1.bf16.msra.mxu0 %v3219
    %3503 = vmatprep.subr.bf16.mxu0 0
    %3504 = vmatpush1.bf16.msra.mxu0 %v3220
    %3505 = vmatprep.subr.bf16.mxu0 0
    %3506 = vmatpush1.bf16.msra.mxu0 %v3221
    %3507 = vmatprep.subr.bf16.mxu0 0
    %3508 = vmatpush1.bf16.msra.mxu0 %v3222
    %3509 = vmatprep.subr.bf16.mxu0 0
    %3510 = vmatpush1.bf16.msra.mxu0 %v3223
    %3511 = vmatprep.subr.bf16.mxu0 0
    %3512 = vmatpush1.bf16.msra.mxu0 %v3224
    %3513 = vmatprep.subr.bf16.mxu0 0
    %3514 = vmatpush1.bf16.msra.mxu0 %v3225
    %3515 = vmatprep.subr.bf16.mxu0 0
    %3516 = vmatpush1.bf16.msra.mxu0 %v3226
    %3517 = vmatprep.subr.bf16.mxu0 0
    %3518 = vmatpush1.bf16.msra.mxu0 %v3227
    %3519 = vmatprep.subr.bf16.mxu0 0
    %3520 = vmatpush1.bf16.msra.mxu0 %v3228
    %3521 = vmatprep.subr.bf16.mxu0 0
    %3522 = vmatpush1.bf16.msra.mxu0 %v3229
    %3523 = vmatprep.subr.bf16.mxu0 0
    %3524 = vmatpush1.bf16.msra.mxu0 %v3230
    %3525 = vmatprep.subr.bf16.mxu0 0
    %3526 = vmatpush1.bf16.msra.mxu0 %v3231
    %3527 = vmatprep.subr.bf16.mxu0 0
    %3528 = vmatpush1.bf16.msra.mxu0 %v3232
    %3529 = vmatprep.subr.bf16.mxu0 0
    %3530 = vmatpush1.bf16.msra.mxu0 %v3233
    %3531 = vmatprep.mubr.bf16.mxu0 %v2673
    %3532 = vmatmul.mubr.bf16.gmra.mrb[0].mxu0 %v2672
    %v3533 = vpop.f32.mrb[0].mxu0
    %v3534 = vadd.f32 %v3493, %v3533
    %v3535 = vpop.f32.mrb[0].mxu0
    %v3536 = vpop.f32.mrb[0].mxu0
    %v3537 = vadd.f32 %v3496, %v3536
    %v3538 = vpop.f32.mrb[0].mxu0
    %3539 = vdwg.mxu0
    %3540 = vmatprep.subr.bf16.mxu0 0
    %3541 = vmatpush1.bf16.msra.mxu0 %v3234
    %3542 = vmatprep.subr.bf16.mxu0 0
    %3543 = vmatpush1.bf16.msra.mxu0 %v3235
    %3544 = vmatprep.subr.bf16.mxu0 0
    %3545 = vmatpush1.bf16.msra.mxu0 %v3236
    %3546 = vmatprep.subr.bf16.mxu0 0
    %3547 = vmatpush1.bf16.msra.mxu0 %v3237
    %3548 = vmatprep.subr.bf16.mxu0 0
    %3549 = vmatpush1.bf16.msra.mxu0 %v3238
    %3550 = vmatprep.subr.bf16.mxu0 0
    %3551 = vmatpush1.bf16.msra.mxu0 %v3239
    %3552 = vmatprep.subr.bf16.mxu0 0
    %3553 = vmatpush1.bf16.msra.mxu0 %v3240
    %3554 = vmatprep.subr.bf16.mxu0 0
    %3555 = vmatpush1.bf16.msra.mxu0 %v3241
    %3556 = vmatprep.subr.bf16.mxu0 0
    %3557 = vmatpush1.bf16.msra.mxu0 %v3242
    %3558 = vmatprep.subr.bf16.mxu0 0
    %3559 = vmatpush1.bf16.msra.mxu0 %v3243
    %3560 = vmatprep.subr.bf16.mxu0 0
    %3561 = vmatpush1.bf16.msra.mxu0 %v3244
    %3562 = vmatprep.subr.bf16.mxu0 0
    %3563 = vmatpush1.bf16.msra.mxu0 %v3245
    %3564 = vmatprep.subr.bf16.mxu0 0
    %3565 = vmatpush1.bf16.msra.mxu0 %v3246
    %3566 = vmatprep.subr.bf16.mxu0 0
    %3567 = vmatpush1.bf16.msra.mxu0 %v3247
    %3568 = vmatprep.subr.bf16.mxu0 0
    %3569 = vmatpush1.bf16.msra.mxu0 %v3248
    %3570 = vmatprep.subr.bf16.mxu0 0
    %3571 = vmatpush1.bf16.msra.mxu0 %v3249
    %3572 = vmatprep.mubr.bf16.mxu0 %v2675
    %3573 = vmatmul.mubr.bf16.gmra.mrb[0].mxu0 %v2674
    %v3574 = vpop.f32.mrb[0].mxu0
    %v3575 = vadd.f32 %v3534, %v3574
    %v3576 = vpop.f32.mrb[0].mxu0
    %v3577 = vpop.f32.mrb[0].mxu0
    %v3578 = vadd.f32 %v3537, %v3577
    %v3579 = vpop.f32.mrb[0].mxu0
    %3580 = vdwg.mxu0
    %3581 = vmatprep.subr.bf16.mxu0 0
    %3582 = vmatpush1.bf16.msra.mxu0 %v3250
    %3583 = vmatprep.subr.bf16.mxu0 0
    %3584 = vmatpush1.bf16.msra.mxu0 %v3251
    %3585 = vmatprep.subr.bf16.mxu0 0
    %3586 = vmatpush1.bf16.msra.mxu0 %v3252
    %3587 = vmatprep.subr.bf16.mxu0 0
    %3588 = vmatpush1.bf16.msra.mxu0 %v3253
    %3589 = vmatprep.subr.bf16.mxu0 0
    %3590 = vmatpush1.bf16.msra.mxu0 %v3254
    %3591 = vmatprep.subr.bf16.mxu0 0
    %3592 = vmatpush1.bf16.msra.mxu0 %v3255
    %3593 = vmatprep.subr.bf16.mxu0 0
    %3594 = vmatpush1.bf16.msra.mxu0 %v3256
    %3595 = vmatprep.subr.bf16.mxu0 0
    %3596 = vmatpush1.bf16.msra.mxu0 %v3257
    %3597 = vmatprep.subr.bf16.mxu0 0
    %3598 = vmatpush1.bf16.msra.mxu0 %v3258
    %3599 = vmatprep.subr.bf16.mxu0 0
    %3600 = vmatpush1.bf16.msra.mxu0 %v3259
    %3601 = vmatprep.subr.bf16.mxu0 0
    %3602 = vmatpush1.bf16.msra.mxu0 %v3260
    %3603 = vmatprep.subr.bf16.mxu0 0
    %3604 = vmatpush1.bf16.msra.mxu0 %v3261
    %3605 = vmatprep.subr.bf16.mxu0 0
    %3606 = vmatpush1.bf16.msra.mxu0 %v3262
    %3607 = vmatprep.subr.bf16.mxu0 0
    %3608 = vmatpush1.bf16.msra.mxu0 %v3263
    %3609 = vmatprep.subr.bf16.mxu0 0
    %3610 = vmatpush1.bf16.msra.mxu0 %v3264
    %3611 = vmatprep.subr.bf16.mxu0 0
    %3612 = vmatpush1.bf16.msra.mxu0 %v3265
    %3613 = vmatprep.mubr.bf16.mxu0 %v2677
    %3614 = vmatmul.mubr.bf16.gmra.mrb[0].mxu0 %v2676
    %v3615 = vpop.f32.mrb[0].mxu0
    %v3616 = vadd.f32 %v3575, %v3615
    %v3617 = vpop.f32.mrb[0].mxu0
    %v3618 = vpop.f32.mrb[0].mxu0
    %v3619 = vadd.f32 %v3578, %v3618
    %v3620 = vpop.f32.mrb[0].mxu0
    %3621 = vdwg.mxu0
    %3622 = vmatprep.subr.bf16.mxu0 0
    %3623 = vmatpush1.bf16.msra.mxu0 %v3266
    %3624 = vmatprep.subr.bf16.mxu0 0
    %3625 = vmatpush1.bf16.msra.mxu0 %v3267
    %3626 = vmatprep.subr.bf16.mxu0 0
    %3627 = vmatpush1.bf16.msra.mxu0 %v3268
    %3628 = vmatprep.subr.bf16.mxu0 0
    %3629 = vmatpush1.bf16.msra.mxu0 %v3269
    %3630 = vmatprep.subr.bf16.mxu0 0
    %3631 = vmatpush1.bf16.msra.mxu0 %v3270
    %3632 = vmatprep.subr.bf16.mxu0 0
    %3633 = vmatpush1.bf16.msra.mxu0 %v3271
    %3634 = vmatprep.subr.bf16.mxu0 0
    %3635 = vmatpush1.bf16.msra.mxu0 %v3272
    %3636 = vmatprep.subr.bf16.mxu0 0
    %3637 = vmatpush1.bf16.msra.mxu0 %v3273
    %3638 = vmatprep.subr.bf16.mxu0 0
    %3639 = vmatpush1.bf16.msra.mxu0 %v3274
    %3640 = vmatprep.subr.bf16.mxu0 0
    %3641 = vmatpush1.bf16.msra.mxu0 %v3275
    %3642 = vmatprep.subr.bf16.mxu0 0
    %3643 = vmatpush1.bf16.msra.mxu0 %v3276
    %3644 = vmatprep.subr.bf16.mxu0 0
    %3645 = vmatpush1.bf16.msra.mxu0 %v3277
    %3646 = vmatprep.subr.bf16.mxu0 0
    %3647 = vmatpush1.bf16.msra.mxu0 %v3278
    %3648 = vmatprep.subr.bf16.mxu0 0
    %3649 = vmatpush1.bf16.msra.mxu0 %v3279
    %3650 = vmatprep.subr.bf16.mxu0 0
    %3651 = vmatpush1.bf16.msra.mxu0 %v3280
    %3652 = vmatprep.subr.bf16.mxu0 0
    %3653 = vmatpush1.bf16.msra.mxu0 %v3281
    %3654 = vmatprep.mubr.bf16.mxu0 %v2679
    %3655 = vmatmul.mubr.bf16.gmra.mrb[0].mxu0 %v2678
    %v3656 = vpop.f32.mrb[0].mxu0
    %v3657 = vadd.f32 %v3616, %v3656
    %v3658 = vpop.f32.mrb[0].mxu0
    %v3659 = vpop.f32.mrb[0].mxu0
    %v3660 = vadd.f32 %v3619, %v3659
    %v3661 = vpop.f32.mrb[0].mxu0
    %3662 = vdwg.mxu0
    %3663 = vmatprep.subr.bf16.mxu0 0
    %3664 = vmatpush1.bf16.msra.mxu0 %v3282
    %3665 = vmatprep.subr.bf16.mxu0 0
    %3666 = vmatpush1.bf16.msra.mxu0 %v3283
    %3667 = vmatprep.subr.bf16.mxu0 0
    %3668 = vmatpush1.bf16.msra.mxu0 %v3284
    %3669 = vmatprep.subr.bf16.mxu0 0
    %3670 = vmatpush1.bf16.msra.mxu0 %v3285
    %3671 = vmatprep.subr.bf16.mxu0 0
    %3672 = vmatpush1.bf16.msra.mxu0 %v3286
    %3673 = vmatprep.subr.bf16.mxu0 0
    %3674 = vmatpush1.bf16.msra.mxu0 %v3287
    %3675 = vmatprep.subr.bf16.mxu0 0
    %3676 = vmatpush1.bf16.msra.mxu0 %v3288
    %3677 = vmatprep.subr.bf16.mxu0 0
    %3678 = vmatpush1.bf16.msra.mxu0 %v3289
    %3679 = vmatprep.subr.bf16.mxu0 0
    %3680 = vmatpush1.bf16.msra.mxu0 %v3290
    %3681 = vmatprep.subr.bf16.mxu0 0
    %3682 = vmatpush1.bf16.msra.mxu0 %v3291
    %3683 = vmatprep.subr.bf16.mxu0 0
    %3684 = vmatpush1.bf16.msra.mxu0 %v3292
    %3685 = vmatprep.subr.bf16.mxu0 0
    %3686 = vmatpush1.bf16.msra.mxu0 %v3293
    %3687 = vmatprep.subr.bf16.mxu0 0
    %3688 = vmatpush1.bf16.msra.mxu0 %v3294
    %3689 = vmatprep.subr.bf16.mxu0 0
    %3690 = vmatpush1.bf16.msra.mxu0 %v3295
    %3691 = vmatprep.subr.bf16.mxu0 0
    %3692 = vmatpush1.bf16.msra.mxu0 %v3296
    %3693 = vmatprep.subr.bf16.mxu0 0
    %3694 = vmatpush1.bf16.msra.mxu0 %v3297
    %3695 = vmatprep.mubr.bf16.mxu0 %v2681
    %3696 = vmatmul.mubr.bf16.gmra.mrb[0].mxu0 %v2680
    %v3697 = vpop.f32.mrb[0].mxu0
    %v3698 = vadd.f32 %v3657, %v3697
    %v3699 = vpop.f32.mrb[0].mxu0
    %v3700 = vpop.f32.mrb[0].mxu0
    %v3701 = vadd.f32 %v3660, %v3700
    %v3702 = vpop.f32.mrb[0].mxu0
    %3703 = vdwg.mxu0
    %3704 = vmatprep.subr.bf16.mxu0 0
    %3705 = vmatpush1.bf16.msra.mxu0 %v3298
    %3706 = vmatprep.subr.bf16.mxu0 0
    %3707 = vmatpush1.bf16.msra.mxu0 %v3299
    %3708 = vmatprep.subr.bf16.mxu0 0
    %3709 = vmatpush1.bf16.msra.mxu0 %v3300
    %3710 = vmatprep.subr.bf16.mxu0 0
    %3711 = vmatpush1.bf16.msra.mxu0 %v3301
    %3712 = vmatprep.subr.bf16.mxu0 0
    %3713 = vmatpush1.bf16.msra.mxu0 %v3302
    %3714 = vmatprep.subr.bf16.mxu0 0
    %3715 = vmatpush1.bf16.msra.mxu0 %v3303
    %3716 = vmatprep.subr.bf16.mxu0 0
    %3717 = vmatpush1.bf16.msra.mxu0 %v3304
    %3718 = vmatprep.subr.bf16.mxu0 0
    %3719 = vmatpush1.bf16.msra.mxu0 %v3305
    %3720 = vmatprep.subr.bf16.mxu0 0
    %3721 = vmatpush1.bf16.msra.mxu0 %v3306
    %3722 = vmatprep.subr.bf16.mxu0 0
    %3723 = vmatpush1.bf16.msra.mxu0 %v3307
    %3724 = vmatprep.subr.bf16.mxu0 0
    %3725 = vmatpush1.bf16.msra.mxu0 %v3308
    %3726 = vmatprep.subr.bf16.mxu0 0
    %3727 = vmatpush1.bf16.msra.mxu0 %v3309
    %3728 = vmatprep.subr.bf16.mxu0 0
    %3729 = vmatpush1.bf16.msra.mxu0 %v3310
    %3730 = vmatprep.subr.bf16.mxu0 0
    %3731 = vmatpush1.bf16.msra.mxu0 %v3311
    %3732 = vmatprep.subr.bf16.mxu0 0
    %3733 = vmatpush1.bf16.msra.mxu0 %v3312
    %3734 = vmatprep.subr.bf16.mxu0 0
    %3735 = vmatpush1.bf16.msra.mxu0 %v3313
    %3736 = vmatprep.mubr.bf16.mxu0 %v2683
    %3737 = vmatmul.mubr.bf16.gmra.mrb[0].mxu0 %v2682
    %v3738 = vpop.f32.mrb[0].mxu0
    %v3739 = vadd.f32 %v3698, %v3738
    %v3740 = vpop.f32.mrb[0].mxu0
    %v3741 = vpop.f32.mrb[0].mxu0
    %v3742 = vadd.f32 %v3701, %v3741
    %v3743 = vpop.f32.mrb[0].mxu0
    %3744 = vdwg.mxu0
    %3745 = vmatprep.subr.bf16.mxu0 0
    %3746 = vmatpush1.bf16.msra.mxu0 %v3314
    %3747 = vmatprep.subr.bf16.mxu0 0
    %3748 = vmatpush1.bf16.msra.mxu0 %v3315
    %3749 = vmatprep.subr.bf16.mxu0 0
    %3750 = vmatpush1.bf16.msra.mxu0 %v3316
    %3751 = vmatprep.subr.bf16.mxu0 0
    %3752 = vmatpush1.bf16.msra.mxu0 %v3317
    %3753 = vmatprep.subr.bf16.mxu0 0
    %3754 = vmatpush1.bf16.msra.mxu0 %v3318
    %3755 = vmatprep.subr.bf16.mxu0 0
    %3756 = vmatpush1.bf16.msra.mxu0 %v3319
    %3757 = vmatprep.subr.bf16.mxu0 0
    %3758 = vmatpush1.bf16.msra.mxu0 %v3320
    %3759 = vmatprep.subr.bf16.mxu0 0
    %3760 = vmatpush1.bf16.msra.mxu0 %v3321
    %3761 = vmatprep.subr.bf16.mxu0 0
    %3762 = vmatpush1.bf16.msra.mxu0 %v3322
    %3763 = vmatprep.subr.bf16.mxu0 0
    %3764 = vmatpush1.bf16.msra.mxu0 %v3323
    %3765 = vmatprep.subr.bf16.mxu0 0
    %3766 = vmatpush1.bf16.msra.mxu0 %v3324
    %3767 = vmatprep.subr.bf16.mxu0 0
    %3768 = vmatpush1.bf16.msra.mxu0 %v3325
    %3769 = vmatprep.subr.bf16.mxu0 0
    %3770 = vmatpush1.bf16.msra.mxu0 %v3326
    %3771 = vmatprep.subr.bf16.mxu0 0
    %3772 = vmatpush1.bf16.msra.mxu0 %v3327
    %3773 = vmatprep.subr.bf16.mxu0 0
    %3774 = vmatpush1.bf16.msra.mxu0 %v3328
    %3775 = vmatprep.subr.bf16.mxu0 0
    %3776 = vmatpush1.bf16.msra.mxu0 %v3329
    %3777 = vmatprep.mubr.bf16.mxu0 %v2685
    %3778 = vmatmul.mubr.bf16.gmra.mrb[0].mxu0 %v2684
    %v3779 = vpop.f32.mrb[0].mxu0
    %v3780 = vadd.f32 %v3739, %v3779
    %v3781 = vpop.f32.mrb[0].mxu0
    %v3782 = vpop.f32.mrb[0].mxu0
    %v3783 = vadd.f32 %v3742, %v3782
    %v3784 = vpop.f32.mrb[0].mxu0
    %3785 = vdwg.mxu0
    %v3786 = vadd.f32 %v1569, %v3780
    %v3787 = vadd.f32 %v1570, %v3783
    %3788 = vadd.xlane.f32.xlu0 %v3786
    %v3789 = vpop.xlane.xlu0 %3788
    %3790 = vadd.xlane.f32.xlu0 %v3787
    %v3791 = vpop.xlane.xlu0 %3790
    %v3792 = vmul.f32 %v3789, %v1540
    %v3793 = vmul.f32 %v3791, %v1540
    %v3794 = vsub.f32 %v3786, %v3792
    %v3795 = vsub.f32 %v3787, %v3793
    %v3796 = vmul.f32 %v3794, %v3794
    %v3797 = vmul.f32 %v3795, %v3795
    %3798 = vadd.xlane.f32.xlu0 %v3796
    %v3799 = vpop.xlane.xlu0 %3798
    %3800 = vadd.xlane.f32.xlu0 %v3797
    %v3801 = vpop.xlane.xlu0 %3800
    %v3802 = vmul.f32 %v3799, %v1540
    %v3803 = vmul.f32 %v3801, %v1540
    %v3804 = vadd.f32 %v3802, 1e-05
    %v3805 = vadd.f32 %v3803, 1e-05
    %v3806 = vrsqrt.pop %v3804
    %v3807 = vrsqrt.pop %v3805
    %v3808 = vmul.f32 %v3794, %v3806
    %v3809 = vmul.f32 %v3795, %v3807
    %v3810 = vlaneseq
    %v3811 = vshrl.u32 %v3810, 7
    %v3812 = vsub.s32 5, %v3811
    %v3813 = vrot.slane %v141, %v3812
    %v3814 = vmul.f32 %v3808, %v3813
    %v3815 = vmul.f32 %v3809, %v3813
    %v3816 = vlaneseq
    %v3817 = vshrl.u32 %v3816, 7
    %v3818 = vsub.s32 6, %v3817
    %v3819 = vrot.slane %v141, %v3818
    %v3820 = vadd.f32 %v3814, %v3819
    %v3821 = vadd.f32 %v3815, %v3819
    %v3822 = vpack.c.bf16 %v3821, %v3820
    %3823 = vmatprep.subr.bf16.mxu0 %v834
    %3824 = vmatpush1.bf16.msra.mxu0 %v833
    %3825 = vmatprep.subr.bf16.mxu0 %v837
    %3826 = vmatpush1.bf16.msra.mxu0 %v836
    %3827 = vmatprep.subr.bf16.mxu0 %v840
    %3828 = vmatpush1.bf16.msra.mxu0 %v839
    %3829 = vmatprep.subr.bf16.mxu0 %v843
    %3830 = vmatpush1.bf16.msra.mxu0 %v842
    %3831 = vmatprep.subr.bf16.mxu0 %v846
    %3832 = vmatpush1.bf16.msra.mxu0 %v845
    %3833 = vmatprep.subr.bf16.mxu0 %v849
    %3834 = vmatpush1.bf16.msra.mxu0 %v848
    %3835 = vmatprep.subr.bf16.mxu0 %v852
    %3836 = vmatpush1.bf16.msra.mxu0 %v851
    %3837 = vmatprep.subr.bf16.mxu0 %v855
    %3838 = vmatpush1.bf16.msra.mxu0 %v854
    %3839 = vmatprep.subr.bf16.mxu0 0
    %3840 = vmatpush1.bf16.msra.mxu0 0
    %3841 = vmatprep.subr.bf16.mxu0 0
    %3842 = vmatpush1.bf16.msra.mxu0 0
    %3843 = vmatprep.subr.bf16.mxu0 0
    %3844 = vmatpush1.bf16.msra.mxu0 0
    %3845 = vmatprep.subr.bf16.mxu0 0
    %3846 = vmatpush1.bf16.msra.mxu0 0
    %3847 = vmatprep.subr.bf16.mxu0 0
    %3848 = vmatpush1.bf16.msra.mxu0 0
    %3849 = vmatprep.subr.bf16.mxu0 0
    %3850 = vmatpush1.bf16.msra.mxu0 0
    %3851 = vmatprep.subr.bf16.mxu0 0
    %3852 = vmatpush1.bf16.msra.mxu0 0
    %3853 = vmatprep.subr.bf16.mxu0 0
    %3854 = vmatpush1.bf16.msra.mxu0 0
    %3855 = vmatprep.mubr.bf16.mxu0 0
    %3856 = vmatmul.mubr.bf16.gmra.mrb[0].mxu0 %v3822
    %v3857 = vpop.f32.mrb[0].mxu0
    %v3858 = vadd.f32 0.0, %v3857
    %v3859 = vpop.f32.mrb[0].mxu0
    %v3860 = vadd.f32 0.0, %v3859
    %v3861 = vpop.f32.mrb[0].mxu0
    %v3862 = vadd.f32 0.0, %v3861
    %v3863 = vpop.f32.mrb[0].mxu0
    %v3864 = vadd.f32 0.0, %v3863
    %3865 = vdwg.mxu0
    %3866 = vmatprep.subr.bf16.mxu0 0
    %3867 = vmatpush1.bf16.msra.mxu0 %v835
    %3868 = vmatprep.subr.bf16.mxu0 0
    %3869 = vmatpush1.bf16.msra.mxu0 %v838
    %3870 = vmatprep.subr.bf16.mxu0 0
    %3871 = vmatpush1.bf16.msra.mxu0 %v841
    %3872 = vmatprep.subr.bf16.mxu0 0
    %3873 = vmatpush1.bf16.msra.mxu0 %v844
    %3874 = vmatprep.subr.bf16.mxu0 0
    %3875 = vmatpush1.bf16.msra.mxu0 %v847
    %3876 = vmatprep.subr.bf16.mxu0 0
    %3877 = vmatpush1.bf16.msra.mxu0 %v850
    %3878 = vmatprep.subr.bf16.mxu0 0
    %3879 = vmatpush1.bf16.msra.mxu0 %v853
    %3880 = vmatprep.subr.bf16.mxu0 0
    %3881 = vmatpush1.bf16.msra.mxu0 %v856
    %3882 = vmatprep.subr.bf16.mxu0 0
    %3883 = vmatpush1.bf16.msra.mxu0 0
    %3884 = vmatprep.subr.bf16.mxu0 0
    %3885 = vmatpush1.bf16.msra.mxu0 0
    %3886 = vmatprep.subr.bf16.mxu0 0
    %3887 = vmatpush1.bf16.msra.mxu0 0
    %3888 = vmatprep.subr.bf16.mxu0 0
    %3889 = vmatpush1.bf16.msra.mxu0 0
    %3890 = vmatprep.subr.bf16.mxu0 0
    %3891 = vmatpush1.bf16.msra.mxu0 0
    %3892 = vmatprep.subr.bf16.mxu0 0
    %3893 = vmatpush1.bf16.msra.mxu0 0
    %3894 = vmatprep.subr.bf16.mxu0 0
    %3895 = vmatpush1.bf16.msra.mxu0 0
    %3896 = vmatprep.subr.bf16.mxu0 0
    %3897 = vmatpush1.bf16.msra.mxu0 0
    %3898 = vmatprep.mubr.bf16.mxu0 0
    %3899 = vmatmul.mubr.bf16.gmra.mrb[0].mxu0 %v3822
    %v3900 = vpop.f32.mrb[0].mxu0
    %v3901 = vadd.f32 0.0, %v3900
    %v3902 = vpop.f32.mrb[0].mxu0
    %v3903 = vpop.f32.mrb[0].mxu0
    %v3904 = vadd.f32 0.0, %v3903
    %v3905 = vpop.f32.mrb[0].mxu0
    %3906 = vdwg.mxu0
    %v3907 = vadd.f32 %v3858, %v968
    %v3908 = vadd.f32 %v3862, %v968
    %v3909 = vadd.f32 %v3860, %v974
    %v3910 = vadd.f32 %v3864, %v974
    %v3911 = vadd.f32 %v3901, %v980
    %v3912 = vadd.f32 %v3904, %v980
    %v3913 = vpack.c.bf16 %v3907, %v3907
    %v3914 = vpack.c.bf16 %v3909, %v3909
    %v3916 = vsel %vm985, %v3913, 0
    %v3919 = vsel %vm985, %v3914, 0
    %3921 = vmatprep.subr.bf16.mxu0 0
    %3922 = vmatpush1.bf16.xpose.msra.mxu0 %v3919
    %3923 = vmatprep.subr.bf16.mxu0 0
    %3924 = vmatpush1.bf16.xpose.msra.mxu0 0
    %3925 = vmatprep.subr.bf16.mxu0 0
    %3926 = vmatpush1.bf16.xpose.msra.mxu0 0
    %3927 = vmatprep.subr.bf16.mxu0 0
    %3928 = vmatpush1.bf16.xpose.msra.mxu0 0
    %3929 = vmatprep.subr.bf16.mxu0 0
    %3930 = vmatpush1.bf16.xpose.msra.mxu0 0
    %3931 = vmatprep.subr.bf16.mxu0 0
    %3932 = vmatpush1.bf16.xpose.msra.mxu0 0
    %3933 = vmatprep.subr.bf16.mxu0 0
    %3934 = vmatpush1.bf16.xpose.msra.mxu0 0
    %3935 = vmatprep.subr.bf16.mxu0 0
    %3936 = vmatpush1.bf16.xpose.msra.mxu0 0
    %3937 = vmatprep.subr.bf16.mxu0 0
    %3938 = vmatpush1.bf16.xpose.msra.mxu0 0
    %3939 = vmatprep.subr.bf16.mxu0 0
    %3940 = vmatpush1.bf16.xpose.msra.mxu0 0
    %3941 = vmatprep.subr.bf16.mxu0 0
    %3942 = vmatpush1.bf16.xpose.msra.mxu0 0
    %3943 = vmatprep.subr.bf16.mxu0 0
    %3944 = vmatpush1.bf16.xpose.msra.mxu0 0
    %3945 = vmatprep.subr.bf16.mxu0 0
    %3946 = vmatpush1.bf16.xpose.msra.mxu0 0
    %3947 = vmatprep.subr.bf16.mxu0 0
    %3948 = vmatpush1.bf16.xpose.msra.mxu0 0
    %3949 = vmatprep.subr.bf16.mxu0 0
    %3950 = vmatpush1.bf16.xpose.msra.mxu0 0
    %3951 = vmatprep.subr.bf16.mxu0 0
    %3952 = vmatpush1.bf16.xpose.msra.mxu0 0
    %3953 = vmatprep.mubr.bf16.mxu0 0
    %3954 = vmatmul.mubr.bf16.gmra.mrb[0].mxu0 %v3916
    %v3955 = vpop.f32.mrb[0].mxu0
    %v3956 = vadd.f32 0.0, %v3955
    %v3957 = vpop.f32.mrb[0].mxu0
    %v3958 = vpop.f32.mrb[0].mxu0
    %v3959 = vpop.f32.mrb[0].mxu0
    %3960 = vdwg.mxu0
    %v3961 = vmul.f32 %v3956, 0.125
    %v3962 = vsel %vm1033, %v3961, -inf
    %3963 = vmax.xlane.f32.xlu0 %v3962
    %v3964 = vpop.xlane.xlu0 %3963
    %v3965 = vsub.f32 %v3961, %v3964
    %v3966 = vmul.f32 %v3965, 1.442695
    %v3967 = vpow.pop %v3966
    %v3968 = vsel %vm1033, %v3967, 0.0
    %3969 = vadd.xlane.f32.xlu0 %v3968
    %v3970 = vpop.xlane.xlu0 %3969
    %v3971 = vrcp.pop %v3970
    %v3972 = vmul.f32 %v3967, %v3971
    %v3973 = vsel %vm1049, %v3911, 0.0
    %v3974 = vpack.c.bf16 %v3972, %v3972
    %v3975 = vpack.c.bf16 %v3973, %v3973
    %3977 = vrot.lane.b32.xlu0 %v3913, 64
    %v3978 = vpop.permute.xlu0 %3977
    %3980 = vrot.lane.b32.xlu0 %v3914, 64
    %v3981 = vpop.permute.xlu0 %3980
    %v3983 = vsel %vm985, %v3978, 0
    %v3986 = vsel %vm985, %v3981, 0
    %3988 = vmatprep.subr.bf16.mxu0 0
    %3989 = vmatpush1.bf16.xpose.msra.mxu0 %v3986
    %3990 = vmatprep.subr.bf16.mxu0 0
    %3991 = vmatpush1.bf16.xpose.msra.mxu0 0
    %3992 = vmatprep.subr.bf16.mxu0 0
    %3993 = vmatpush1.bf16.xpose.msra.mxu0 0
    %3994 = vmatprep.subr.bf16.mxu0 0
    %3995 = vmatpush1.bf16.xpose.msra.mxu0 0
    %3996 = vmatprep.subr.bf16.mxu0 0
    %3997 = vmatpush1.bf16.xpose.msra.mxu0 0
    %3998 = vmatprep.subr.bf16.mxu0 0
    %3999 = vmatpush1.bf16.xpose.msra.mxu0 0
    %4000 = vmatprep.subr.bf16.mxu0 0
    %4001 = vmatpush1.bf16.xpose.msra.mxu0 0
    %4002 = vmatprep.subr.bf16.mxu0 0
    %4003 = vmatpush1.bf16.xpose.msra.mxu0 0
    %4004 = vmatprep.subr.bf16.mxu0 0
    %4005 = vmatpush1.bf16.xpose.msra.mxu0 0
    %4006 = vmatprep.subr.bf16.mxu0 0
    %4007 = vmatpush1.bf16.xpose.msra.mxu0 0
    %4008 = vmatprep.subr.bf16.mxu0 0
    %4009 = vmatpush1.bf16.xpose.msra.mxu0 0
    %4010 = vmatprep.subr.bf16.mxu0 0
    %4011 = vmatpush1.bf16.xpose.msra.mxu0 0
    %4012 = vmatprep.subr.bf16.mxu0 0
    %4013 = vmatpush1.bf16.xpose.msra.mxu0 0
    %4014 = vmatprep.subr.bf16.mxu0 0
    %4015 = vmatpush1.bf16.xpose.msra.mxu0 0
    %4016 = vmatprep.subr.bf16.mxu0 0
    %4017 = vmatpush1.bf16.xpose.msra.mxu0 0
    %4018 = vmatprep.subr.bf16.mxu0 0
    %4019 = vmatpush1.bf16.xpose.msra.mxu0 0
    %4020 = vmatprep.mubr.bf16.mxu0 0
    %4021 = vmatmul.mubr.bf16.gmra.mrb[0].mxu0 %v3983
    %v4022 = vpop.f32.mrb[0].mxu0
    %v4023 = vadd.f32 0.0, %v4022
    %v4024 = vpop.f32.mrb[0].mxu0
    %v4025 = vpop.f32.mrb[0].mxu0
    %v4026 = vpop.f32.mrb[0].mxu0
    %4027 = vdwg.mxu0
    %v4028 = vmul.f32 %v4023, 0.125
    %v4029 = vsel %vm1033, %v4028, -inf
    %4030 = vmax.xlane.f32.xlu0 %v4029
    %v4031 = vpop.xlane.xlu0 %4030
    %v4032 = vsub.f32 %v4028, %v4031
    %v4033 = vmul.f32 %v4032, 1.442695
    %v4034 = vpow.pop %v4033
    %v4035 = vsel %vm1033, %v4034, 0.0
    %4036 = vadd.xlane.f32.xlu0 %v4035
    %v4037 = vpop.xlane.xlu0 %4036
    %v4038 = vrcp.pop %v4037
    %v4039 = vmul.f32 %v4034, %v4038
    %v4040 = vsel %vm1121, %v3911, 0.0
    %v4041 = vpack.c.bf16 %v4039, %v4039
    %v4042 = vpack.c.bf16 %v4040, %v4040
    %v4044 = vsel %vm1033, %v4041, 0
    %v4047 = vsel %vm1128, %v4042, 0
    %4049 = vmatprep.subr.bf16.mxu0 0
    %4050 = vmatpush1.bf16.msra.mxu0 %v4047
    %4051 = vmatprep.subr.bf16.mxu0 0
    %4052 = vmatpush1.bf16.msra.mxu0 0
    %4053 = vmatprep.subr.bf16.mxu0 0
    %4054 = vmatpush1.bf16.msra.mxu0 0
    %4055 = vmatprep.subr.bf16.mxu0 0
    %4056 = vmatpush1.bf16.msra.mxu0 0
    %4057 = vmatprep.subr.bf16.mxu0 0
    %4058 = vmatpush1.bf16.msra.mxu0 0
    %4059 = vmatprep.subr.bf16.mxu0 0
    %4060 = vmatpush1.bf16.msra.mxu0 0
    %4061 = vmatprep.subr.bf16.mxu0 0
    %4062 = vmatpush1.bf16.msra.mxu0 0
    %4063 = vmatprep.subr.bf16.mxu0 0
    %4064 = vmatpush1.bf16.msra.mxu0 0
    %4065 = vmatprep.subr.bf16.mxu0 0
    %4066 = vmatpush1.bf16.msra.mxu0 0
    %4067 = vmatprep.subr.bf16.mxu0 0
    %4068 = vmatpush1.bf16.msra.mxu0 0
    %4069 = vmatprep.subr.bf16.mxu0 0
    %4070 = vmatpush1.bf16.msra.mxu0 0
    %4071 = vmatprep.subr.bf16.mxu0 0
    %4072 = vmatpush1.bf16.msra.mxu0 0
    %4073 = vmatprep.subr.bf16.mxu0 0
    %4074 = vmatpush1.bf16.msra.mxu0 0
    %4075 = vmatprep.subr.bf16.mxu0 0
    %4076 = vmatpush1.bf16.msra.mxu0 0
    %4077 = vmatprep.subr.bf16.mxu0 0
    %4078 = vmatpush1.bf16.msra.mxu0 0
    %4079 = vmatprep.subr.bf16.mxu0 0
    %4080 = vmatpush1.bf16.msra.mxu0 0
    %4081 = vmatprep.mubr.bf16.mxu0 0
    %4082 = vmatmul.mubr.bf16.gmra.mrb[0].mxu0 %v4044
    %v4083 = vpop.f32.mrb[0].mxu0
    %v4084 = vadd.f32 0.0, %v4083
    %v4085 = vpop.f32.mrb[0].mxu0
    %v4086 = vpop.f32.mrb[0].mxu0
    %v4087 = vpop.f32.mrb[0].mxu0
    %4088 = vdwg.mxu0
    %v4090 = vsel %vm1033, %v3974, 0
    %v4093 = vsel %vm1128, %v3975, 0
    %4095 = vmatprep.subr.bf16.mxu0 0
    %4096 = vmatpush1.bf16.msra.mxu0 %v4093
    %4097 = vmatprep.subr.bf16.mxu0 0
    %4098 = vmatpush1.bf16.msra.mxu0 0
    %4099 = vmatprep.subr.bf16.mxu0 0
    %4100 = vmatpush1.bf16.msra.mxu0 0
    %4101 = vmatprep.subr.bf16.mxu0 0
    %4102 = vmatpush1.bf16.msra.mxu0 0
    %4103 = vmatprep.subr.bf16.mxu0 0
    %4104 = vmatpush1.bf16.msra.mxu0 0
    %4105 = vmatprep.subr.bf16.mxu0 0
    %4106 = vmatpush1.bf16.msra.mxu0 0
    %4107 = vmatprep.subr.bf16.mxu0 0
    %4108 = vmatpush1.bf16.msra.mxu0 0
    %4109 = vmatprep.subr.bf16.mxu0 0
    %4110 = vmatpush1.bf16.msra.mxu0 0
    %4111 = vmatprep.subr.bf16.mxu0 0
    %4112 = vmatpush1.bf16.msra.mxu0 0
    %4113 = vmatprep.subr.bf16.mxu0 0
    %4114 = vmatpush1.bf16.msra.mxu0 0
    %4115 = vmatprep.subr.bf16.mxu0 0
    %4116 = vmatpush1.bf16.msra.mxu0 0
    %4117 = vmatprep.subr.bf16.mxu0 0
    %4118 = vmatpush1.bf16.msra.mxu0 0
    %4119 = vmatprep.subr.bf16.mxu0 0
    %4120 = vmatpush1.bf16.msra.mxu0 0
    %4121 = vmatprep.subr.bf16.mxu0 0
    %4122 = vmatpush1.bf16.msra.mxu0 0
    %4123 = vmatprep.subr.bf16.mxu0 0
    %4124 = vmatpush1.bf16.msra.mxu0 0
    %4125 = vmatprep.subr.bf16.mxu0 0
    %4126 = vmatpush1.bf16.msra.mxu0 0
    %4127 = vmatprep.mubr.bf16.mxu0 0
    %4128 = vmatmul.mubr.bf16.gmra.mrb[0].mxu0 %v4090
    %v4129 = vpop.f32.mrb[0].mxu0
    %v4130 = vadd.f32 %v4084, %v4129
    %v4131 = vpop.f32.mrb[0].mxu0
    %v4132 = vpop.f32.mrb[0].mxu0
    %v4133 = vpop.f32.mrb[0].mxu0
    %4134 = vdwg.mxu0
    %v4135 = vpack.c.bf16 %v3908, %v3908
    %v4136 = vpack.c.bf16 %v3910, %v3910
    %v4138 = vsel %vm985, %v4135, 0
    %v4141 = vsel %vm985, %v4136, 0
    %4143 = vmatprep.subr.bf16.mxu0 0
    %4144 = vmatpush1.bf16.xpose.msra.mxu0 %v4141
    %4145 = vmatprep.subr.bf16.mxu0 0
    %4146 = vmatpush1.bf16.xpose.msra.mxu0 0
    %4147 = vmatprep.subr.bf16.mxu0 0
    %4148 = vmatpush1.bf16.xpose.msra.mxu0 0
    %4149 = vmatprep.subr.bf16.mxu0 0
    %4150 = vmatpush1.bf16.xpose.msra.mxu0 0
    %4151 = vmatprep.subr.bf16.mxu0 0
    %4152 = vmatpush1.bf16.xpose.msra.mxu0 0
    %4153 = vmatprep.subr.bf16.mxu0 0
    %4154 = vmatpush1.bf16.xpose.msra.mxu0 0
    %4155 = vmatprep.subr.bf16.mxu0 0
    %4156 = vmatpush1.bf16.xpose.msra.mxu0 0
    %4157 = vmatprep.subr.bf16.mxu0 0
    %4158 = vmatpush1.bf16.xpose.msra.mxu0 0
    %4159 = vmatprep.subr.bf16.mxu0 0
    %4160 = vmatpush1.bf16.xpose.msra.mxu0 0
    %4161 = vmatprep.subr.bf16.mxu0 0
    %4162 = vmatpush1.bf16.xpose.msra.mxu0 0
    %4163 = vmatprep.subr.bf16.mxu0 0
    %4164 = vmatpush1.bf16.xpose.msra.mxu0 0
    %4165 = vmatprep.subr.bf16.mxu0 0
    %4166 = vmatpush1.bf16.xpose.msra.mxu0 0
    %4167 = vmatprep.subr.bf16.mxu0 0
    %4168 = vmatpush1.bf16.xpose.msra.mxu0 0
    %4169 = vmatprep.subr.bf16.mxu0 0
    %4170 = vmatpush1.bf16.xpose.msra.mxu0 0
    %4171 = vmatprep.subr.bf16.mxu0 0
    %4172 = vmatpush1.bf16.xpose.msra.mxu0 0
    %4173 = vmatprep.subr.bf16.mxu0 0
    %4174 = vmatpush1.bf16.xpose.msra.mxu0 0
    %4175 = vmatprep.mubr.bf16.mxu0 0
    %4176 = vmatmul.mubr.bf16.gmra.mrb[0].mxu0 %v4138
    %v4177 = vpop.f32.mrb[0].mxu0
    %v4178 = vadd.f32 0.0, %v4177
    %v4179 = vpop.f32.mrb[0].mxu0
    %v4180 = vpop.f32.mrb[0].mxu0
    %v4181 = vpop.f32.mrb[0].mxu0
    %4182 = vdwg.mxu0
    %v4183 = vmul.f32 %v4178, 0.125
    %v4184 = vsel %vm1033, %v4183, -inf
    %4185 = vmax.xlane.f32.xlu0 %v4184
    %v4186 = vpop.xlane.xlu0 %4185
    %v4187 = vsub.f32 %v4183, %v4186
    %v4188 = vmul.f32 %v4187, 1.442695
    %v4189 = vpow.pop %v4188
    %v4190 = vsel %vm1033, %v4189, 0.0
    %4191 = vadd.xlane.f32.xlu0 %v4190
    %v4192 = vpop.xlane.xlu0 %4191
    %v4193 = vrcp.pop %v4192
    %v4194 = vmul.f32 %v4189, %v4193
    %v4195 = vsel %vm1049, %v3912, 0.0
    %v4196 = vpack.c.bf16 %v4194, %v4194
    %v4197 = vpack.c.bf16 %v4195, %v4195
    %4199 = vrot.lane.b32.xlu0 %v4135, 64
    %v4200 = vpop.permute.xlu0 %4199
    %4202 = vrot.lane.b32.xlu0 %v4136, 64
    %v4203 = vpop.permute.xlu0 %4202
    %v4205 = vsel %vm985, %v4200, 0
    %v4208 = vsel %vm985, %v4203, 0
    %4210 = vmatprep.subr.bf16.mxu0 0
    %4211 = vmatpush1.bf16.xpose.msra.mxu0 %v4208
    %4212 = vmatprep.subr.bf16.mxu0 0
    %4213 = vmatpush1.bf16.xpose.msra.mxu0 0
    %4214 = vmatprep.subr.bf16.mxu0 0
    %4215 = vmatpush1.bf16.xpose.msra.mxu0 0
    %4216 = vmatprep.subr.bf16.mxu0 0
    %4217 = vmatpush1.bf16.xpose.msra.mxu0 0
    %4218 = vmatprep.subr.bf16.mxu0 0
    %4219 = vmatpush1.bf16.xpose.msra.mxu0 0
    %4220 = vmatprep.subr.bf16.mxu0 0
    %4221 = vmatpush1.bf16.xpose.msra.mxu0 0
    %4222 = vmatprep.subr.bf16.mxu0 0
    %4223 = vmatpush1.bf16.xpose.msra.mxu0 0
    %4224 = vmatprep.subr.bf16.mxu0 0
    %4225 = vmatpush1.bf16.xpose.msra.mxu0 0
    %4226 = vmatprep.subr.bf16.mxu0 0
    %4227 = vmatpush1.bf16.xpose.msra.mxu0 0
    %4228 = vmatprep.subr.bf16.mxu0 0
    %4229 = vmatpush1.bf16.xpose.msra.mxu0 0
    %4230 = vmatprep.subr.bf16.mxu0 0
    %4231 = vmatpush1.bf16.xpose.msra.mxu0 0
    %4232 = vmatprep.subr.bf16.mxu0 0
    %4233 = vmatpush1.bf16.xpose.msra.mxu0 0
    %4234 = vmatprep.subr.bf16.mxu0 0
    %4235 = vmatpush1.bf16.xpose.msra.mxu0 0
    %4236 = vmatprep.subr.bf16.mxu0 0
    %4237 = vmatpush1.bf16.xpose.msra.mxu0 0
    %4238 = vmatprep.subr.bf16.mxu0 0
    %4239 = vmatpush1.bf16.xpose.msra.mxu0 0
    %4240 = vmatprep.subr.bf16.mxu0 0
    %4241 = vmatpush1.bf16.xpose.msra.mxu0 0
    %4242 = vmatprep.mubr.bf16.mxu0 0
    %4243 = vmatmul.mubr.bf16.gmra.mrb[0].mxu0 %v4205
    %v4244 = vpop.f32.mrb[0].mxu0
    %v4245 = vadd.f32 0.0, %v4244
    %v4246 = vpop.f32.mrb[0].mxu0
    %v4247 = vpop.f32.mrb[0].mxu0
    %v4248 = vpop.f32.mrb[0].mxu0
    %4249 = vdwg.mxu0
    %v4250 = vmul.f32 %v4245, 0.125
    %v4251 = vsel %vm1033, %v4250, -inf
    %4252 = vmax.xlane.f32.xlu0 %v4251
    %v4253 = vpop.xlane.xlu0 %4252
    %v4254 = vsub.f32 %v4250, %v4253
    %v4255 = vmul.f32 %v4254, 1.442695
    %v4256 = vpow.pop %v4255
    %v4257 = vsel %vm1033, %v4256, 0.0
    %4258 = vadd.xlane.f32.xlu0 %v4257
    %v4259 = vpop.xlane.xlu0 %4258
    %v4260 = vrcp.pop %v4259
    %v4261 = vmul.f32 %v4256, %v4260
    %v4262 = vsel %vm1121, %v3912, 0.0
    %v4263 = vpack.c.bf16 %v4261, %v4261
    %v4264 = vpack.c.bf16 %v4262, %v4262
    %v4266 = vsel %vm1033, %v4263, 0
    %v4269 = vsel %vm1128, %v4264, 0
    %4271 = vmatprep.subr.bf16.mxu0 0
    %4272 = vmatpush1.bf16.msra.mxu0 %v4269
    %4273 = vmatprep.subr.bf16.mxu0 0
    %4274 = vmatpush1.bf16.msra.mxu0 0
    %4275 = vmatprep.subr.bf16.mxu0 0
    %4276 = vmatpush1.bf16.msra.mxu0 0
    %4277 = vmatprep.subr.bf16.mxu0 0
    %4278 = vmatpush1.bf16.msra.mxu0 0
    %4279 = vmatprep.subr.bf16.mxu0 0
    %4280 = vmatpush1.bf16.msra.mxu0 0
    %4281 = vmatprep.subr.bf16.mxu0 0
    %4282 = vmatpush1.bf16.msra.mxu0 0
    %4283 = vmatprep.subr.bf16.mxu0 0
    %4284 = vmatpush1.bf16.msra.mxu0 0
    %4285 = vmatprep.subr.bf16.mxu0 0
    %4286 = vmatpush1.bf16.msra.mxu0 0
    %4287 = vmatprep.subr.bf16.mxu0 0
    %4288 = vmatpush1.bf16.msra.mxu0 0
    %4289 = vmatprep.subr.bf16.mxu0 0
    %4290 = vmatpush1.bf16.msra.mxu0 0
    %4291 = vmatprep.subr.bf16.mxu0 0
    %4292 = vmatpush1.bf16.msra.mxu0 0
    %4293 = vmatprep.subr.bf16.mxu0 0
    %4294 = vmatpush1.bf16.msra.mxu0 0
    %4295 = vmatprep.subr.bf16.mxu0 0
    %4296 = vmatpush1.bf16.msra.mxu0 0
    %4297 = vmatprep.subr.bf16.mxu0 0
    %4298 = vmatpush1.bf16.msra.mxu0 0
    %4299 = vmatprep.subr.bf16.mxu0 0
    %4300 = vmatpush1.bf16.msra.mxu0 0
    %4301 = vmatprep.subr.bf16.mxu0 0
    %4302 = vmatpush1.bf16.msra.mxu0 0
    %4303 = vmatprep.mubr.bf16.mxu0 0
    %4304 = vmatmul.mubr.bf16.gmra.mrb[0].mxu0 %v4266
    %v4305 = vpop.f32.mrb[0].mxu0
    %v4306 = vadd.f32 0.0, %v4305
    %v4307 = vpop.f32.mrb[0].mxu0
    %v4308 = vpop.f32.mrb[0].mxu0
    %v4309 = vpop.f32.mrb[0].mxu0
    %4310 = vdwg.mxu0
    %v4312 = vsel %vm1033, %v4196, 0
    %v4315 = vsel %vm1128, %v4197, 0
    %4317 = vmatprep.subr.bf16.mxu0 0
    %4318 = vmatpush1.bf16.msra.mxu0 %v4315
    %4319 = vmatprep.subr.bf16.mxu0 0
    %4320 = vmatpush1.bf16.msra.mxu0 0
    %4321 = vmatprep.subr.bf16.mxu0 0
    %4322 = vmatpush1.bf16.msra.mxu0 0
    %4323 = vmatprep.subr.bf16.mxu0 0
    %4324 = vmatpush1.bf16.msra.mxu0 0
    %4325 = vmatprep.subr.bf16.mxu0 0
    %4326 = vmatpush1.bf16.msra.mxu0 0
    %4327 = vmatprep.subr.bf16.mxu0 0
    %4328 = vmatpush1.bf16.msra.mxu0 0
    %4329 = vmatprep.subr.bf16.mxu0 0
    %4330 = vmatpush1.bf16.msra.mxu0 0
    %4331 = vmatprep.subr.bf16.mxu0 0
    %4332 = vmatpush1.bf16.msra.mxu0 0
    %4333 = vmatprep.subr.bf16.mxu0 0
    %4334 = vmatpush1.bf16.msra.mxu0 0
    %4335 = vmatprep.subr.bf16.mxu0 0
    %4336 = vmatpush1.bf16.msra.mxu0 0
    %4337 = vmatprep.subr.bf16.mxu0 0
    %4338 = vmatpush1.bf16.msra.mxu0 0
    %4339 = vmatprep.subr.bf16.mxu0 0
    %4340 = vmatpush1.bf16.msra.mxu0 0
    %4341 = vmatprep.subr.bf16.mxu0 0
    %4342 = vmatpush1.bf16.msra.mxu0 0
    %4343 = vmatprep.subr.bf16.mxu0 0
    %4344 = vmatpush1.bf16.msra.mxu0 0
    %4345 = vmatprep.subr.bf16.mxu0 0
    %4346 = vmatpush1.bf16.msra.mxu0 0
    %4347 = vmatprep.subr.bf16.mxu0 0
    %4348 = vmatpush1.bf16.msra.mxu0 0
    %4349 = vmatprep.mubr.bf16.mxu0 0
    %4350 = vmatmul.mubr.bf16.gmra.mrb[0].mxu0 %v4312
    %v4351 = vpop.f32.mrb[0].mxu0
    %v4352 = vadd.f32 %v4306, %v4351
    %v4353 = vpop.f32.mrb[0].mxu0
    %v4354 = vpop.f32.mrb[0].mxu0
    %v4355 = vpop.f32.mrb[0].mxu0
    %4356 = vdwg.mxu0
    %v4357 = vpack.c.bf16 %v4352, %v4130
    %4358 = vmatprep.subr.bf16.mxu0 0
    %4359 = vmatpush1.bf16.msra.mxu0 %v1477
    %4360 = vmatprep.subr.bf16.mxu0 0
    %4361 = vmatpush1.bf16.msra.mxu0 %v1478
    %4362 = vmatprep.subr.bf16.mxu0 0
    %4363 = vmatpush1.bf16.msra.mxu0 %v1479
    %4364 = vmatprep.subr.bf16.mxu0 0
    %4365 = vmatpush1.bf16.msra.mxu0 %v1480
    %4366 = vmatprep.subr.bf16.mxu0 0
    %4367 = vmatpush1.bf16.msra.mxu0 %v1481
    %4368 = vmatprep.subr.bf16.mxu0 0
    %4369 = vmatpush1.bf16.msra.mxu0 %v1482
    %4370 = vmatprep.subr.bf16.mxu0 0
    %4371 = vmatpush1.bf16.msra.mxu0 %v1483
    %4372 = vmatprep.subr.bf16.mxu0 0
    %4373 = vmatpush1.bf16.msra.mxu0 %v1484
    %4374 = vmatprep.subr.bf16.mxu0 0
    %4375 = vmatpush1.bf16.msra.mxu0 0
    %4376 = vmatprep.subr.bf16.mxu0 0
    %4377 = vmatpush1.bf16.msra.mxu0 0
    %4378 = vmatprep.subr.bf16.mxu0 0
    %4379 = vmatpush1.bf16.msra.mxu0 0
    %4380 = vmatprep.subr.bf16.mxu0 0
    %4381 = vmatpush1.bf16.msra.mxu0 0
    %4382 = vmatprep.subr.bf16.mxu0 0
    %4383 = vmatpush1.bf16.msra.mxu0 0
    %4384 = vmatprep.subr.bf16.mxu0 0
    %4385 = vmatpush1.bf16.msra.mxu0 0
    %4386 = vmatprep.subr.bf16.mxu0 0
    %4387 = vmatpush1.bf16.msra.mxu0 0
    %4388 = vmatprep.subr.bf16.mxu0 0
    %4389 = vmatpush1.bf16.msra.mxu0 0
    %4390 = vmatprep.mubr.bf16.mxu0 0
    %4391 = vmatmul.mubr.bf16.gmra.mrb[0].mxu0 %v4357
    %v4392 = vpop.f32.mrb[0].mxu0
    %v4393 = vadd.f32 %v1444, %v4392
    %v4394 = vpop.f32.mrb[0].mxu0
    %v4395 = vpop.f32.mrb[0].mxu0
    %v4396 = vadd.f32 %v1444, %v4395
    %v4397 = vpop.f32.mrb[0].mxu0
    %4398 = vdwg.mxu0
    %v4399 = vadd.f32 %v3820, %v4393
    %v4400 = vadd.f32 %v3821, %v4396
    %4401 = vadd.xlane.f32.xlu0 %v4399
    %v4402 = vpop.xlane.xlu0 %4401
    %4403 = vadd.xlane.f32.xlu0 %v4400
    %v4404 = vpop.xlane.xlu0 %4403
    %v4405 = vmul.f32 %v4402, %v1540
    %v4406 = vmul.f32 %v4404, %v1540
    %v4407 = vsub.f32 %v4399, %v4405
    %v4408 = vsub.f32 %v4400, %v4406
    %v4409 = vmul.f32 %v4407, %v4407
    %v4410 = vmul.f32 %v4408, %v4408
    %4411 = vadd.xlane.f32.xlu0 %v4409
    %v4412 = vpop.xlane.xlu0 %4411
    %4413 = vadd.xlane.f32.xlu0 %v4410
    %v4414 = vpop.xlane.xlu0 %4413
    %v4415 = vmul.f32 %v4412, %v1540
    %v4416 = vmul.f32 %v4414, %v1540
    %v4417 = vadd.f32 %v4415, 1e-05
    %v4418 = vadd.f32 %v4416, 1e-05
    %v4419 = vrsqrt.pop %v4417
    %v4420 = vrsqrt.pop %v4418
    %v4421 = vmul.f32 %v4407, %v4419
    %v4422 = vmul.f32 %v4408, %v4420
    %v4423 = vmul.f32 %v4421, %v1562
    %v4424 = vmul.f32 %v4422, %v1562
    %v4425 = vadd.f32 %v4423, %v1568
    %v4426 = vadd.f32 %v4424, %v1568
    %v4427 = vpack.c.bf16 %v4426, %v4425
    %4428 = vmatprep.subr.bf16.mxu0 %v2039
    %4429 = vmatpush1.bf16.msra.mxu0 %v2038
    %4430 = vmatprep.subr.bf16.mxu0 %v2055
    %4431 = vmatpush1.bf16.msra.mxu0 %v2054
    %4432 = vmatprep.subr.bf16.mxu0 %v2071
    %4433 = vmatpush1.bf16.msra.mxu0 %v2070
    %4434 = vmatprep.subr.bf16.mxu0 %v2087
    %4435 = vmatpush1.bf16.msra.mxu0 %v2086
    %4436 = vmatprep.subr.bf16.mxu0 %v2103
    %4437 = vmatpush1.bf16.msra.mxu0 %v2102
    %4438 = vmatprep.subr.bf16.mxu0 %v2119
    %4439 = vmatpush1.bf16.msra.mxu0 %v2118
    %4440 = vmatprep.subr.bf16.mxu0 %v2135
    %4441 = vmatpush1.bf16.msra.mxu0 %v2134
    %4442 = vmatprep.subr.bf16.mxu0 %v2151
    %4443 = vmatpush1.bf16.msra.mxu0 %v2150
    %4444 = vmatprep.subr.bf16.mxu0 0
    %4445 = vmatpush1.bf16.msra.mxu0 0
    %4446 = vmatprep.subr.bf16.mxu0 0
    %4447 = vmatpush1.bf16.msra.mxu0 0
    %4448 = vmatprep.subr.bf16.mxu0 0
    %4449 = vmatpush1.bf16.msra.mxu0 0
    %4450 = vmatprep.subr.bf16.mxu0 0
    %4451 = vmatpush1.bf16.msra.mxu0 0
    %4452 = vmatprep.subr.bf16.mxu0 0
    %4453 = vmatpush1.bf16.msra.mxu0 0
    %4454 = vmatprep.subr.bf16.mxu0 0
    %4455 = vmatpush1.bf16.msra.mxu0 0
    %4456 = vmatprep.subr.bf16.mxu0 0
    %4457 = vmatpush1.bf16.msra.mxu0 0
    %4458 = vmatprep.subr.bf16.mxu0 0
    %4459 = vmatpush1.bf16.msra.mxu0 0
    %4460 = vmatprep.mubr.bf16.mxu0 0
    %4461 = vmatmul.mubr.bf16.gmra.mrb[0].mxu0 %v4427
    %v4462 = vpop.f32.mrb[0].mxu0
    %v4463 = vadd.f32 %v1577, %v4462
    %v4464 = vpop.f32.mrb[0].mxu0
    %v4465 = vadd.f32 %v1581, %v4464
    %v4466 = vpop.f32.mrb[0].mxu0
    %v4467 = vadd.f32 %v1577, %v4466
    %v4468 = vpop.f32.mrb[0].mxu0
    %v4469 = vadd.f32 %v1581, %v4468
    %4470 = vdwg.mxu0
    %4471 = vmatprep.subr.bf16.mxu0 %v2041
    %4472 = vmatpush1.bf16.msra.mxu0 %v2040
    %4473 = vmatprep.subr.bf16.mxu0 %v2057
    %4474 = vmatpush1.bf16.msra.mxu0 %v2056
    %4475 = vmatprep.subr.bf16.mxu0 %v2073
    %4476 = vmatpush1.bf16.msra.mxu0 %v2072
    %4477 = vmatprep.subr.bf16.mxu0 %v2089
    %4478 = vmatpush1.bf16.msra.mxu0 %v2088
    %4479 = vmatprep.subr.bf16.mxu0 %v2105
    %4480 = vmatpush1.bf16.msra.mxu0 %v2104
    %4481 = vmatprep.subr.bf16.mxu0 %v2121
    %4482 = vmatpush1.bf16.msra.mxu0 %v2120
    %4483 = vmatprep.subr.bf16.mxu0 %v2137
    %4484 = vmatpush1.bf16.msra.mxu0 %v2136
    %4485 = vmatprep.subr.bf16.mxu0 %v2153
    %4486 = vmatpush1.bf16.msra.mxu0 %v2152
    %4487 = vmatprep.subr.bf16.mxu0 0
    %4488 = vmatpush1.bf16.msra.mxu0 0
    %4489 = vmatprep.subr.bf16.mxu0 0
    %4490 = vmatpush1.bf16.msra.mxu0 0
    %4491 = vmatprep.subr.bf16.mxu0 0
    %4492 = vmatpush1.bf16.msra.mxu0 0
    %4493 = vmatprep.subr.bf16.mxu0 0
    %4494 = vmatpush1.bf16.msra.mxu0 0
    %4495 = vmatprep.subr.bf16.mxu0 0
    %4496 = vmatpush1.bf16.msra.mxu0 0
    %4497 = vmatprep.subr.bf16.mxu0 0
    %4498 = vmatpush1.bf16.msra.mxu0 0
    %4499 = vmatprep.subr.bf16.mxu0 0
    %4500 = vmatpush1.bf16.msra.mxu0 0
    %4501 = vmatprep.subr.bf16.mxu0 0
    %4502 = vmatpush1.bf16.msra.mxu0 0
    %4503 = vmatprep.mubr.bf16.mxu0 0
    %4504 = vmatmul.mubr.bf16.gmra.mrb[0].mxu0 %v4427
    %v4505 = vpop.f32.mrb[0].mxu0
    %v4506 = vadd.f32 %v1585, %v4505
    %v4507 = vpop.f32.mrb[0].mxu0
    %v4508 = vadd.f32 %v1589, %v4507
    %v4509 = vpop.f32.mrb[0].mxu0
    %v4510 = vadd.f32 %v1585, %v4509
    %v4511 = vpop.f32.mrb[0].mxu0
    %v4512 = vadd.f32 %v1589, %v4511
    %4513 = vdwg.mxu0
    %4514 = vmatprep.subr.bf16.mxu0 %v2043
    %4515 = vmatpush1.bf16.msra.mxu0 %v2042
    %4516 = vmatprep.subr.bf16.mxu0 %v2059
    %4517 = vmatpush1.bf16.msra.mxu0 %v2058
    %4518 = vmatprep.subr.bf16.mxu0 %v2075
    %4519 = vmatpush1.bf16.msra.mxu0 %v2074
    %4520 = vmatprep.subr.bf16.mxu0 %v2091
    %4521 = vmatpush1.bf16.msra.mxu0 %v2090
    %4522 = vmatprep.subr.bf16.mxu0 %v2107
    %4523 = vmatpush1.bf16.msra.mxu0 %v2106
    %4524 = vmatprep.subr.bf16.mxu0 %v2123
    %4525 = vmatpush1.bf16.msra.mxu0 %v2122
    %4526 = vmatprep.subr.bf16.mxu0 %v2139
    %4527 = vmatpush1.bf16.msra.mxu0 %v2138
    %4528 = vmatprep.subr.bf16.mxu0 %v2155
    %4529 = vmatpush1.bf16.msra.mxu0 %v2154
    %4530 = vmatprep.subr.bf16.mxu0 0
    %4531 = vmatpush1.bf16.msra.mxu0 0
    %4532 = vmatprep.subr.bf16.mxu0 0
    %4533 = vmatpush1.bf16.msra.mxu0 0
    %4534 = vmatprep.subr.bf16.mxu0 0
    %4535 = vmatpush1.bf16.msra.mxu0 0
    %4536 = vmatprep.subr.bf16.mxu0 0
    %4537 = vmatpush1.bf16.msra.mxu0 0
    %4538 = vmatprep.subr.bf16.mxu0 0
    %4539 = vmatpush1.bf16.msra.mxu0 0
    %4540 = vmatprep.subr.bf16.mxu0 0
    %4541 = vmatpush1.bf16.msra.mxu0 0
    %4542 = vmatprep.subr.bf16.mxu0 0
    %4543 = vmatpush1.bf16.msra.mxu0 0
    %4544 = vmatprep.subr.bf16.mxu0 0
    %4545 = vmatpush1.bf16.msra.mxu0 0
    %4546 = vmatprep.mubr.bf16.mxu0 0
    %4547 = vmatmul.mubr.bf16.gmra.mrb[0].mxu0 %v4427
    %v4548 = vpop.f32.mrb[0].mxu0
    %v4549 = vadd.f32 %v1593, %v4548
    %v4550 = vpop.f32.mrb[0].mxu0
    %v4551 = vadd.f32 %v1597, %v4550
    %v4552 = vpop.f32.mrb[0].mxu0
    %v4553 = vadd.f32 %v1593, %v4552
    %v4554 = vpop.f32.mrb[0].mxu0
    %v4555 = vadd.f32 %v1597, %v4554
    %4556 = vdwg.mxu0
    %4557 = vmatprep.subr.bf16.mxu0 %v2045
    %4558 = vmatpush1.bf16.msra.mxu0 %v2044
    %4559 = vmatprep.subr.bf16.mxu0 %v2061
    %4560 = vmatpush1.bf16.msra.mxu0 %v2060
    %4561 = vmatprep.subr.bf16.mxu0 %v2077
    %4562 = vmatpush1.bf16.msra.mxu0 %v2076
    %4563 = vmatprep.subr.bf16.mxu0 %v2093
    %4564 = vmatpush1.bf16.msra.mxu0 %v2092
    %4565 = vmatprep.subr.bf16.mxu0 %v2109
    %4566 = vmatpush1.bf16.msra.mxu0 %v2108
    %4567 = vmatprep.subr.bf16.mxu0 %v2125
    %4568 = vmatpush1.bf16.msra.mxu0 %v2124
    %4569 = vmatprep.subr.bf16.mxu0 %v2141
    %4570 = vmatpush1.bf16.msra.mxu0 %v2140
    %4571 = vmatprep.subr.bf16.mxu0 %v2157
    %4572 = vmatpush1.bf16.msra.mxu0 %v2156
    %4573 = vmatprep.subr.bf16.mxu0 0
    %4574 = vmatpush1.bf16.msra.mxu0 0
    %4575 = vmatprep.subr.bf16.mxu0 0
    %4576 = vmatpush1.bf16.msra.mxu0 0
    %4577 = vmatprep.subr.bf16.mxu0 0
    %4578 = vmatpush1.bf16.msra.mxu0 0
    %4579 = vmatprep.subr.bf16.mxu0 0
    %4580 = vmatpush1.bf16.msra.mxu0 0
    %4581 = vmatprep.subr.bf16.mxu0 0
    %4582 = vmatpush1.bf16.msra.mxu0 0
    %4583 = vmatprep.subr.bf16.mxu0 0
    %4584 = vmatpush1.bf16.msra.mxu0 0
    %4585 = vmatprep.subr.bf16.mxu0 0
    %4586 = vmatpush1.bf16.msra.mxu0 0
    %4587 = vmatprep.subr.bf16.mxu0 0
    %4588 = vmatpush1.bf16.msra.mxu0 0
    %4589 = vmatprep.mubr.bf16.mxu0 0
    %4590 = vmatmul.mubr.bf16.gmra.mrb[0].mxu0 %v4427
    %v4591 = vpop.f32.mrb[0].mxu0
    %v4592 = vadd.f32 %v1601, %v4591
    %v4593 = vpop.f32.mrb[0].mxu0
    %v4594 = vadd.f32 %v1605, %v4593
    %v4595 = vpop.f32.mrb[0].mxu0
    %v4596 = vadd.f32 %v1601, %v4595
    %v4597 = vpop.f32.mrb[0].mxu0
    %v4598 = vadd.f32 %v1605, %v4597
    %4599 = vdwg.mxu0
    %4600 = vmatprep.subr.bf16.mxu0 %v2047
    %4601 = vmatpush1.bf16.msra.mxu0 %v2046
    %4602 = vmatprep.subr.bf16.mxu0 %v2063
    %4603 = vmatpush1.bf16.msra.mxu0 %v2062
    %4604 = vmatprep.subr.bf16.mxu0 %v2079
    %4605 = vmatpush1.bf16.msra.mxu0 %v2078
    %4606 = vmatprep.subr.bf16.mxu0 %v2095
    %4607 = vmatpush1.bf16.msra.mxu0 %v2094
    %4608 = vmatprep.subr.bf16.mxu0 %v2111
    %4609 = vmatpush1.bf16.msra.mxu0 %v2110
    %4610 = vmatprep.subr.bf16.mxu0 %v2127
    %4611 = vmatpush1.bf16.msra.mxu0 %v2126
    %4612 = vmatprep.subr.bf16.mxu0 %v2143
    %4613 = vmatpush1.bf16.msra.mxu0 %v2142
    %4614 = vmatprep.subr.bf16.mxu0 %v2159
    %4615 = vmatpush1.bf16.msra.mxu0 %v2158
    %4616 = vmatprep.subr.bf16.mxu0 0
    %4617 = vmatpush1.bf16.msra.mxu0 0
    %4618 = vmatprep.subr.bf16.mxu0 0
    %4619 = vmatpush1.bf16.msra.mxu0 0
    %4620 = vmatprep.subr.bf16.mxu0 0
    %4621 = vmatpush1.bf16.msra.mxu0 0
    %4622 = vmatprep.subr.bf16.mxu0 0
    %4623 = vmatpush1.bf16.msra.mxu0 0
    %4624 = vmatprep.subr.bf16.mxu0 0
    %4625 = vmatpush1.bf16.msra.mxu0 0
    %4626 = vmatprep.subr.bf16.mxu0 0
    %4627 = vmatpush1.bf16.msra.mxu0 0
    %4628 = vmatprep.subr.bf16.mxu0 0
    %4629 = vmatpush1.bf16.msra.mxu0 0
    %4630 = vmatprep.subr.bf16.mxu0 0
    %4631 = vmatpush1.bf16.msra.mxu0 0
    %4632 = vmatprep.mubr.bf16.mxu0 0
    %4633 = vmatmul.mubr.bf16.gmra.mrb[0].mxu0 %v4427
    %v4634 = vpop.f32.mrb[0].mxu0
    %v4635 = vadd.f32 %v1609, %v4634
    %v4636 = vpop.f32.mrb[0].mxu0
    %v4637 = vadd.f32 %v1613, %v4636
    %v4638 = vpop.f32.mrb[0].mxu0
    %v4639 = vadd.f32 %v1609, %v4638
    %v4640 = vpop.f32.mrb[0].mxu0
    %v4641 = vadd.f32 %v1613, %v4640
    %4642 = vdwg.mxu0
    %4643 = vmatprep.subr.bf16.mxu0 %v2049
    %4644 = vmatpush1.bf16.msra.mxu0 %v2048
    %4645 = vmatprep.subr.bf16.mxu0 %v2065
    %4646 = vmatpush1.bf16.msra.mxu0 %v2064
    %4647 = vmatprep.subr.bf16.mxu0 %v2081
    %4648 = vmatpush1.bf16.msra.mxu0 %v2080
    %4649 = vmatprep.subr.bf16.mxu0 %v2097
    %4650 = vmatpush1.bf16.msra.mxu0 %v2096
    %4651 = vmatprep.subr.bf16.mxu0 %v2113
    %4652 = vmatpush1.bf16.msra.mxu0 %v2112
    %4653 = vmatprep.subr.bf16.mxu0 %v2129
    %4654 = vmatpush1.bf16.msra.mxu0 %v2128
    %4655 = vmatprep.subr.bf16.mxu0 %v2145
    %4656 = vmatpush1.bf16.msra.mxu0 %v2144
    %4657 = vmatprep.subr.bf16.mxu0 %v2161
    %4658 = vmatpush1.bf16.msra.mxu0 %v2160
    %4659 = vmatprep.subr.bf16.mxu0 0
    %4660 = vmatpush1.bf16.msra.mxu0 0
    %4661 = vmatprep.subr.bf16.mxu0 0
    %4662 = vmatpush1.bf16.msra.mxu0 0
    %4663 = vmatprep.subr.bf16.mxu0 0
    %4664 = vmatpush1.bf16.msra.mxu0 0
    %4665 = vmatprep.subr.bf16.mxu0 0
    %4666 = vmatpush1.bf16.msra.mxu0 0
    %4667 = vmatprep.subr.bf16.mxu0 0
    %4668 = vmatpush1.bf16.msra.mxu0 0
    %4669 = vmatprep.subr.bf16.mxu0 0
    %4670 = vmatpush1.bf16.msra.mxu0 0
    %4671 = vmatprep.subr.bf16.mxu0 0
    %4672 = vmatpush1.bf16.msra.mxu0 0
    %4673 = vmatprep.subr.bf16.mxu0 0
    %4674 = vmatpush1.bf16.msra.mxu0 0
    %4675 = vmatprep.mubr.bf16.mxu0 0
    %4676 = vmatmul.mubr.bf16.gmra.mrb[0].mxu0 %v4427
    %v4677 = vpop.f32.mrb[0].mxu0
    %v4678 = vadd.f32 %v1617, %v4677
    %v4679 = vpop.f32.mrb[0].mxu0
    %v4680 = vadd.f32 %v1621, %v4679
    %v4681 = vpop.f32.mrb[0].mxu0
    %v4682 = vadd.f32 %v1617, %v4681
    %v4683 = vpop.f32.mrb[0].mxu0
    %v4684 = vadd.f32 %v1621, %v4683
    %4685 = vdwg.mxu0
    %4686 = vmatprep.subr.bf16.mxu0 %v2051
    %4687 = vmatpush1.bf16.msra.mxu0 %v2050
    %4688 = vmatprep.subr.bf16.mxu0 %v2067
    %4689 = vmatpush1.bf16.msra.mxu0 %v2066
    %4690 = vmatprep.subr.bf16.mxu0 %v2083
    %4691 = vmatpush1.bf16.msra.mxu0 %v2082
    %4692 = vmatprep.subr.bf16.mxu0 %v2099
    %4693 = vmatpush1.bf16.msra.mxu0 %v2098
    %4694 = vmatprep.subr.bf16.mxu0 %v2115
    %4695 = vmatpush1.bf16.msra.mxu0 %v2114
    %4696 = vmatprep.subr.bf16.mxu0 %v2131
    %4697 = vmatpush1.bf16.msra.mxu0 %v2130
    %4698 = vmatprep.subr.bf16.mxu0 %v2147
    %4699 = vmatpush1.bf16.msra.mxu0 %v2146
    %4700 = vmatprep.subr.bf16.mxu0 %v2163
    %4701 = vmatpush1.bf16.msra.mxu0 %v2162
    %4702 = vmatprep.subr.bf16.mxu0 0
    %4703 = vmatpush1.bf16.msra.mxu0 0
    %4704 = vmatprep.subr.bf16.mxu0 0
    %4705 = vmatpush1.bf16.msra.mxu0 0
    %4706 = vmatprep.subr.bf16.mxu0 0
    %4707 = vmatpush1.bf16.msra.mxu0 0
    %4708 = vmatprep.subr.bf16.mxu0 0
    %4709 = vmatpush1.bf16.msra.mxu0 0
    %4710 = vmatprep.subr.bf16.mxu0 0
    %4711 = vmatpush1.bf16.msra.mxu0 0
    %4712 = vmatprep.subr.bf16.mxu0 0
    %4713 = vmatpush1.bf16.msra.mxu0 0
    %4714 = vmatprep.subr.bf16.mxu0 0
    %4715 = vmatpush1.bf16.msra.mxu0 0
    %4716 = vmatprep.subr.bf16.mxu0 0
    %4717 = vmatpush1.bf16.msra.mxu0 0
    %4718 = vmatprep.mubr.bf16.mxu0 0
    %4719 = vmatmul.mubr.bf16.gmra.mrb[0].mxu0 %v4427
    %v4720 = vpop.f32.mrb[0].mxu0
    %v4721 = vadd.f32 %v1625, %v4720
    %v4722 = vpop.f32.mrb[0].mxu0
    %v4723 = vadd.f32 %v1629, %v4722
    %v4724 = vpop.f32.mrb[0].mxu0
    %v4725 = vadd.f32 %v1625, %v4724
    %v4726 = vpop.f32.mrb[0].mxu0
    %v4727 = vadd.f32 %v1629, %v4726
    %4728 = vdwg.mxu0
    %4729 = vmatprep.subr.bf16.mxu0 %v2053
    %4730 = vmatpush1.bf16.msra.mxu0 %v2052
    %4731 = vmatprep.subr.bf16.mxu0 %v2069
    %4732 = vmatpush1.bf16.msra.mxu0 %v2068
    %4733 = vmatprep.subr.bf16.mxu0 %v2085
    %4734 = vmatpush1.bf16.msra.mxu0 %v2084
    %4735 = vmatprep.subr.bf16.mxu0 %v2101
    %4736 = vmatpush1.bf16.msra.mxu0 %v2100
    %4737 = vmatprep.subr.bf16.mxu0 %v2117
    %4738 = vmatpush1.bf16.msra.mxu0 %v2116
    %4739 = vmatprep.subr.bf16.mxu0 %v2133
    %4740 = vmatpush1.bf16.msra.mxu0 %v2132
    %4741 = vmatprep.subr.bf16.mxu0 %v2149
    %4742 = vmatpush1.bf16.msra.mxu0 %v2148
    %4743 = vmatprep.subr.bf16.mxu0 %v2165
    %4744 = vmatpush1.bf16.msra.mxu0 %v2164
    %4745 = vmatprep.subr.bf16.mxu0 0
    %4746 = vmatpush1.bf16.msra.mxu0 0
    %4747 = vmatprep.subr.bf16.mxu0 0
    %4748 = vmatpush1.bf16.msra.mxu0 0
    %4749 = vmatprep.subr.bf16.mxu0 0
    %4750 = vmatpush1.bf16.msra.mxu0 0
    %4751 = vmatprep.subr.bf16.mxu0 0
    %4752 = vmatpush1.bf16.msra.mxu0 0
    %4753 = vmatprep.subr.bf16.mxu0 0
    %4754 = vmatpush1.bf16.msra.mxu0 0
    %4755 = vmatprep.subr.bf16.mxu0 0
    %4756 = vmatpush1.bf16.msra.mxu0 0
    %4757 = vmatprep.subr.bf16.mxu0 0
    %4758 = vmatpush1.bf16.msra.mxu0 0
    %4759 = vmatprep.subr.bf16.mxu0 0
    %4760 = vmatpush1.bf16.msra.mxu0 0
    %4761 = vmatprep.mubr.bf16.mxu0 0
    %4762 = vmatmul.mubr.bf16.gmra.mrb[0].mxu0 %v4427
    %v4763 = vpop.f32.mrb[0].mxu0
    %v4764 = vadd.f32 %v1633, %v4763
    %v4765 = vpop.f32.mrb[0].mxu0
    %v4766 = vadd.f32 %v1637, %v4765
    %v4767 = vpop.f32.mrb[0].mxu0
    %v4768 = vadd.f32 %v1633, %v4767
    %v4769 = vpop.f32.mrb[0].mxu0
    %v4770 = vadd.f32 %v1637, %v4769
    %4771 = vdwg.mxu0
    %v4772 = vmax.f32 %v4463, 0.0
    %v4773 = vmax.f32 %v4465, 0.0
    %v4774 = vmax.f32 %v4506, 0.0
    %v4775 = vmax.f32 %v4508, 0.0
    %v4776 = vmax.f32 %v4549, 0.0
    %v4777 = vmax.f32 %v4551, 0.0
    %v4778 = vmax.f32 %v4592, 0.0
    %v4779 = vmax.f32 %v4594, 0.0
    %v4780 = vmax.f32 %v4635, 0.0
    %v4781 = vmax.f32 %v4637, 0.0
    %v4782 = vmax.f32 %v4678, 0.0
    %v4783 = vmax.f32 %v4680, 0.0
    %v4784 = vmax.f32 %v4721, 0.0
    %v4785 = vmax.f32 %v4723, 0.0
    %v4786 = vmax.f32 %v4764, 0.0
    %v4787 = vmax.f32 %v4766, 0.0
    %v4788 = vmax.f32 %v4467, 0.0
    %v4789 = vmax.f32 %v4469, 0.0
    %v4790 = vmax.f32 %v4510, 0.0
    %v4791 = vmax.f32 %v4512, 0.0
    %v4792 = vmax.f32 %v4553, 0.0
    %v4793 = vmax.f32 %v4555, 0.0
    %v4794 = vmax.f32 %v4596, 0.0
    %v4795 = vmax.f32 %v4598, 0.0
    %v4796 = vmax.f32 %v4639, 0.0
    %v4797 = vmax.f32 %v4641, 0.0
    %v4798 = vmax.f32 %v4682, 0.0
    %v4799 = vmax.f32 %v4684, 0.0
    %v4800 = vmax.f32 %v4725, 0.0
    %v4801 = vmax.f32 %v4727, 0.0
    %v4802 = vmax.f32 %v4768, 0.0
    %v4803 = vmax.f32 %v4770, 0.0
    %v4804 = vpack.c.bf16 %v4788, %v4772
    %v4805 = vpack.c.bf16 %v4789, %v4773
    %v4806 = vpack.c.bf16 %v4790, %v4774
    %v4807 = vpack.c.bf16 %v4791, %v4775
    %v4808 = vpack.c.bf16 %v4792, %v4776
    %v4809 = vpack.c.bf16 %v4793, %v4777
    %v4810 = vpack.c.bf16 %v4794, %v4778
    %v4811 = vpack.c.bf16 %v4795, %v4779
    %v4812 = vpack.c.bf16 %v4796, %v4780
    %v4813 = vpack.c.bf16 %v4797, %v4781
    %v4814 = vpack.c.bf16 %v4798, %v4782
    %v4815 = vpack.c.bf16 %v4799, %v4783
    %v4816 = vpack.c.bf16 %v4800, %v4784
    %v4817 = vpack.c.bf16 %v4801, %v4785
    %v4818 = vpack.c.bf16 %v4802, %v4786
    %v4819 = vpack.c.bf16 %v4803, %v4787
    %4820 = vmatprep.subr.bf16.mxu0 0
    %4821 = vmatpush1.bf16.msra.mxu0 %v3202
    %4822 = vmatprep.subr.bf16.mxu0 0
    %4823 = vmatpush1.bf16.msra.mxu0 %v3203
    %4824 = vmatprep.subr.bf16.mxu0 0
    %4825 = vmatpush1.bf16.msra.mxu0 %v3204
    %4826 = vmatprep.subr.bf16.mxu0 0
    %4827 = vmatpush1.bf16.msra.mxu0 %v3205
    %4828 = vmatprep.subr.bf16.mxu0 0
    %4829 = vmatpush1.bf16.msra.mxu0 %v3206
    %4830 = vmatprep.subr.bf16.mxu0 0
    %4831 = vmatpush1.bf16.msra.mxu0 %v3207
    %4832 = vmatprep.subr.bf16.mxu0 0
    %4833 = vmatpush1.bf16.msra.mxu0 %v3208
    %4834 = vmatprep.subr.bf16.mxu0 0
    %4835 = vmatpush1.bf16.msra.mxu0 %v3209
    %4836 = vmatprep.subr.bf16.mxu0 0
    %4837 = vmatpush1.bf16.msra.mxu0 %v3210
    %4838 = vmatprep.subr.bf16.mxu0 0
    %4839 = vmatpush1.bf16.msra.mxu0 %v3211
    %4840 = vmatprep.subr.bf16.mxu0 0
    %4841 = vmatpush1.bf16.msra.mxu0 %v3212
    %4842 = vmatprep.subr.bf16.mxu0 0
    %4843 = vmatpush1.bf16.msra.mxu0 %v3213
    %4844 = vmatprep.subr.bf16.mxu0 0
    %4845 = vmatpush1.bf16.msra.mxu0 %v3214
    %4846 = vmatprep.subr.bf16.mxu0 0
    %4847 = vmatpush1.bf16.msra.mxu0 %v3215
    %4848 = vmatprep.subr.bf16.mxu0 0
    %4849 = vmatpush1.bf16.msra.mxu0 %v3216
    %4850 = vmatprep.subr.bf16.mxu0 0
    %4851 = vmatpush1.bf16.msra.mxu0 %v3217
    %4852 = vmatprep.mubr.bf16.mxu0 %v4805
    %4853 = vmatmul.mubr.bf16.gmra.mrb[0].mxu0 %v4804
    %v4854 = vpop.f32.mrb[0].mxu0
    %v4855 = vadd.f32 %v2689, %v4854
    %v4856 = vpop.f32.mrb[0].mxu0
    %v4857 = vpop.f32.mrb[0].mxu0
    %v4858 = vadd.f32 %v2689, %v4857
    %v4859 = vpop.f32.mrb[0].mxu0
    %4860 = vdwg.mxu0
    %4861 = vmatprep.subr.bf16.mxu0 0
    %4862 = vmatpush1.bf16.msra.mxu0 %v3218
    %4863 = vmatprep.subr.bf16.mxu0 0
    %4864 = vmatpush1.bf16.msra.mxu0 %v3219
    %4865 = vmatprep.subr.bf16.mxu0 0
    %4866 = vmatpush1.bf16.msra.mxu0 %v3220
    %4867 = vmatprep.subr.bf16.mxu0 0
    %4868 = vmatpush1.bf16.msra.mxu0 %v3221
    %4869 = vmatprep.subr.bf16.mxu0 0
    %4870 = vmatpush1.bf16.msra.mxu0 %v3222
    %4871 = vmatprep.subr.bf16.mxu0 0
    %4872 = vmatpush1.bf16.msra.mxu0 %v3223
    %4873 = vmatprep.subr.bf16.mxu0 0
    %4874 = vmatpush1.bf16.msra.mxu0 %v3224
    %4875 = vmatprep.subr.bf16.mxu0 0
    %4876 = vmatpush1.bf16.msra.mxu0 %v3225
    %4877 = vmatprep.subr.bf16.mxu0 0
    %4878 = vmatpush1.bf16.msra.mxu0 %v3226
    %4879 = vmatprep.subr.bf16.mxu0 0
    %4880 = vmatpush1.bf16.msra.mxu0 %v3227
    %4881 = vmatprep.subr.bf16.mxu0 0
    %4882 = vmatpush1.bf16.msra.mxu0 %v3228
    %4883 = vmatprep.subr.bf16.mxu0 0
    %4884 = vmatpush1.bf16.msra.mxu0 %v3229
    %4885 = vmatprep.subr.bf16.mxu0 0
    %4886 = vmatpush1.bf16.msra.mxu0 %v3230
    %4887 = vmatprep.subr.bf16.mxu0 0
    %4888 = vmatpush1.bf16.msra.mxu0 %v3231
    %4889 = vmatprep.subr.bf16.mxu0 0
    %4890 = vmatpush1.bf16.msra.mxu0 %v3232
    %4891 = vmatprep.subr.bf16.mxu0 0
    %4892 = vmatpush1.bf16.msra.mxu0 %v3233
    %4893 = vmatprep.mubr.bf16.mxu0 %v4807
    %4894 = vmatmul.mubr.bf16.gmra.mrb[0].mxu0 %v4806
    %v4895 = vpop.f32.mrb[0].mxu0
    %v4896 = vadd.f32 %v4855, %v4895
    %v4897 = vpop.f32.mrb[0].mxu0
    %v4898 = vpop.f32.mrb[0].mxu0
    %v4899 = vadd.f32 %v4858, %v4898
    %v4900 = vpop.f32.mrb[0].mxu0
    %4901 = vdwg.mxu0
    %4902 = vmatprep.subr.bf16.mxu0 0
    %4903 = vmatpush1.bf16.msra.mxu0 %v3234
    %4904 = vmatprep.subr.bf16.mxu0 0
    %4905 = vmatpush1.bf16.msra.mxu0 %v3235
    %4906 = vmatprep.subr.bf16.mxu0 0
    %4907 = vmatpush1.bf16.msra.mxu0 %v3236
    %4908 = vmatprep.subr.bf16.mxu0 0
    %4909 = vmatpush1.bf16.msra.mxu0 %v3237
    %4910 = vmatprep.subr.bf16.mxu0 0
    %4911 = vmatpush1.bf16.msra.mxu0 %v3238
    %4912 = vmatprep.subr.bf16.mxu0 0
    %4913 = vmatpush1.bf16.msra.mxu0 %v3239
    %4914 = vmatprep.subr.bf16.mxu0 0
    %4915 = vmatpush1.bf16.msra.mxu0 %v3240
    %4916 = vmatprep.subr.bf16.mxu0 0
    %4917 = vmatpush1.bf16.msra.mxu0 %v3241
    %4918 = vmatprep.subr.bf16.mxu0 0
    %4919 = vmatpush1.bf16.msra.mxu0 %v3242
    %4920 = vmatprep.subr.bf16.mxu0 0
    %4921 = vmatpush1.bf16.msra.mxu0 %v3243
    %4922 = vmatprep.subr.bf16.mxu0 0
    %4923 = vmatpush1.bf16.msra.mxu0 %v3244
    %4924 = vmatprep.subr.bf16.mxu0 0
    %4925 = vmatpush1.bf16.msra.mxu0 %v3245
    %4926 = vmatprep.subr.bf16.mxu0 0
    %4927 = vmatpush1.bf16.msra.mxu0 %v3246
    %4928 = vmatprep.subr.bf16.mxu0 0
    %4929 = vmatpush1.bf16.msra.mxu0 %v3247
    %4930 = vmatprep.subr.bf16.mxu0 0
    %4931 = vmatpush1.bf16.msra.mxu0 %v3248
    %4932 = vmatprep.subr.bf16.mxu0 0
    %4933 = vmatpush1.bf16.msra.mxu0 %v3249
    %4934 = vmatprep.mubr.bf16.mxu0 %v4809
    %4935 = vmatmul.mubr.bf16.gmra.mrb[0].mxu0 %v4808
    %v4936 = vpop.f32.mrb[0].mxu0
    %v4937 = vadd.f32 %v4896, %v4936
    %v4938 = vpop.f32.mrb[0].mxu0
    %v4939 = vpop.f32.mrb[0].mxu0
    %v4940 = vadd.f32 %v4899, %v4939
    %v4941 = vpop.f32.mrb[0].mxu0
    %4942 = vdwg.mxu0
    %4943 = vmatprep.subr.bf16.mxu0 0
    %4944 = vmatpush1.bf16.msra.mxu0 %v3250
    %4945 = vmatprep.subr.bf16.mxu0 0
    %4946 = vmatpush1.bf16.msra.mxu0 %v3251
    %4947 = vmatprep.subr.bf16.mxu0 0
    %4948 = vmatpush1.bf16.msra.mxu0 %v3252
    %4949 = vmatprep.subr.bf16.mxu0 0
    %4950 = vmatpush1.bf16.msra.mxu0 %v3253
    %4951 = vmatprep.subr.bf16.mxu0 0
    %4952 = vmatpush1.bf16.msra.mxu0 %v3254
    %4953 = vmatprep.subr.bf16.mxu0 0
    %4954 = vmatpush1.bf16.msra.mxu0 %v3255
    %4955 = vmatprep.subr.bf16.mxu0 0
    %4956 = vmatpush1.bf16.msra.mxu0 %v3256
    %4957 = vmatprep.subr.bf16.mxu0 0
    %4958 = vmatpush1.bf16.msra.mxu0 %v3257
    %4959 = vmatprep.subr.bf16.mxu0 0
    %4960 = vmatpush1.bf16.msra.mxu0 %v3258
    %4961 = vmatprep.subr.bf16.mxu0 0
    %4962 = vmatpush1.bf16.msra.mxu0 %v3259
    %4963 = vmatprep.subr.bf16.mxu0 0
    %4964 = vmatpush1.bf16.msra.mxu0 %v3260
    %4965 = vmatprep.subr.bf16.mxu0 0
    %4966 = vmatpush1.bf16.msra.mxu0 %v3261
    %4967 = vmatprep.subr.bf16.mxu0 0
    %4968 = vmatpush1.bf16.msra.mxu0 %v3262
    %4969 = vmatprep.subr.bf16.mxu0 0
    %4970 = vmatpush1.bf16.msra.mxu0 %v3263
    %4971 = vmatprep.subr.bf16.mxu0 0
    %4972 = vmatpush1.bf16.msra.mxu0 %v3264
    %4973 = vmatprep.subr.bf16.mxu0 0
    %4974 = vmatpush1.bf16.msra.mxu0 %v3265
    %4975 = vmatprep.mubr.bf16.mxu0 %v4811
    %4976 = vmatmul.mubr.bf16.gmra.mrb[0].mxu0 %v4810
    %v4977 = vpop.f32.mrb[0].mxu0
    %v4978 = vadd.f32 %v4937, %v4977
    %v4979 = vpop.f32.mrb[0].mxu0
    %v4980 = vpop.f32.mrb[0].mxu0
    %v4981 = vadd.f32 %v4940, %v4980
    %v4982 = vpop.f32.mrb[0].mxu0
    %4983 = vdwg.mxu0
    %4984 = vmatprep.subr.bf16.mxu0 0
    %4985 = vmatpush1.bf16.msra.mxu0 %v3266
    %4986 = vmatprep.subr.bf16.mxu0 0
    %4987 = vmatpush1.bf16.msra.mxu0 %v3267
    %4988 = vmatprep.subr.bf16.mxu0 0
    %4989 = vmatpush1.bf16.msra.mxu0 %v3268
    %4990 = vmatprep.subr.bf16.mxu0 0
    %4991 = vmatpush1.bf16.msra.mxu0 %v3269
    %4992 = vmatprep.subr.bf16.mxu0 0
    %4993 = vmatpush1.bf16.msra.mxu0 %v3270
    %4994 = vmatprep.subr.bf16.mxu0 0
    %4995 = vmatpush1.bf16.msra.mxu0 %v3271
    %4996 = vmatprep.subr.bf16.mxu0 0
    %4997 = vmatpush1.bf16.msra.mxu0 %v3272
    %4998 = vmatprep.subr.bf16.mxu0 0
    %4999 = vmatpush1.bf16.msra.mxu0 %v3273
    %5000 = vmatprep.subr.bf16.mxu0 0
    %5001 = vmatpush1.bf16.msra.mxu0 %v3274
    %5002 = vmatprep.subr.bf16.mxu0 0
    %5003 = vmatpush1.bf16.msra.mxu0 %v3275
    %5004 = vmatprep.subr.bf16.mxu0 0
    %5005 = vmatpush1.bf16.msra.mxu0 %v3276
    %5006 = vmatprep.subr.bf16.mxu0 0
    %5007 = vmatpush1.bf16.msra.mxu0 %v3277
    %5008 = vmatprep.subr.bf16.mxu0 0
    %5009 = vmatpush1.bf16.msra.mxu0 %v3278
    %5010 = vmatprep.subr.bf16.mxu0 0
    %5011 = vmatpush1.bf16.msra.mxu0 %v3279
    %5012 = vmatprep.subr.bf16.mxu0 0
    %5013 = vmatpush1.bf16.msra.mxu0 %v3280
    %5014 = vmatprep.subr.bf16.mxu0 0
    %5015 = vmatpush1.bf16.msra.mxu0 %v3281
    %5016 = vmatprep.mubr.bf16.mxu0 %v4813
    %5017 = vmatmul.mubr.bf16.gmra.mrb[0].mxu0 %v4812
    %v5018 = vpop.f32.mrb[0].mxu0
    %v5019 = vadd.f32 %v4978, %v5018
    %v5020 = vpop.f32.mrb[0].mxu0
    %v5021 = vpop.f32.mrb[0].mxu0
    %v5022 = vadd.f32 %v4981, %v5021
    %v5023 = vpop.f32.mrb[0].mxu0
    %5024 = vdwg.mxu0
    %5025 = vmatprep.subr.bf16.mxu0 0
    %5026 = vmatpush1.bf16.msra.mxu0 %v3282
    %5027 = vmatprep.subr.bf16.mxu0 0
    %5028 = vmatpush1.bf16.msra.mxu0 %v3283
    %5029 = vmatprep.subr.bf16.mxu0 0
    %5030 = vmatpush1.bf16.msra.mxu0 %v3284
    %5031 = vmatprep.subr.bf16.mxu0 0
    %5032 = vmatpush1.bf16.msra.mxu0 %v3285
    %5033 = vmatprep.subr.bf16.mxu0 0
    %5034 = vmatpush1.bf16.msra.mxu0 %v3286
    %5035 = vmatprep.subr.bf16.mxu0 0
    %5036 = vmatpush1.bf16.msra.mxu0 %v3287
    %5037 = vmatprep.subr.bf16.mxu0 0
    %5038 = vmatpush1.bf16.msra.mxu0 %v3288
    %5039 = vmatprep.subr.bf16.mxu0 0
    %5040 = vmatpush1.bf16.msra.mxu0 %v3289
    %5041 = vmatprep.subr.bf16.mxu0 0
    %5042 = vmatpush1.bf16.msra.mxu0 %v3290
    %5043 = vmatprep.subr.bf16.mxu0 0
    %5044 = vmatpush1.bf16.msra.mxu0 %v3291
    %5045 = vmatprep.subr.bf16.mxu0 0
    %5046 = vmatpush1.bf16.msra.mxu0 %v3292
    %5047 = vmatprep.subr.bf16.mxu0 0
    %5048 = vmatpush1.bf16.msra.mxu0 %v3293
    %5049 = vmatprep.subr.bf16.mxu0 0
    %5050 = vmatpush1.bf16.msra.mxu0 %v3294
    %5051 = vmatprep.subr.bf16.mxu0 0
    %5052 = vmatpush1.bf16.msra.mxu0 %v3295
    %5053 = vmatprep.subr.bf16.mxu0 0
    %5054 = vmatpush1.bf16.msra.mxu0 %v3296
    %5055 = vmatprep.subr.bf16.mxu0 0
    %5056 = vmatpush1.bf16.msra.mxu0 %v3297
    %5057 = vmatprep.mubr.bf16.mxu0 %v4815
    %5058 = vmatmul.mubr.bf16.gmra.mrb[0].mxu0 %v4814
    %v5059 = vpop.f32.mrb[0].mxu0
    %v5060 = vadd.f32 %v5019, %v5059
    %v5061 = vpop.f32.mrb[0].mxu0
    %v5062 = vpop.f32.mrb[0].mxu0
    %v5063 = vadd.f32 %v5022, %v5062
    %v5064 = vpop.f32.mrb[0].mxu0
    %5065 = vdwg.mxu0
    %5066 = vmatprep.subr.bf16.mxu0 0
    %5067 = vmatpush1.bf16.msra.mxu0 %v3298
    %5068 = vmatprep.subr.bf16.mxu0 0
    %5069 = vmatpush1.bf16.msra.mxu0 %v3299
    %5070 = vmatprep.subr.bf16.mxu0 0
    %5071 = vmatpush1.bf16.msra.mxu0 %v3300
    %5072 = vmatprep.subr.bf16.mxu0 0
    %5073 = vmatpush1.bf16.msra.mxu0 %v3301
    %5074 = vmatprep.subr.bf16.mxu0 0
    %5075 = vmatpush1.bf16.msra.mxu0 %v3302
    %5076 = vmatprep.subr.bf16.mxu0 0
    %5077 = vmatpush1.bf16.msra.mxu0 %v3303
    %5078 = vmatprep.subr.bf16.mxu0 0
    %5079 = vmatpush1.bf16.msra.mxu0 %v3304
    %5080 = vmatprep.subr.bf16.mxu0 0
    %5081 = vmatpush1.bf16.msra.mxu0 %v3305
    %5082 = vmatprep.subr.bf16.mxu0 0
    %5083 = vmatpush1.bf16.msra.mxu0 %v3306
    %5084 = vmatprep.subr.bf16.mxu0 0
    %5085 = vmatpush1.bf16.msra.mxu0 %v3307
    %5086 = vmatprep.subr.bf16.mxu0 0
    %5087 = vmatpush1.bf16.msra.mxu0 %v3308
    %5088 = vmatprep.subr.bf16.mxu0 0
    %5089 = vmatpush1.bf16.msra.mxu0 %v3309
    %5090 = vmatprep.subr.bf16.mxu0 0
    %5091 = vmatpush1.bf16.msra.mxu0 %v3310
    %5092 = vmatprep.subr.bf16.mxu0 0
    %5093 = vmatpush1.bf16.msra.mxu0 %v3311
    %5094 = vmatprep.subr.bf16.mxu0 0
    %5095 = vmatpush1.bf16.msra.mxu0 %v3312
    %5096 = vmatprep.subr.bf16.mxu0 0
    %5097 = vmatpush1.bf16.msra.mxu0 %v3313
    %5098 = vmatprep.mubr.bf16.mxu0 %v4817
    %5099 = vmatmul.mubr.bf16.gmra.mrb[0].mxu0 %v4816
    %v5100 = vpop.f32.mrb[0].mxu0
    %v5101 = vadd.f32 %v5060, %v5100
    %v5102 = vpop.f32.mrb[0].mxu0
    %v5103 = vpop.f32.mrb[0].mxu0
    %v5104 = vadd.f32 %v5063, %v5103
    %v5105 = vpop.f32.mrb[0].mxu0
    %5106 = vdwg.mxu0
    %5107 = vmatprep.subr.bf16.mxu0 0
    %5108 = vmatpush1.bf16.msra.mxu0 %v3314
    %5109 = vmatprep.subr.bf16.mxu0 0
    %5110 = vmatpush1.bf16.msra.mxu0 %v3315
    %5111 = vmatprep.subr.bf16.mxu0 0
    %5112 = vmatpush1.bf16.msra.mxu0 %v3316
    %5113 = vmatprep.subr.bf16.mxu0 0
    %5114 = vmatpush1.bf16.msra.mxu0 %v3317
    %5115 = vmatprep.subr.bf16.mxu0 0
    %5116 = vmatpush1.bf16.msra.mxu0 %v3318
    %5117 = vmatprep.subr.bf16.mxu0 0
    %5118 = vmatpush1.bf16.msra.mxu0 %v3319
    %5119 = vmatprep.subr.bf16.mxu0 0
    %5120 = vmatpush1.bf16.msra.mxu0 %v3320
    %5121 = vmatprep.subr.bf16.mxu0 0
    %5122 = vmatpush1.bf16.msra.mxu0 %v3321
    %5123 = vmatprep.subr.bf16.mxu0 0
    %5124 = vmatpush1.bf16.msra.mxu0 %v3322
    %5125 = vmatprep.subr.bf16.mxu0 0
    %5126 = vmatpush1.bf16.msra.mxu0 %v3323
    %5127 = vmatprep.subr.bf16.mxu0 0
    %5128 = vmatpush1.bf16.msra.mxu0 %v3324
    %5129 = vmatprep.subr.bf16.mxu0 0
    %5130 = vmatpush1.bf16.msra.mxu0 %v3325
    %5131 = vmatprep.subr.bf16.mxu0 0
    %5132 = vmatpush1.bf16.msra.mxu0 %v3326
    %5133 = vmatprep.subr.bf16.mxu0 0
    %5134 = vmatpush1.bf16.msra.mxu0 %v3327
    %5135 = vmatprep.subr.bf16.mxu0 0
    %5136 = vmatpush1.bf16.msra.mxu0 %v3328
    %5137 = vmatprep.subr.bf16.mxu0 0
    %5138 = vmatpush1.bf16.msra.mxu0 %v3329
    %5139 = vmatprep.mubr.bf16.mxu0 %v4819
    %5140 = vmatmul.mubr.bf16.gmra.mrb[0].mxu0 %v4818
    %v5141 = vpop.f32.mrb[0].mxu0
    %v5142 = vadd.f32 %v5101, %v5141
    %v5143 = vpop.f32.mrb[0].mxu0
    %v5144 = vpop.f32.mrb[0].mxu0
    %v5145 = vadd.f32 %v5104, %v5144
    %v5146 = vpop.f32.mrb[0].mxu0
    %5147 = vdwg.mxu0
    %v5148 = vadd.f32 %v4425, %v5142
    %v5149 = vadd.f32 %v4426, %v5145
    %5150 = vadd.xlane.f32.xlu0 %v5148
    %v5151 = vpop.xlane.xlu0 %5150
    %5152 = vadd.xlane.f32.xlu0 %v5149
    %v5153 = vpop.xlane.xlu0 %5152
    %v5154 = vmul.f32 %v5151, %v1540
    %v5155 = vmul.f32 %v5153, %v1540
    %v5156 = vsub.f32 %v5148, %v5154
    %v5157 = vsub.f32 %v5149, %v5155
    %v5158 = vmul.f32 %v5156, %v5156
    %v5159 = vmul.f32 %v5157, %v5157
    %5160 = vadd.xlane.f32.xlu0 %v5158
    %v5161 = vpop.xlane.xlu0 %5160
    %5162 = vadd.xlane.f32.xlu0 %v5159
    %v5163 = vpop.xlane.xlu0 %5162
    %v5164 = vmul.f32 %v5161, %v1540
    %v5165 = vmul.f32 %v5163, %v1540
    %v5166 = vadd.f32 %v5164, 1e-05
    %v5167 = vadd.f32 %v5165, 1e-05
    %v5168 = vrsqrt.pop %v5166
    %v5169 = vrsqrt.pop %v5167
    %v5170 = vmul.f32 %v5156, %v5168
    %v5171 = vmul.f32 %v5157, %v5169
    %v5172 = vmul.f32 %v5170, %v3813
    %v5173 = vmul.f32 %v5171, %v3813
    %v5174 = vadd.f32 %v5172, %v3819
    %v5175 = vadd.f32 %v5173, %v3819
    %v5176 = vpack.c.bf16 %v5175, %v5174
    %5177 = vmatprep.subr.bf16.mxu0 0
    %5178 = vmatpush1.bf16.msra.mxu0 %v689
    %5179 = vmatprep.subr.bf16.mxu0 0
    %5180 = vmatpush1.bf16.msra.mxu0 %v690
    %5181 = vmatprep.subr.bf16.mxu0 0
    %5182 = vmatpush1.bf16.msra.mxu0 %v691
    %5183 = vmatprep.subr.bf16.mxu0 0
    %5184 = vmatpush1.bf16.msra.mxu0 %v692
    %5185 = vmatprep.subr.bf16.mxu0 0
    %5186 = vmatpush1.bf16.msra.mxu0 %v693
    %5187 = vmatprep.subr.bf16.mxu0 0
    %5188 = vmatpush1.bf16.msra.mxu0 %v694
    %5189 = vmatprep.subr.bf16.mxu0 0
    %5190 = vmatpush1.bf16.msra.mxu0 %v695
    %5191 = vmatprep.subr.bf16.mxu0 0
    %5192 = vmatpush1.bf16.msra.mxu0 %v696
    %5193 = vmatprep.subr.bf16.mxu0 0
    %5194 = vmatpush1.bf16.msra.mxu0 0
    %5195 = vmatprep.subr.bf16.mxu0 0
    %5196 = vmatpush1.bf16.msra.mxu0 0
    %5197 = vmatprep.subr.bf16.mxu0 0
    %5198 = vmatpush1.bf16.msra.mxu0 0
    %5199 = vmatprep.subr.bf16.mxu0 0
    %5200 = vmatpush1.bf16.msra.mxu0 0
    %5201 = vmatprep.subr.bf16.mxu0 0
    %5202 = vmatpush1.bf16.msra.mxu0 0
    %5203 = vmatprep.subr.bf16.mxu0 0
    %5204 = vmatpush1.bf16.msra.mxu0 0
    %5205 = vmatprep.subr.bf16.mxu0 0
    %5206 = vmatpush1.bf16.msra.mxu0 0
    %5207 = vmatprep.subr.bf16.mxu0 0
    %5208 = vmatpush1.bf16.msra.mxu0 0
    %5209 = vmatprep.mubr.bf16.mxu0 0
    %5210 = vmatmul.mubr.bf16.gmra.mrb[0].mxu0 %v5176
    %v5211 = vpop.f32.mrb[0].mxu0
    %v5212 = vadd.f32 %v656, %v5211
    %v5213 = vpop.f32.mrb[0].mxu0
    %v5214 = vpop.f32.mrb[0].mxu0
    %v5215 = vadd.f32 %v656, %v5214
    %v5216 = vpop.f32.mrb[0].mxu0
    %5217 = vdwg.mxu0
    %v5218 = vrot.slane %v5212, 4
    %v5219 = vadd.f32 %v5212, %v5218
    %v5220 = vrot.slane %v5219, 2
    %v5221 = vadd.f32 %v5219, %v5220
    %v5222 = vrot.slane %v5221, 1
    %v5223 = vadd.f32 %v5221, %v5222
    %v5224 = vrcp.pop 8.0
    %v5225 = vmul.f32 %v5223, %v5224
    %v5226 = vsub.f32 %v5212, %v5225
    %v5227 = vmul.f32 %v5226, %v5226
    %v5228 = vrot.slane %v5227, 4
    %v5229 = vadd.f32 %v5227, %v5228
    %v5230 = vrot.slane %v5229, 2
    %v5231 = vadd.f32 %v5229, %v5230
    %v5232 = vrot.slane %v5231, 1
    %v5233 = vadd.f32 %v5231, %v5232
    %v5234 = vmul.f32 %v5233, %v5224
    %v5235 = vrot.slane %v5215, 4
    %v5236 = vadd.f32 %v5215, %v5235
    %v5237 = vrot.slane %v5236, 2
    %v5238 = vadd.f32 %v5236, %v5237
    %v5239 = vrot.slane %v5238, 1
    %v5240 = vadd.f32 %v5238, %v5239
    %v5241 = vmul.f32 %v5240, %v5224
    %v5242 = vsub.f32 %v5215, %v5241
    %v5243 = vmul.f32 %v5242, %v5242
    %v5244 = vrot.slane %v5243, 4
    %v5245 = vadd.f32 %v5243, %v5244
    %v5246 = vrot.slane %v5245, 2
    %v5247 = vadd.f32 %v5245, %v5246
    %v5248 = vrot.slane %v5247, 1
    %v5249 = vadd.f32 %v5247, %v5248
    %v5250 = vmul.f32 %v5249, %v5224
    %v5251 = vsel %vm634, 1, 0
    %v5252 = vsel %vm635, 1, 0
    %vm5253 = vcmp.eq.s32.totalorder %v5251, 1
    %vm5254 = vcmp.eq.s32.totalorder %v5252, 1
    %v5255 = vsel %vm5253, %v5241, %v5225
    %v5256 = vsel %vm5254, %v5241, %v5225
    %v5257 = vsel %vm5253, %v5250, %v5234
    %v5258 = vsel %vm5254, %v5250, %v5234
    %v5259 = vsub.f32 %v5212, %v5255
    %v5260 = vsub.f32 %v5215, %v5256
    %v5261 = vadd.f32 %v5257, 1e-05
    %v5262 = vadd.f32 %v5258, 1e-05
    %v5263 = vrsqrt.pop %v5261
    %v5264 = vrsqrt.pop %v5262
    %v5265 = vmul.f32 %v5259, %v5263
    %v5266 = vmul.f32 %v5260, %v5264
    %v5267 = vlaneseq
    %v5268 = vshrl.u32 %v5267, 7
    %v5269 = vsub.s32 7, %v5268
    %v5270 = vrot.slane %v141, %v5269
    %v5271 = vmul.f32 %v5265, %v5270
    %v5272 = vmul.f32 %v5266, %v5270
    %v5273 = vlaneseq
    %v5274 = vshrl.u32 %v5273, 7
    %v5275 = vsub.s32 0, %v5274
    %v5276 = vrot.slane %v142, %v5275
    %v5277 = vadd.f32 %v5271, %v5276
    %v5278 = vadd.f32 %v5272, %v5276
    %5279 = vst [vmem:[#allocation16] sm:$0xff] %v5277
    %5280 = vst [vmem:[#allocation16 + $0x8] sm:$0xff] %v5278
    // Predicated region
    $region70: #{tpu_custom_call.1} parent=1 // pred_check
      _
    $region71: #{tpu_custom_call.1} parent=1 // pred_check_branch
      %5282 = sbr.rel (0) target = $region73
    $region72: #{tpu_custom_call.1} parent=1 // pred_region
      %s5284 = ssub.s32 256, 256
      %5285 = vsyncadd [#allocation4], %s5284
      %s5286 = sshll.u32 [#allocation16], 4
      %s5287 = int_to_ptr.vmem [resolvable:$true] %s5286
      %5292 = dma.vmem_to_hbm [thread:$0]  %s5287, 256, %s9, [#allocation4], 128, 128, 8
    $region73: #{tpu_custom_call.1} parent=1 // pred_fallthru
      _
    // Predicated region
    $region74: #{tpu_custom_call.1} parent=1 // pred_check
      _
    $region75: #{tpu_custom_call.1} parent=1 // pred_check_branch
      %5294 = sbr.rel (0) target = $region77
    $region76: #{tpu_custom_call.1} parent=1 // pred_region
      %5295 = dma.done [#allocation4], 256
    $region77: #{tpu_custom_call.1} parent=1 // pred_fallthru
      _
    %5296 = vsyncpa [#allocation3], 1
    %5297 = vsyncpa [#allocation6], 1
    %5298 = vsyncpa [#allocation9], 1
    %5299 = vsyncpa [#allocation12], 1
    %5300 = vsyncpa [#allocation15], 1
    %5301 = vsyncpa [#allocation4], 1

</llo_original>
